<compile_context>
chip_gen: v7x
topology: tpu7x:2x2x1
jax: 0.10.0
libtpu: 0.0.40
codegen_flags: <defaults>
</compile_context>

<pallas_src>
import math

import jax
import jax.numpy as jnp
from jax.experimental import pallas as pl
from jax.experimental.pallas import tpu as pltpu

LOG2 = math.log(2.0)

# Element -> embedding index (stand-in for HermNet's atomic_numbers dict).
ATOMIC_NUMBERS = {"H": 0, "C": 1, "O": 2}


def _ssp(x):
    """ShiftedSoftplus: softplus(x) - log(2). Note ssp(0) == 0 (padding-safe)."""
    return jnp.maximum(x, 0.0) + jnp.log(1.0 + jnp.exp(-jnp.abs(x))) - LOG2


# ----------------------------------------------------------------------------
# Fused kernel: 4 HeteroVertexConv layers + readout, grid=(num_layers,).
# ----------------------------------------------------------------------------
def hvnet_kernel(wts_ref, wsum_ref,                      # SMEM scalars
                 s0_ref, a_ref, mask_ref,                # node / graph data
                 w1c_ref, b1c_ref, w2_ref, b2_ref, w3_ref, b3_ref,   # layer wts
                 g_ref, wf1_ref, bf1_ref, wf2_ref, bf2_ref,          # readout
                 out_ref,
                 s_cur, v_cur):                          # VMEM-resident state
    l = pl.program_id(0)
    n_layers = pl.num_programs(0)
    last_layer = l == n_layers - 1
    n_types = mask_ref.shape[0]
    fp = s_cur.shape[-1]

    # Initialize carried state at the first layer.
    @pl.when(l == 0)
    def _():
        s_cur[...] = s0_ref[...]
        v_cur[...] = jnp.zeros_like(v_cur)

    a = a_ref[...]                                       # (N, N)
    ns = s_cur[...]                                      # (N, Fp)
    nv = v_cur[...]                                      # (N, 3*Fp)
    wsum = wsum_ref[0]

    # (1) Type-batched first projection + neighbour aggregation (wide matmuls).
    h_all = _ssp(jnp.dot(ns, w1c_ref[0], preferred_element_type=jnp.float32)
                 + b1c_ref[0])                           # (N, T*Fp)
    ms_all = jnp.dot(a, h_all, preferred_element_type=jnp.float32)

    # (2) Scalar channel. Residual hoisted: sum_t w_t * ns == wsum * ns.
    s_new = wsum * ns
    ms_list = []
    for t in range(n_types):                             # static unroll over types
        mask = mask_ref[t]                               # (N, 1) dst-type row mask
        m_s = mask * ms_all[:, t * fp:(t + 1) * fp]      # mask AFTER the matmul
        ms_list.append((mask, m_s))
        s_new += wts_ref[t] * (
            jnp.dot(_ssp(m_s), w2_ref[0, t],
                    preferred_element_type=jnp.float32) + b2_ref[0, t])
    s_cur[...] = s_new

    # (3) Vector channel. A @ v is type-independent -> computed once; the whole
    #     channel is skipped for the last layer (its output is discarded).
    @pl.when(jnp.logical_not(last_layer))
    def _():
        av = jnp.dot(a, nv, preferred_element_type=jnp.float32)      # (N, 3*Fp)
        gates = [jnp.dot(ms_list[t][1], w3_ref[0, t],
                         preferred_element_type=jnp.float32) + b3_ref[0, t]
                 for t in range(n_types)]
        for c in range(3):                               # lane-aligned 128-wide slabs
            av_c = av[:, c * fp:(c + 1) * fp]
            v_c = wsum * nv[:, c * fp:(c + 1) * fp]
            for t in range(n_types):
                mask, _ = ms_list[t]
                v_c += wts_ref[t] * ((mask * av_c) * gates[t])
            v_cur[:, c * fp:(c + 1) * fp] = v_c

    # (4) Fused readout: SumPooling (one-hot matmul) + Linear -> SSP -> Linear.
    @pl.when(last_layer)
    def _():
        pooled = jnp.dot(g_ref[...], s_new,
                         preferred_element_type=jnp.float32)         # (B, Fp)
        hh = _ssp(jnp.dot(pooled, wf1_ref[...],
                          preferred_element_type=jnp.float32) + bf1_ref[...])
        out_ref[...] = jnp.dot(hh, wf2_ref[...],
                               preferred_element_type=jnp.float32) + bf2_ref[...]


def hvnet_forward(atomic_idx, A, masks, wts, G, params):
    embed, (W1, B1, W2, B2, W3, B3), (Wf1, bf1, Wf2, bf2) = params
    L, T, F, _ = W1.shape
    N = A.shape[0]
    Bg = G.shape[0]
    Fp = ((F + 127) // 128) * 128                        # lane-pad features to 128
    OUTP = 128                                           # lane-dense readout output

    def pad_to(x, axis, size):
        pads = [(0, 0)] * x.ndim
        pads[axis] = (0, size - x.shape[axis])
        return jnp.pad(x, pads)

    # Zero-padding is exact: ssp(0) == 0 keeps all padded lanes identically 0.
    embed_p = pad_to(embed, -1, Fp)
    s0 = jnp.take(embed_p, atomic_idx, axis=0)           # (N, Fp)

    W1p = pad_to(pad_to(W1, -1, Fp), -2, Fp)
    W2p = pad_to(pad_to(W2, -1, Fp), -2, Fp)
    W3p = pad_to(pad_to(W3, -1, Fp), -2, Fp)
    B1p = pad_to(B1, -1, Fp)
    B2p = pad_to(B2, -1, Fp)
    B3p = pad_to(B3, -1, Fp)

    # Batch the first projection over types: (L, Fp, T*Fp) / (L, 1, T*Fp).
    W1cat = jnp.transpose(W1p, (0, 2, 1, 3)).reshape(L, Fp, T * Fp)
    B1cat = jnp.transpose(B1p, (0, 2, 1, 3)).reshape(L, 1, T * Fp)

    Wf1p = pad_to(pad_to(Wf1, -1, Fp), -2, Fp)
    bf1p = pad_to(bf1, -1, Fp)
    Wf2p = jnp.pad(Wf2, ((0, Fp - F), (0, OUTP - Wf2.shape[1])))
    bf2p = jnp.pad(bf2, ((0, 0), (0, OUTP - bf2.shape[1])))

    wts = wts.astype(jnp.float32)
    wsum = jnp.sum(wts).reshape(1).astype(jnp.float32)

    out = pl.pallas_call(
        hvnet_kernel,
        out_shape=jax.ShapeDtypeStruct((Bg, OUTP), jnp.float32),
        grid=(L,),
        in_specs=[
            pl.BlockSpec(memory_space=pltpu.MemorySpace.SMEM),        # wts (T,)
            pl.BlockSpec(memory_space=pltpu.MemorySpace.SMEM),        # wsum (1,)
            pl.BlockSpec((N, Fp), lambda l: (0, 0)),                  # s0
            pl.BlockSpec((N, N), lambda l: (0, 0)),                   # A
            pl.BlockSpec((T, N, 1), lambda l: (0, 0, 0)),             # masks
            pl.BlockSpec((1, Fp, T * Fp), lambda l: (l, 0, 0)),       # W1cat
            pl.BlockSpec((1, 1, T * Fp), lambda l: (l, 0, 0)),        # B1cat
            pl.BlockSpec((1, T, Fp, Fp), lambda l: (l, 0, 0, 0)),     # W2
            pl.BlockSpec((1, T, 1, Fp), lambda l: (l, 0, 0, 0)),      # B2
            pl.BlockSpec((1, T, Fp, Fp), lambda l: (l, 0, 0, 0)),     # W3
            pl.BlockSpec((1, T, 1, Fp), lambda l: (l, 0, 0, 0)),      # B3
            pl.BlockSpec((Bg, N), lambda l: (0, 0)),                  # G (pooling)
            pl.BlockSpec((Fp, Fp), lambda l: (0, 0)),                 # Wf1
            pl.BlockSpec((1, Fp), lambda l: (0, 0)),                  # bf1
            pl.BlockSpec((Fp, OUTP), lambda l: (0, 0)),               # Wf2 (padded)
            pl.BlockSpec((1, OUTP), lambda l: (0, 0)),                # bf2 (padded)
        ],
        out_specs=pl.BlockSpec((Bg, OUTP), lambda l: (0, 0)),
        scratch_shapes=[
            pltpu.VMEM((N, Fp), jnp.float32),        # s_cur (carried scalar state)
            pltpu.VMEM((N, 3 * Fp), jnp.float32),    # v_cur (carried vector state)
        ],
        compiler_params=pltpu.CompilerParams(
            dimension_semantics=("arbitrary",)),
    )(wts, wsum, s0, A, masks, W1cat, B1cat, W2p, B2p, W3p, B3p,
      G, Wf1p, bf1p, Wf2p, bf2p)
    return out[:, :1]


# ----------------------------------------------------------------------------
# Pure-JAX reference (same math, unpadded) for validation.
# ----------------------------------------------------------------------------
def hvnet_ref(atomic_idx, A, masks, wts, G, params):
    embed, (W1, B1, W2, B2, W3, B3), (Wf1, bf1, Wf2, bf2) = params
    L, T, F, _ = W1.shape
    N = atomic_idx.shape[0]
    s = jnp.take(embed, atomic_idx, axis=0)
    v = jnp.zeros((N, 3, F), jnp.float32)
    for l in range(L):
        out_s = jnp.zeros_like(s)
        out_v = jnp.zeros_like(v)
        for t in range(T):
            a_t = A * masks[t]
            h = _ssp(s @ W1[l, t] + B1[l, t])
            m_s = a_t @ h
            srst = s + _ssp(m_s) @ W2[l, t] + B2[l, t]
            gate = m_s @ W3[l, t] + B3[l, t]
            m_v = jnp.einsum("ij,jcf->icf", a_t, v)
            vrst = v + m_v * gate[:, None, :]
            out_s = out_s + wts[t] * srst
            out_v = out_v + wts[t] * vrst
        s, v = out_s, out_v
    pooled = G @ s
    hh = _ssp(pooled @ Wf1 + bf1)
    return hh @ Wf2 + bf2


def init_params(key, T, F, n_layers=4):
    ks = jax.random.split(key, 10)
    scale = 1.0 / math.sqrt(F)
    embed = jax.random.normal(ks[0], (len(ATOMIC_NUMBERS), F), jnp.float32)
    W1 = scale * jax.random.normal(ks[1], (n_layers, T, F, F), jnp.float32)
    W2 = scale * jax.random.normal(ks[2], (n_layers, T, F, F), jnp.float32)
    W3 = scale * jax.random.normal(ks[3], (n_layers, T, F, F), jnp.float32)
    B1 = 0.01 * jax.random.normal(ks[4], (n_layers, T, 1, F), jnp.float32)
    B2 = 0.01 * jax.random.normal(ks[5], (n_layers, T, 1, F), jnp.float32)
    B3 = 0.01 * jax.random.normal(ks[6], (n_layers, T, 1, F), jnp.float32)
    Wf1 = scale * jax.random.normal(ks[7], (F, F), jnp.float32)
    bf1 = jnp.zeros((1, F), jnp.float32)
    Wf2 = scale * jax.random.normal(ks[8], (F, 1), jnp.float32)
    bf2 = jnp.zeros((1, 1), jnp.float32)
    return embed, (W1, B1, W2, B2, W3, B3), (Wf1, bf1, Wf2, bf2)


if __name__ == "__main__":
    key = jax.random.PRNGKey(0)
    k_param, k_type, k_adj = jax.random.split(key, 3)

    elems = list(ATOMIC_NUMBERS.keys())      # ["H", "C", "O"]
    T = len(elems)
    F = 32                                   # in_feats (lane-padded to 128 inside)
    N = 16                                   # total nodes
    B = 2                                    # graphs in the batch (8 nodes each)
    L = 4                                    # HeteroVertexConv layers

    params = init_params(k_param, T, F, n_layers=L)

    # synthetic heterogeneous graph batch (dense adjacency; A[i,j]=1 iff j->i)
    atomic_idx = jax.random.randint(k_type, (N,), 0, T)
    block = (jnp.arange(N)[:, None] // (N // B)) == (jnp.arange(N)[None, :] // (N // B))
    rand_adj = jax.random.uniform(k_adj, (N, N)) > 0.4
    A = (rand_adj & block & ~jnp.eye(N, dtype=bool)).astype(jnp.float32)

    # destination-node masks per element type (dgl.in_subgraph semantics)
    masks = (atomic_idx[None, :] == jnp.arange(T)[:, None]).astype(jnp.float32)
    masks = masks[:, :, None]                                          # (T, N, 1)

    # mean weights over types that actually have in-edges
    edge_counts = jnp.einsum("tn,n->t", masks[:, :, 0], A.sum(axis=1))
    has = (edge_counts > 0).astype(jnp.float32)
    wts = has / jnp.maximum(has.sum(), 1.0)                            # (T,)

    # graph membership one-hot (SumPooling)
    G = (jnp.arange(N)[None, :] // (N // B) == jnp.arange(B)[:, None]).astype(jnp.float32)

    pred = hvnet_forward(atomic_idx, A, masks, wts, G, params)
    pred = jax.block_until_ready(pred)

    ref = hvnet_ref(atomic_idx, A, masks, wts, G, params)
    assert pred.shape == (B, 1), pred.shape
    assert jnp.allclose(pred, ref, rtol=1e-4, atol=1e-4), (pred, ref)

    print("KERNEL_OK")
</pallas_src>

<mosaic_0001>
module attributes {stable_mosaic.version = 11 : i64} {
  func.func @hvnet_kernel(%arg0: i32, %arg1: memref<3xf32, #tpu.memory_space<smem>>, %arg2: memref<1xf32, #tpu.memory_space<smem>>, %arg3: memref<16x128xf32, #tpu.memory_space<vmem>>, %arg4: memref<16x16xf32, #tpu.memory_space<vmem>>, %arg5: memref<3x16x1xf32, #tpu.memory_space<vmem>>, %arg6: memref<1x128x384xf32, #tpu.memory_space<vmem>>, %arg7: memref<1x1x384xf32, #tpu.memory_space<vmem>>, %arg8: memref<1x3x128x128xf32, #tpu.memory_space<vmem>>, %arg9: memref<1x3x1x128xf32, #tpu.memory_space<vmem>>, %arg10: memref<1x3x128x128xf32, #tpu.memory_space<vmem>>, %arg11: memref<1x3x1x128xf32, #tpu.memory_space<vmem>>, %arg12: memref<2x16xf32, #tpu.memory_space<vmem>>, %arg13: memref<128x128xf32, #tpu.memory_space<vmem>>, %arg14: memref<1x128xf32, #tpu.memory_space<vmem>>, %arg15: memref<128x128xf32, #tpu.memory_space<vmem>>, %arg16: memref<1x128xf32, #tpu.memory_space<vmem>>, %arg17: memref<2x128xf32, #tpu.memory_space<vmem>>, %arg18: memref<16x128xf32, #tpu.memory_space<vmem>>, %arg19: memref<16x384xf32, #tpu.memory_space<vmem>>) attributes {dimension_semantics = [#tpu.dimension_semantics<arbitrary>], iteration_bounds = array<i64: 4>, scalar_prefetch = 0 : i64, scratch_operands = 2 : i64, tpu.core_type = #tpu.core_type<tc>, window_params = [{transform_indices = @transform_0, window_bounds = array<i64: 3>}, {transform_indices = @transform_1, window_bounds = array<i64: 1>}, {pipeline_mode = #tpu.pipeline_mode<synchronous>, transform_indices = @transform_2, window_bounds = array<i64: 16, 128>}, {pipeline_mode = #tpu.pipeline_mode<synchronous>, transform_indices = @transform_3, window_bounds = array<i64: 16, 16>}, {pipeline_mode = #tpu.pipeline_mode<synchronous>, transform_indices = @transform_4, window_bounds = array<i64: 3, 16, 1>}, {transform_indices = @transform_5, window_bounds = array<i64: 1, 128, 384>}, {transform_indices = @transform_6, window_bounds = array<i64: 1, 1, 384>}, {transform_indices = @transform_7, window_bounds = array<i64: 1, 3, 128, 128>}, {transform_indices = @transform_8, window_bounds = array<i64: 1, 3, 1, 128>}, {transform_indices = @transform_9, window_bounds = array<i64: 1, 3, 128, 128>}, {transform_indices = @transform_10, window_bounds = array<i64: 1, 3, 1, 128>}, {pipeline_mode = #tpu.pipeline_mode<synchronous>, transform_indices = @transform_11, window_bounds = array<i64: 2, 16>}, {pipeline_mode = #tpu.pipeline_mode<synchronous>, transform_indices = @transform_12, window_bounds = array<i64: 128, 128>}, {pipeline_mode = #tpu.pipeline_mode<synchronous>, transform_indices = @transform_13, window_bounds = array<i64: 1, 128>}, {pipeline_mode = #tpu.pipeline_mode<synchronous>, transform_indices = @transform_14, window_bounds = array<i64: 128, 128>}, {pipeline_mode = #tpu.pipeline_mode<synchronous>, transform_indices = @transform_15, window_bounds = array<i64: 1, 128>}, {pipeline_mode = #tpu.pipeline_mode<synchronous>, transform_indices = @transform_16, window_bounds = array<i64: 2, 128>}]} {
    %c3_i32 = arith.constant 3 : i32
    %0 = arith.cmpi eq, %arg0, %c3_i32 : i32
    %c0_i32 = arith.constant 0 : i32
    %1 = arith.cmpi eq, %arg0, %c0_i32 : i32
    %2 = arith.extui %1 : i1 to i32
    %c0_i32_0 = arith.constant 0 : i32
    %3 = arith.cmpi ne, %2, %c0_i32_0 : i32
    scf.if %3 {
      %c0_71 = arith.constant 0 : index
      %c0_72 = arith.constant 0 : index
      %120 = vector.load %arg3[%c0_71, %c0_72] : memref<16x128xf32, #tpu.memory_space<vmem>>, vector<16x128xf32>
      %c0_73 = arith.constant 0 : index
      %c0_74 = arith.constant 0 : index
      %121 = vector.load %arg18[%c0_73, %c0_74] : memref<16x128xf32, #tpu.memory_space<vmem>>, vector<16x128xf32>
      tpu.vector_store %arg18[%c0_73, %c0_74], %120 {strides = array<i32>} : memref<16x128xf32, #tpu.memory_space<vmem>>, vector<16x128xf32>,
      %cst_75 = arith.constant 0.000000e+00 : f32
      %122 = vector.broadcast %cst_75 : f32 to vector<16x384xf32>
      %c0_76 = arith.constant 0 : index
      %c0_77 = arith.constant 0 : index
      %123 = vector.load %arg19[%c0_76, %c0_77] : memref<16x384xf32, #tpu.memory_space<vmem>>, vector<16x384xf32>
      tpu.vector_store %arg19[%c0_76, %c0_77], %122 {strides = array<i32>} : memref<16x384xf32, #tpu.memory_space<vmem>>, vector<16x384xf32>,
    } else {
    }
    %c0 = arith.constant 0 : index
    %c0_1 = arith.constant 0 : index
    %4 = vector.load %arg4[%c0, %c0_1] : memref<16x16xf32, #tpu.memory_space<vmem>>, vector<16x16xf32>
    %c0_2 = arith.constant 0 : index
    %c0_3 = arith.constant 0 : index
    %5 = vector.load %arg18[%c0_2, %c0_3] : memref<16x128xf32, #tpu.memory_space<vmem>>, vector<16x128xf32>
    %c0_4 = arith.constant 0 : index
    %c0_5 = arith.constant 0 : index
    %6 = vector.load %arg19[%c0_4, %c0_5] : memref<16x384xf32, #tpu.memory_space<vmem>>, vector<16x384xf32>
    %c0_6 = arith.constant 0 : index
    %7 = memref.load %arg2[%c0_6] : memref<1xf32, #tpu.memory_space<smem>>
    %c0_7 = arith.constant 0 : index
    %c0_8 = arith.constant 0 : index
    %c0_9 = arith.constant 0 : index
    %8 = vector.load %arg6[%c0_7, %c0_8, %c0_9] : memref<1x128x384xf32, #tpu.memory_space<vmem>>, vector<1x128x384xf32>
    %9 = vector.shape_cast %8 : vector<1x128x384xf32> to vector<128x384xf32>
    %cst = arith.constant dense<0.000000e+00> : vector<16x384xf32>
    %10 = tpu.matmul %5, %9, %cst {dimension_numbers = #tpu.dot_dimension_numbers<[1], [0], [0], [1], [0, 0, 1, 1], [], []>} : vector<16x128xf32>, vector<128x384xf32>, vector<16x384xf32> -> vector<16x384xf32>
    %c0_10 = arith.constant 0 : index
    %c0_11 = arith.constant 0 : index
    %c0_12 = arith.constant 0 : index
    %11 = vector.load %arg7[%c0_10, %c0_11, %c0_12] : memref<1x1x384xf32, #tpu.memory_space<vmem>>, vector<1x1x384xf32>
    %12 = vector.shape_cast %11 : vector<1x1x384xf32> to vector<1x384xf32>
    %13 = vector.broadcast %12 : vector<1x384xf32> to vector<16x384xf32>
    %14 = arith.addf %10, %13 : vector<16x384xf32>
    %cst_13 = arith.constant 0.000000e+00 : f32
    %15 = vector.broadcast %cst_13 : f32 to vector<16x384xf32>
    %16 = arith.maximumf %14, %15 : vector<16x384xf32>
    %17 = math.absf %14 : vector<16x384xf32>
    %cst_14 = arith.constant 0.000000e+00 : f32
    %18 = vector.broadcast %cst_14 : f32 to vector<16x384xf32>
    %19 = arith.subf %18, %17 : vector<16x384xf32>
    %20 = math.exp %19 : vector<16x384xf32>
    %cst_15 = arith.constant 1.000000e+00 : f32
    %21 = vector.broadcast %cst_15 : f32 to vector<16x384xf32>
    %22 = arith.addf %21, %20 : vector<16x384xf32>
    %23 = math.log %22 : vector<16x384xf32>
    %24 = arith.addf %16, %23 : vector<16x384xf32>
    %cst_16 = arith.constant 0.693147182 : f32
    %25 = vector.broadcast %cst_16 : f32 to vector<16x384xf32>
    %26 = arith.subf %24, %25 : vector<16x384xf32>
    %cst_17 = arith.constant dense<0.000000e+00> : vector<16x384xf32>
    %27 = tpu.matmul %4, %26, %cst_17 {dimension_numbers = #tpu.dot_dimension_numbers<[1], [0], [0], [1], [0, 0, 1, 1], [], []>} : vector<16x16xf32>, vector<16x384xf32>, vector<16x384xf32> -> vector<16x384xf32>
    %28 = vector.broadcast %7 : f32 to vector<16x128xf32>
    %29 = arith.mulf %28, %5 : vector<16x128xf32>
    %c0_18 = arith.constant 0 : index
    %c0_19 = arith.constant 0 : index
    %c0_20 = arith.constant 0 : index
    %30 = vector.load %arg5[%c0_18, %c0_19, %c0_20] : memref<3x16x1xf32, #tpu.memory_space<vmem>>, vector<1x16x1xf32>
    %31 = vector.shape_cast %30 : vector<1x16x1xf32> to vector<16x1xf32>
    %32 = vector.extract_strided_slice %27 {offsets = [0, 0], sizes = [16, 128], strides = [1, 1]} : vector<16x384xf32> to vector<16x128xf32>
    %33 = vector.broadcast %31 : vector<16x1xf32> to vector<16x128xf32>
    %34 = arith.mulf %33, %32 : vector<16x128xf32>
    %c0_21 = arith.constant 0 : index
    %35 = memref.load %arg1[%c0_21] : memref<3xf32, #tpu.memory_space<smem>>
    %cst_22 = arith.constant 0.000000e+00 : f32
    %36 = vector.broadcast %cst_22 : f32 to vector<16x128xf32>
    %37 = arith.maximumf %34, %36 : vector<16x128xf32>
    %38 = math.absf %34 : vector<16x128xf32>
    %cst_23 = arith.constant 0.000000e+00 : f32
    %39 = vector.broadcast %cst_23 : f32 to vector<16x128xf32>
    %40 = arith.subf %39, %38 : vector<16x128xf32>
    %41 = math.exp %40 : vector<16x128xf32>
    %cst_24 = arith.constant 1.000000e+00 : f32
    %42 = vector.broadcast %cst_24 : f32 to vector<16x128xf32>
    %43 = arith.addf %42, %41 : vector<16x128xf32>
    %44 = math.log %43 : vector<16x128xf32>
    %45 = arith.addf %37, %44 : vector<16x128xf32>
    %cst_25 = arith.constant 0.693147182 : f32
    %46 = vector.broadcast %cst_25 : f32 to vector<16x128xf32>
    %47 = arith.subf %45, %46 : vector<16x128xf32>
    %c0_26 = arith.constant 0 : index
    %c0_27 = arith.constant 0 : index
    %c0_28 = arith.constant 0 : index
    %c0_29 = arith.constant 0 : index
    %48 = vector.load %arg8[%c0_26, %c0_27, %c0_28, %c0_29] : memref<1x3x128x128xf32, #tpu.memory_space<vmem>>, vector<1x1x128x128xf32>
    %49 = vector.shape_cast %48 : vector<1x1x128x128xf32> to vector<128x128xf32>
    %cst_30 = arith.constant dense<0.000000e+00> : vector<16x128xf32>
    %50 = tpu.matmul %47, %49, %cst_30 {dimension_numbers = #tpu.dot_dimension_numbers<[1], [0], [0], [1], [0, 0, 1, 1], [], []>} : vector<16x128xf32>, vector<128x128xf32>, vector<16x128xf32> -> vector<16x128xf32>
    %c0_31 = arith.constant 0 : index
    %c0_32 = arith.constant 0 : index
    %c0_33 = arith.constant 0 : index
    %c0_34 = arith.constant 0 : index
    %51 = vector.load %arg9[%c0_31, %c0_32, %c0_33, %c0_34] : memref<1x3x1x128xf32, #tpu.memory_space<vmem>>, vector<1x1x1x128xf32>
    %52 = vector.shape_cast %51 : vector<1x1x1x128xf32> to vector<1x128xf32>
    %53 = vector.broadcast %52 : vector<1x128xf32> to vector<16x128xf32>
    %54 = arith.addf %50, %53 : vector<16x128xf32>
    %55 = vector.broadcast %35 : f32 to vector<16x128xf32>
    %56 = arith.mulf %55, %54 : vector<16x128xf32>
    %57 = arith.addf %29, %56 : vector<16x128xf32>
    %c1 = arith.constant 1 : index
    %c0_35 = arith.constant 0 : index
    %c0_36 = arith.constant 0 : index
    %58 = vector.load %arg5[%c1, %c0_35, %c0_36] : memref<3x16x1xf32, #tpu.memory_space<vmem>>, vector<1x16x1xf32>
    %59 = vector.shape_cast %58 : vector<1x16x1xf32> to vector<16x1xf32>
    %60 = vector.extract_strided_slice %27 {offsets = [0, 128], sizes = [16, 128], strides = [1, 1]} : vector<16x384xf32> to vector<16x128xf32>
    %61 = vector.broadcast %59 : vector<16x1xf32> to vector<16x128xf32>
    %62 = arith.mulf %61, %60 : vector<16x128xf32>
    %c1_37 = arith.constant 1 : index
    %63 = memref.load %arg1[%c1_37] : memref<3xf32, #tpu.memory_space<smem>>
    %cst_38 = arith.constant 0.000000e+00 : f32
    %64 = vector.broadcast %cst_38 : f32 to vector<16x128xf32>
    %65 = arith.maximumf %62, %64 : vector<16x128xf32>
    %66 = math.absf %62 : vector<16x128xf32>
    %cst_39 = arith.constant 0.000000e+00 : f32
    %67 = vector.broadcast %cst_39 : f32 to vector<16x128xf32>
    %68 = arith.subf %67, %66 : vector<16x128xf32>
    %69 = math.exp %68 : vector<16x128xf32>
    %cst_40 = arith.constant 1.000000e+00 : f32
    %70 = vector.broadcast %cst_40 : f32 to vector<16x128xf32>
    %71 = arith.addf %70, %69 : vector<16x128xf32>
    %72 = math.log %71 : vector<16x128xf32>
    %73 = arith.addf %65, %72 : vector<16x128xf32>
    %cst_41 = arith.constant 0.693147182 : f32
    %74 = vector.broadcast %cst_41 : f32 to vector<16x128xf32>
    %75 = arith.subf %73, %74 : vector<16x128xf32>
    %c0_42 = arith.constant 0 : index
    %c1_43 = arith.constant 1 : index
    %c0_44 = arith.constant 0 : index
    %c0_45 = arith.constant 0 : index
    %76 = vector.load %arg8[%c0_42, %c1_43, %c0_44, %c0_45] : memref<1x3x128x128xf32, #tpu.memory_space<vmem>>, vector<1x1x128x128xf32>
    %77 = vector.shape_cast %76 : vector<1x1x128x128xf32> to vector<128x128xf32>
    %cst_46 = arith.constant dense<0.000000e+00> : vector<16x128xf32>
    %78 = tpu.matmul %75, %77, %cst_46 {dimension_numbers = #tpu.dot_dimension_numbers<[1], [0], [0], [1], [0, 0, 1, 1], [], []>} : vector<16x128xf32>, vector<128x128xf32>, vector<16x128xf32> -> vector<16x128xf32>
    %c0_47 = arith.constant 0 : index
    %c1_48 = arith.constant 1 : index
    %c0_49 = arith.constant 0 : index
    %c0_50 = arith.constant 0 : index
    %79 = vector.load %arg9[%c0_47, %c1_48, %c0_49, %c0_50] : memref<1x3x1x128xf32, #tpu.memory_space<vmem>>, vector<1x1x1x128xf32>
    %80 = vector.shape_cast %79 : vector<1x1x1x128xf32> to vector<1x128xf32>
    %81 = vector.broadcast %80 : vector<1x128xf32> to vector<16x128xf32>
    %82 = arith.addf %78, %81 : vector<16x128xf32>
    %83 = vector.broadcast %63 : f32 to vector<16x128xf32>
    %84 = arith.mulf %83, %82 : vector<16x128xf32>
    %85 = arith.addf %57, %84 : vector<16x128xf32>
    %c2 = arith.constant 2 : index
    %c0_51 = arith.constant 0 : index
    %c0_52 = arith.constant 0 : index
    %86 = vector.load %arg5[%c2, %c0_51, %c0_52] : memref<3x16x1xf32, #tpu.memory_space<vmem>>, vector<1x16x1xf32>
    %87 = vector.shape_cast %86 : vector<1x16x1xf32> to vector<16x1xf32>
    %88 = vector.extract_strided_slice %27 {offsets = [0, 256], sizes = [16, 128], strides = [1, 1]} : vector<16x384xf32> to vector<16x128xf32>
    %89 = vector.broadcast %87 : vector<16x1xf32> to vector<16x128xf32>
    %90 = arith.mulf %89, %88 : vector<16x128xf32>
    %c2_53 = arith.constant 2 : index
    %91 = memref.load %arg1[%c2_53] : memref<3xf32, #tpu.memory_space<smem>>
    %cst_54 = arith.constant 0.000000e+00 : f32
    %92 = vector.broadcast %cst_54 : f32 to vector<16x128xf32>
    %93 = arith.maximumf %90, %92 : vector<16x128xf32>
    %94 = math.absf %90 : vector<16x128xf32>
    %cst_55 = arith.constant 0.000000e+00 : f32
    %95 = vector.broadcast %cst_55 : f32 to vector<16x128xf32>
    %96 = arith.subf %95, %94 : vector<16x128xf32>
    %97 = math.exp %96 : vector<16x128xf32>
    %cst_56 = arith.constant 1.000000e+00 : f32
    %98 = vector.broadcast %cst_56 : f32 to vector<16x128xf32>
    %99 = arith.addf %98, %97 : vector<16x128xf32>
    %100 = math.log %99 : vector<16x128xf32>
    %101 = arith.addf %93, %100 : vector<16x128xf32>
    %cst_57 = arith.constant 0.693147182 : f32
    %102 = vector.broadcast %cst_57 : f32 to vector<16x128xf32>
    %103 = arith.subf %101, %102 : vector<16x128xf32>
    %c0_58 = arith.constant 0 : index
    %c2_59 = arith.constant 2 : index
    %c0_60 = arith.constant 0 : index
    %c0_61 = arith.constant 0 : index
    %104 = vector.load %arg8[%c0_58, %c2_59, %c0_60, %c0_61] : memref<1x3x128x128xf32, #tpu.memory_space<vmem>>, vector<1x1x128x128xf32>
    %105 = vector.shape_cast %104 : vector<1x1x128x128xf32> to vector<128x128xf32>
    %cst_62 = arith.constant dense<0.000000e+00> : vector<16x128xf32>
    %106 = tpu.matmul %103, %105, %cst_62 {dimension_numbers = #tpu.dot_dimension_numbers<[1], [0], [0], [1], [0, 0, 1, 1], [], []>} : vector<16x128xf32>, vector<128x128xf32>, vector<16x128xf32> -> vector<16x128xf32>
    %c0_63 = arith.constant 0 : index
    %c2_64 = arith.constant 2 : index
    %c0_65 = arith.constant 0 : index
    %c0_66 = arith.constant 0 : index
    %107 = vector.load %arg9[%c0_63, %c2_64, %c0_65, %c0_66] : memref<1x3x1x128xf32, #tpu.memory_space<vmem>>, vector<1x1x1x128xf32>
    %108 = vector.shape_cast %107 : vector<1x1x1x128xf32> to vector<1x128xf32>
    %109 = vector.broadcast %108 : vector<1x128xf32> to vector<16x128xf32>
    %110 = arith.addf %106, %109 : vector<16x128xf32>
    %111 = vector.broadcast %91 : f32 to vector<16x128xf32>
    %112 = arith.mulf %111, %110 : vector<16x128xf32>
    %113 = arith.addf %85, %112 : vector<16x128xf32>
    %c0_67 = arith.constant 0 : index
    %c0_68 = arith.constant 0 : index
    %114 = vector.load %arg18[%c0_67, %c0_68] : memref<16x128xf32, #tpu.memory_space<vmem>>, vector<16x128xf32>
    tpu.vector_store %arg18[%c0_67, %c0_68], %113 {strides = array<i32>} : memref<16x128xf32, #tpu.memory_space<vmem>>, vector<16x128xf32>,
    %true = arith.constant true
    %115 = arith.xori %0, %true : i1
    %116 = arith.extui %115 : i1 to i32
    %c0_i32_69 = arith.constant 0 : i32
    %117 = arith.cmpi ne, %116, %c0_i32_69 : i32
    scf.if %117 {
      %cst_71 = arith.constant dense<0.000000e+00> : vector<16x384xf32>
      %120 = tpu.matmul %4, %6, %cst_71 {dimension_numbers = #tpu.dot_dimension_numbers<[1], [0], [0], [1], [0, 0, 1, 1], [], []>} : vector<16x16xf32>, vector<16x384xf32>, vector<16x384xf32> -> vector<16x384xf32>
      %c0_72 = arith.constant 0 : index
      %c0_73 = arith.constant 0 : index
      %c0_74 = arith.constant 0 : index
      %c0_75 = arith.constant 0 : index
      %121 = vector.load %arg10[%c0_72, %c0_73, %c0_74, %c0_75] : memref<1x3x128x128xf32, #tpu.memory_space<vmem>>, vector<1x1x128x128xf32>
      %122 = vector.shape_cast %121 : vector<1x1x128x128xf32> to vector<128x128xf32>
      %cst_76 = arith.constant dense<0.000000e+00> : vector<16x128xf32>
      %123 = tpu.matmul %34, %122, %cst_76 {dimension_numbers = #tpu.dot_dimension_numbers<[1], [0], [0], [1], [0, 0, 1, 1], [], []>} : vector<16x128xf32>, vector<128x128xf32>, vector<16x128xf32> -> vector<16x128xf32>
      %c0_77 = arith.constant 0 : index
      %c0_78 = arith.constant 0 : index
      %c0_79 = arith.constant 0 : index
      %c0_80 = arith.constant 0 : index
      %124 = vector.load %arg11[%c0_77, %c0_78, %c0_79, %c0_80] : memref<1x3x1x128xf32, #tpu.memory_space<vmem>>, vector<1x1x1x128xf32>
      %125 = vector.shape_cast %124 : vector<1x1x1x128xf32> to vector<1x128xf32>
      %126 = vector.broadcast %125 : vector<1x128xf32> to vector<16x128xf32>
      %127 = arith.addf %123, %126 : vector<16x128xf32>
      %c0_81 = arith.constant 0 : index
      %c1_82 = arith.constant 1 : index
      %c0_83 = arith.constant 0 : index
      %c0_84 = arith.constant 0 : index
      %128 = vector.load %arg10[%c0_81, %c1_82, %c0_83, %c0_84] : memref<1x3x128x128xf32, #tpu.memory_space<vmem>>, vector<1x1x128x128xf32>
      %129 = vector.shape_cast %128 : vector<1x1x128x128xf32> to vector<128x128xf32>
      %cst_85 = arith.constant dense<0.000000e+00> : vector<16x128xf32>
      %130 = tpu.matmul %62, %129, %cst_85 {dimension_numbers = #tpu.dot_dimension_numbers<[1], [0], [0], [1], [0, 0, 1, 1], [], []>} : vector<16x128xf32>, vector<128x128xf32>, vector<16x128xf32> -> vector<16x128xf32>
      %c0_86 = arith.constant 0 : index
      %c1_87 = arith.constant 1 : index
      %c0_88 = arith.constant 0 : index
      %c0_89 = arith.constant 0 : index
      %131 = vector.load %arg11[%c0_86, %c1_87, %c0_88, %c0_89] : memref<1x3x1x128xf32, #tpu.memory_space<vmem>>, vector<1x1x1x128xf32>
      %132 = vector.shape_cast %131 : vector<1x1x1x128xf32> to vector<1x128xf32>
      %133 = vector.broadcast %132 : vector<1x128xf32> to vector<16x128xf32>
      %134 = arith.addf %130, %133 : vector<16x128xf32>
      %c0_90 = arith.constant 0 : index
      %c2_91 = arith.constant 2 : index
      %c0_92 = arith.constant 0 : index
      %c0_93 = arith.constant 0 : index
      %135 = vector.load %arg10[%c0_90, %c2_91, %c0_92, %c0_93] : memref<1x3x128x128xf32, #tpu.memory_space<vmem>>, vector<1x1x128x128xf32>
      %136 = vector.shape_cast %135 : vector<1x1x128x128xf32> to vector<128x128xf32>
      %cst_94 = arith.constant dense<0.000000e+00> : vector<16x128xf32>
      %137 = tpu.matmul %90, %136, %cst_94 {dimension_numbers = #tpu.dot_dimension_numbers<[1], [0], [0], [1], [0, 0, 1, 1], [], []>} : vector<16x128xf32>, vector<128x128xf32>, vector<16x128xf32> -> vector<16x128xf32>
      %c0_95 = arith.constant 0 : index
      %c2_96 = arith.constant 2 : index
      %c0_97 = arith.constant 0 : index
      %c0_98 = arith.constant 0 : index
      %138 = vector.load %arg11[%c0_95, %c2_96, %c0_97, %c0_98] : memref<1x3x1x128xf32, #tpu.memory_space<vmem>>, vector<1x1x1x128xf32>
      %139 = vector.shape_cast %138 : vector<1x1x1x128xf32> to vector<1x128xf32>
      %140 = vector.broadcast %139 : vector<1x128xf32> to vector<16x128xf32>
      %141 = arith.addf %137, %140 : vector<16x128xf32>
      %142 = vector.extract_strided_slice %120 {offsets = [0, 0], sizes = [16, 128], strides = [1, 1]} : vector<16x384xf32> to vector<16x128xf32>
      %143 = vector.extract_strided_slice %6 {offsets = [0, 0], sizes = [16, 128], strides = [1, 1]} : vector<16x384xf32> to vector<16x128xf32>
      %144 = vector.broadcast %7 : f32 to vector<16x128xf32>
      %145 = arith.mulf %144, %143 : vector<16x128xf32>
      %c0_99 = arith.constant 0 : index
      %146 = memref.load %arg1[%c0_99] : memref<3xf32, #tpu.memory_space<smem>>
      %147 = vector.broadcast %31 : vector<16x1xf32> to vector<16x128xf32>
      %148 = arith.mulf %147, %142 : vector<16x128xf32>
      %149 = arith.mulf %148, %127 : vector<16x128xf32>
      %150 = vector.broadcast %146 : f32 to vector<16x128xf32>
      %151 = arith.mulf %150, %149 : vector<16x128xf32>
      %152 = arith.addf %145, %151 : vector<16x128xf32>
      %c1_100 = arith.constant 1 : index
      %153 = memref.load %arg1[%c1_100] : memref<3xf32, #tpu.memory_space<smem>>
      %154 = vector.broadcast %59 : vector<16x1xf32> to vector<16x128xf32>
      %155 = arith.mulf %154, %142 : vector<16x128xf32>
      %156 = arith.mulf %155, %134 : vector<16x128xf32>
      %157 = vector.broadcast %153 : f32 to vector<16x128xf32>
      %158 = arith.mulf %157, %156 : vector<16x128xf32>
      %159 = arith.addf %152, %158 : vector<16x128xf32>
      %c2_101 = arith.constant 2 : index
      %160 = memref.load %arg1[%c2_101] : memref<3xf32, #tpu.memory_space<smem>>
      %161 = vector.broadcast %87 : vector<16x1xf32> to vector<16x128xf32>
      %162 = arith.mulf %161, %142 : vector<16x128xf32>
      %163 = arith.mulf %162, %141 : vector<16x128xf32>
      %164 = vector.broadcast %160 : f32 to vector<16x128xf32>
      %165 = arith.mulf %164, %163 : vector<16x128xf32>
      %166 = arith.addf %159, %165 : vector<16x128xf32>
      %c0_102 = arith.constant 0 : index
      %c0_103 = arith.constant 0 : index
      %167 = vector.load %arg19[%c0_102, %c0_103] : memref<16x384xf32, #tpu.memory_space<vmem>>, vector<16x128xf32>
      tpu.vector_store %arg19[%c0_102, %c0_103], %166 {strides = array<i32>} : memref<16x384xf32, #tpu.memory_space<vmem>>, vector<16x128xf32>,
      %168 = vector.extract_strided_slice %120 {offsets = [0, 128], sizes = [16, 128], strides = [1, 1]} : vector<16x384xf32> to vector<16x128xf32>
      %169 = vector.extract_strided_slice %6 {offsets = [0, 128], sizes = [16, 128], strides = [1, 1]} : vector<16x384xf32> to vector<16x128xf32>
      %170 = vector.broadcast %7 : f32 to vector<16x128xf32>
      %171 = arith.mulf %170, %169 : vector<16x128xf32>
      %c0_104 = arith.constant 0 : index
      %172 = memref.load %arg1[%c0_104] : memref<3xf32, #tpu.memory_space<smem>>
      %173 = vector.broadcast %31 : vector<16x1xf32> to vector<16x128xf32>
      %174 = arith.mulf %173, %168 : vector<16x128xf32>
      %175 = arith.mulf %174, %127 : vector<16x128xf32>
      %176 = vector.broadcast %172 : f32 to vector<16x128xf32>
      %177 = arith.mulf %176, %175 : vector<16x128xf32>
      %178 = arith.addf %171, %177 : vector<16x128xf32>
      %c1_105 = arith.constant 1 : index
      %179 = memref.load %arg1[%c1_105] : memref<3xf32, #tpu.memory_space<smem>>
      %180 = vector.broadcast %59 : vector<16x1xf32> to vector<16x128xf32>
      %181 = arith.mulf %180, %168 : vector<16x128xf32>
      %182 = arith.mulf %181, %134 : vector<16x128xf32>
      %183 = vector.broadcast %179 : f32 to vector<16x128xf32>
      %184 = arith.mulf %183, %182 : vector<16x128xf32>
      %185 = arith.addf %178, %184 : vector<16x128xf32>
      %c2_106 = arith.constant 2 : index
      %186 = memref.load %arg1[%c2_106] : memref<3xf32, #tpu.memory_space<smem>>
      %187 = vector.broadcast %87 : vector<16x1xf32> to vector<16x128xf32>
      %188 = arith.mulf %187, %168 : vector<16x128xf32>
      %189 = arith.mulf %188, %141 : vector<16x128xf32>
      %190 = vector.broadcast %186 : f32 to vector<16x128xf32>
      %191 = arith.mulf %190, %189 : vector<16x128xf32>
      %192 = arith.addf %185, %191 : vector<16x128xf32>
      %c0_107 = arith.constant 0 : index
      %c128 = arith.constant 128 : index
      %193 = vector.load %arg19[%c0_107, %c128] : memref<16x384xf32, #tpu.memory_space<vmem>>, vector<16x128xf32>
      tpu.vector_store %arg19[%c0_107, %c128], %192 {strides = array<i32>} : memref<16x384xf32, #tpu.memory_space<vmem>>, vector<16x128xf32>,
      %194 = vector.extract_strided_slice %120 {offsets = [0, 256], sizes = [16, 128], strides = [1, 1]} : vector<16x384xf32> to vector<16x128xf32>
      %195 = vector.extract_strided_slice %6 {offsets = [0, 256], sizes = [16, 128], strides = [1, 1]} : vector<16x384xf32> to vector<16x128xf32>
      %196 = vector.broadcast %7 : f32 to vector<16x128xf32>
      %197 = arith.mulf %196, %195 : vector<16x128xf32>
      %c0_108 = arith.constant 0 : index
      %198 = memref.load %arg1[%c0_108] : memref<3xf32, #tpu.memory_space<smem>>
      %199 = vector.broadcast %31 : vector<16x1xf32> to vector<16x128xf32>
      %200 = arith.mulf %199, %194 : vector<16x128xf32>
      %201 = arith.mulf %200, %127 : vector<16x128xf32>
      %202 = vector.broadcast %198 : f32 to vector<16x128xf32>
      %203 = arith.mulf %202, %201 : vector<16x128xf32>
      %204 = arith.addf %197, %203 : vector<16x128xf32>
      %c1_109 = arith.constant 1 : index
      %205 = memref.load %arg1[%c1_109] : memref<3xf32, #tpu.memory_space<smem>>
      %206 = vector.broadcast %59 : vector<16x1xf32> to vector<16x128xf32>
      %207 = arith.mulf %206, %194 : vector<16x128xf32>
      %208 = arith.mulf %207, %134 : vector<16x128xf32>
      %209 = vector.broadcast %205 : f32 to vector<16x128xf32>
      %210 = arith.mulf %209, %208 : vector<16x128xf32>
      %211 = arith.addf %204, %210 : vector<16x128xf32>
      %c2_110 = arith.constant 2 : index
      %212 = memref.load %arg1[%c2_110] : memref<3xf32, #tpu.memory_space<smem>>
      %213 = vector.broadcast %87 : vector<16x1xf32> to vector<16x128xf32>
      %214 = arith.mulf %213, %194 : vector<16x128xf32>
      %215 = arith.mulf %214, %141 : vector<16x128xf32>
      %216 = vector.broadcast %212 : f32 to vector<16x128xf32>
      %217 = arith.mulf %216, %215 : vector<16x128xf32>
      %218 = arith.addf %211, %217 : vector<16x128xf32>
      %c0_111 = arith.constant 0 : index
      %c256 = arith.constant 256 : index
      %219 = vector.load %arg19[%c0_111, %c256] : memref<16x384xf32, #tpu.memory_space<vmem>>, vector<16x128xf32>
      tpu.vector_store %arg19[%c0_111, %c256], %218 {strides = array<i32>} : memref<16x384xf32, #tpu.memory_space<vmem>>, vector<16x128xf32>,
    } else {
    }
    %118 = arith.extui %0 : i1 to i32
    %c0_i32_70 = arith.constant 0 : i32
    %119 = arith.cmpi ne, %118, %c0_i32_70 : i32
    scf.if %119 {
      %c0_71 = arith.constant 0 : index
      %c0_72 = arith.constant 0 : index
      %120 = vector.load %arg12[%c0_71, %c0_72] : memref<2x16xf32, #tpu.memory_space<vmem>>, vector<2x16xf32>
      %cst_73 = arith.constant dense<0.000000e+00> : vector<2x128xf32>
      %121 = tpu.matmul %120, %113, %cst_73 {dimension_numbers = #tpu.dot_dimension_numbers<[1], [0], [0], [1], [0, 0, 1, 1], [], []>} : vector<2x16xf32>, vector<16x128xf32>, vector<2x128xf32> -> vector<2x128xf32>
      %c0_74 = arith.constant 0 : index
      %c0_75 = arith.constant 0 : index
      %122 = vector.load %arg13[%c0_74, %c0_75] : memref<128x128xf32, #tpu.memory_space<vmem>>, vector<128x128xf32>
      %cst_76 = arith.constant dense<0.000000e+00> : vector<2x128xf32>
      %123 = tpu.matmul %121, %122, %cst_76 {dimension_numbers = #tpu.dot_dimension_numbers<[1], [0], [0], [1], [0, 0, 1, 1], [], []>} : vector<2x128xf32>, vector<128x128xf32>, vector<2x128xf32> -> vector<2x128xf32>
      %c0_77 = arith.constant 0 : index
      %c0_78 = arith.constant 0 : index
      %124 = vector.load %arg14[%c0_77, %c0_78] : memref<1x128xf32, #tpu.memory_space<vmem>>, vector<1x128xf32>
      %125 = vector.broadcast %124 : vector<1x128xf32> to vector<2x128xf32>
      %126 = arith.addf %123, %125 : vector<2x128xf32>
      %cst_79 = arith.constant 0.000000e+00 : f32
      %127 = vector.broadcast %cst_79 : f32 to vector<2x128xf32>
      %128 = arith.maximumf %126, %127 : vector<2x128xf32>
      %129 = math.absf %126 : vector<2x128xf32>
      %cst_80 = arith.constant 0.000000e+00 : f32
      %130 = vector.broadcast %cst_80 : f32 to vector<2x128xf32>
      %131 = arith.subf %130, %129 : vector<2x128xf32>
      %132 = math.exp %131 : vector<2x128xf32>
      %cst_81 = arith.constant 1.000000e+00 : f32
      %133 = vector.broadcast %cst_81 : f32 to vector<2x128xf32>
      %134 = arith.addf %133, %132 : vector<2x128xf32>
      %135 = math.log %134 : vector<2x128xf32>
      %136 = arith.addf %128, %135 : vector<2x128xf32>
      %cst_82 = arith.constant 0.693147182 : f32
      %137 = vector.broadcast %cst_82 : f32 to vector<2x128xf32>
      %138 = arith.subf %136, %137 : vector<2x128xf32>
      %c0_83 = arith.constant 0 : index
      %c0_84 = arith.constant 0 : index
      %139 = vector.load %arg15[%c0_83, %c0_84] : memref<128x128xf32, #tpu.memory_space<vmem>>, vector<128x128xf32>
      %cst_85 = arith.constant dense<0.000000e+00> : vector<2x128xf32>
      %140 = tpu.matmul %138, %139, %cst_85 {dimension_numbers = #tpu.dot_dimension_numbers<[1], [0], [0], [1], [0, 0, 1, 1], [], []>} : vector<2x128xf32>, vector<128x128xf32>, vector<2x128xf32> -> vector<2x128xf32>
      %c0_86 = arith.constant 0 : index
      %c0_87 = arith.constant 0 : index
      %141 = vector.load %arg16[%c0_86, %c0_87] : memref<1x128xf32, #tpu.memory_space<vmem>>, vector<1x128xf32>
      %142 = vector.broadcast %141 : vector<1x128xf32> to vector<2x128xf32>
      %143 = arith.addf %140, %142 : vector<2x128xf32>
      %c0_88 = arith.constant 0 : index
      %c0_89 = arith.constant 0 : index
      %144 = vector.load %arg17[%c0_88, %c0_89] : memref<2x128xf32, #tpu.memory_space<vmem>>, vector<2x128xf32>
      tpu.vector_store %arg17[%c0_88, %c0_89], %143 {strides = array<i32>} : memref<2x128xf32, #tpu.memory_space<vmem>>, vector<2x128xf32>,
    } else {
    }
    return
  }
  func.func @transform_0(%arg0: i32) -> i32 {
    %c0_i32 = arith.constant 0 : i32
    %c0_i32_0 = arith.constant 0 : i32
    return %c0_i32 : i32
  }
  func.func @transform_1(%arg0: i32) -> i32 {
    %c0_i32 = arith.constant 0 : i32
    %c0_i32_0 = arith.constant 0 : i32
    return %c0_i32 : i32
  }
  func.func @transform_2(%arg0: i32) -> (i32, i32) {
    %c0_i32 = arith.constant 0 : i32
    %c0_i32_0 = arith.constant 0 : i32
    %c0_i32_1 = arith.constant 0 : i32
    return %c0_i32, %c0_i32_0 : i32, i32
  }
  func.func @transform_3(%arg0: i32) -> (i32, i32) {
    %c0_i32 = arith.constant 0 : i32
    %c0_i32_0 = arith.constant 0 : i32
    %c0_i32_1 = arith.constant 0 : i32
    return %c0_i32, %c0_i32_0 : i32, i32
  }
  func.func @transform_4(%arg0: i32) -> (i32, i32, i32) {
    %c0_i32 = arith.constant 0 : i32
    %c0_i32_0 = arith.constant 0 : i32
    %c0_i32_1 = arith.constant 0 : i32
    %c0_i32_2 = arith.constant 0 : i32
    return %c0_i32, %c0_i32_0, %c0_i32_1 : i32, i32, i32
  }
  func.func @transform_5(%arg0: i32) -> (i32, i32, i32) {
    %c0_i32 = arith.constant 0 : i32
    %c0_i32_0 = arith.constant 0 : i32
    %c0_i32_1 = arith.constant 0 : i32
    return %arg0, %c0_i32, %c0_i32_0 : i32, i32, i32
  }
  func.func @transform_6(%arg0: i32) -> (i32, i32, i32) {
    %c0_i32 = arith.constant 0 : i32
    %c0_i32_0 = arith.constant 0 : i32
    %c0_i32_1 = arith.constant 0 : i32
    return %arg0, %c0_i32, %c0_i32_0 : i32, i32, i32
  }
  func.func @transform_7(%arg0: i32) -> (i32, i32, i32, i32) {
    %c0_i32 = arith.constant 0 : i32
    %c0_i32_0 = arith.constant 0 : i32
    %c0_i32_1 = arith.constant 0 : i32
    %c0_i32_2 = arith.constant 0 : i32
    return %arg0, %c0_i32, %c0_i32_0, %c0_i32_1 : i32, i32, i32, i32
  }
  func.func @transform_8(%arg0: i32) -> (i32, i32, i32, i32) {
    %c0_i32 = arith.constant 0 : i32
    %c0_i32_0 = arith.constant 0 : i32
    %c0_i32_1 = arith.constant 0 : i32
    %c0_i32_2 = arith.constant 0 : i32
    return %arg0, %c0_i32, %c0_i32_0, %c0_i32_1 : i32, i32, i32, i32
  }
  func.func @transform_9(%arg0: i32) -> (i32, i32, i32, i32) {
    %c0_i32 = arith.constant 0 : i32
    %c0_i32_0 = arith.constant 0 : i32
    %c0_i32_1 = arith.constant 0 : i32
    %c0_i32_2 = arith.constant 0 : i32
    return %arg0, %c0_i32, %c0_i32_0, %c0_i32_1 : i32, i32, i32, i32
  }
  func.func @transform_10(%arg0: i32) -> (i32, i32, i32, i32) {
    %c0_i32 = arith.constant 0 : i32
    %c0_i32_0 = arith.constant 0 : i32
    %c0_i32_1 = arith.constant 0 : i32
    %c0_i32_2 = arith.constant 0 : i32
    return %arg0, %c0_i32, %c0_i32_0, %c0_i32_1 : i32, i32, i32, i32
  }
  func.func @transform_11(%arg0: i32) -> (i32, i32) {
    %c0_i32 = arith.constant 0 : i32
    %c0_i32_0 = arith.constant 0 : i32
    %c0_i32_1 = arith.constant 0 : i32
    return %c0_i32, %c0_i32_0 : i32, i32
  }
  func.func @transform_12(%arg0: i32) -> (i32, i32) {
    %c0_i32 = arith.constant 0 : i32
    %c0_i32_0 = arith.constant 0 : i32
    %c0_i32_1 = arith.constant 0 : i32
    return %c0_i32, %c0_i32_0 : i32, i32
  }
  func.func @transform_13(%arg0: i32) -> (i32, i32) {
    %c0_i32 = arith.constant 0 : i32
    %c0_i32_0 = arith.constant 0 : i32
    %c0_i32_1 = arith.constant 0 : i32
    return %c0_i32, %c0_i32_0 : i32, i32
  }
  func.func @transform_14(%arg0: i32) -> (i32, i32) {
    %c0_i32 = arith.constant 0 : i32
    %c0_i32_0 = arith.constant 0 : i32
    %c0_i32_1 = arith.constant 0 : i32
    return %c0_i32, %c0_i32_0 : i32, i32
  }
  func.func @transform_15(%arg0: i32) -> (i32, i32) {
    %c0_i32 = arith.constant 0 : i32
    %c0_i32_0 = arith.constant 0 : i32
    %c0_i32_1 = arith.constant 0 : i32
    return %c0_i32, %c0_i32_0 : i32, i32
  }
  func.func @transform_16(%arg0: i32) -> (i32, i32) {
    %c0_i32 = arith.constant 0 : i32
    %c0_i32_0 = arith.constant 0 : i32
    %c0_i32_1 = arith.constant 0 : i32
    return %c0_i32, %c0_i32_0 : i32, i32
  }
}

</mosaic_0001>

<llo_original>
// kernel: tpu_custom_call.1
$region0: #{tpu_custom_call.1}
  #allocation0 [shape = 'u32[]', space=smem, size = 0x4, offset = 0x4, fixed_abs, tag = 'smem constant byte address 0x4 - core index']
  #allocation1 [shape = 'u32[144,128]{1,0:T(1,128)}', space=vmem, size = 0x12000, scoped, tag = 'internal scratch']
  #allocation2 [shape = 'f32[16,128]{1,0:T(8,128)}', space=vmem, size = 0x2000, scoped, tag = 'scratch operand']
  #allocation3 [shape = 'f32[16,384]{1,0:T(8,128)}', space=vmem, size = 0x6000, scoped, tag = 'scratch operand']
  #allocation4 [shape = 'f32[1]{0:T(128)S(6)}', space=smem, size = 0x200, scoped, tag = 'scoped memory for tpu_custom_call.1']
  %s0 = inlined_call_operand.vmem [shape: f32[3], index: 0, kind: input, shape index: {}]
  %s1 = inlined_call_operand.<no memory space> [shape: f32[1], index: 1, kind: input, shape index: {}]
  %s2 = inlined_call_operand.vmem [shape: f32[16,128], index: 2, kind: input, shape index: {}]
  %s3 = inlined_call_operand.vmem [shape: f32[16,16], index: 3, kind: input, shape index: {}]
  %s4 = inlined_call_operand.vmem [shape: f32[3,16,1], index: 4, kind: input, shape index: {}]
  %s5 = inlined_call_operand.hbm [shape: f32[4,128,384], index: 5, kind: input, shape index: {}]
  %s6 = inlined_call_operand.vmem [shape: f32[4,1,384], index: 6, kind: input, shape index: {}]
  %s7 = inlined_call_operand.hbm [shape: f32[4,3,128,128], index: 7, kind: input, shape index: {}]
  %s8 = inlined_call_operand.vmem [shape: f32[4,3,1,128], index: 8, kind: input, shape index: {}]
  %s9 = inlined_call_operand.hbm [shape: f32[4,3,128,128], index: 9, kind: input, shape index: {}]
  %s10 = inlined_call_operand.vmem [shape: f32[4,3,1,128], index: 10, kind: input, shape index: {}]
  %s11 = inlined_call_operand.vmem [shape: f32[2,16], index: 11, kind: input, shape index: {}]
  %s12 = inlined_call_operand.hbm [shape: f32[128,128], index: 12, kind: input, shape index: {}]
  %s13 = inlined_call_operand.vmem [shape: f32[1,128], index: 13, kind: input, shape index: {}]
  %s14 = inlined_call_operand.hbm [shape: f32[128,128], index: 14, kind: input, shape index: {}]
  %s15 = inlined_call_operand.vmem [shape: f32[1,128], index: 15, kind: input, shape index: {}]
  %s16 = inlined_call_operand.hbm [shape: f32[2,128], index: 16, kind: output, shape index: {}]
  %s17 = sld [smem:[#allocation0]]
  $region133: #{tpu_custom_call.1} parent=0
    _
  %s19 = ssub.s32 1, %s17
  %s20 = scalar_select 0, %s19, %s17
  %21 = sst [smem:[#allocation4]] %s1
  $region1: #{tpu_custom_call.1} parent=0
    #allocation5 [shape = 'u8[512]{0}', space=smem, size = 0x200, scoped, tag = 'input window, operand 0, single buffered']
    #allocation6 [shape = 's32[2]{0}', space=sflag, size = 0x8, scoped, tag = 'scoped memory for tpu_custom_call.1']
    #allocation7 [shape = 's32[2]{0}', space=sflag, size = 0x8, scoped, tag = 'scoped memory for tpu_custom_call.1']
    #allocation8 [shape = 's32[2]{0}', space=sflag, size = 0x8, scoped, tag = 'scoped memory for tpu_custom_call.1']
    #allocation9 [shape = 'u8[393216]{0}', space=vmem, size = 0x60000, scoped, tag = 'input window, operand 5']
    #allocation10 [shape = 'u8[393216]{0}', space=vmem, size = 0x60000, scoped, tag = 'input window, operand 7']
    #allocation11 [shape = 's32[2]{0}', space=sflag, size = 0x8, scoped, tag = 'scoped memory for tpu_custom_call.1']
    #allocation12 [shape = 'u8[393216]{0}', space=vmem, size = 0x60000, scoped, tag = 'input window, operand 9']
    #allocation13 [shape = 'u8[65536]{0}', space=vmem, size = 0x10000, scoped, tag = 'input window, operand 12, single buffered']
    #allocation14 [shape = 's32[1]{0}', space=sflag, size = 0x4, scoped, tag = 'scoped memory for tpu_custom_call.1']
    #allocation15 [shape = 'u8[65536]{0}', space=vmem, size = 0x10000, scoped, tag = 'input window, operand 14, single buffered']
    #allocation16 [shape = 'u8[1024]{0}', space=vmem, size = 0x400, scoped, tag = 'output window, operand 0, single buffered']
    %22 = vsyncpa [#allocation8], 0
    %23 = vsyncpa [#allocation6], 0
    %s24 = scalar_lea.sflag [#allocation6], 1
    %25 = vsyncpa %s24, 0
    %26 = vsyncpa [#allocation11], 0
    %s27 = scalar_lea.sflag [#allocation11], 1
    %28 = vsyncpa %s27, 0
    %29 = vsyncpa [#allocation14], 0
    %30 = vsyncpa [#allocation7], 0
    loop: start=0, step=1, limit=6
    $region2: #{tpu_custom_call.1} parent=1 // loop_pre_header
      _
    $region3: #{tpu_custom_call.1} parent=1 // loop_header
      %s32 = sphi 0, %s36
      %p33 = scmp.ge.s32.totalorder %s32, 6
      %s40 = sphi 0, %s40
      %s42 = sphi 0, %s40
      %s43 = sphi 0, %s42
      %s57 = sphi 0, %s43
      %s61 = sphi 0, %s61
      %s63 = sphi 0, %s61
      %s64 = sphi 0, %s63
      %s78 = sphi 0, %s64
      %s82 = sphi 0, %s82
      %s84 = sphi 0, %s82
      %s85 = sphi 0, %s84
      %s99 = sphi 0, %s85
      %s103 = sphi 0, %s103
      %s105 = sphi 0, %s103
      %s106 = sphi 0, %s105
      %s120 = sphi 0, %s106
      %s124 = sphi 0, %s124
      %s126 = sphi 0, %s124
      %s127 = sphi 0, %s126
      %s141 = sphi 0, %s127
      %s147 = sphi 0, %s149
      %s150 = sphi 0, %s147
      %s151 = sphi 0, %s150
      %s167 = sphi 0, %s151
      %s173 = sphi 0, %s175
      %s176 = sphi 0, %s173
      %s177 = sphi 0, %s176
      %s193 = sphi 0, %s177
      %s199 = sphi 0, %s201
      %s202 = sphi 0, %s199
      %s203 = sphi 0, %s202
      %s219 = sphi 0, %s203
      %s225 = sphi 0, %s227
      %s228 = sphi 0, %s225
      %s229 = sphi 0, %s228
      %s245 = sphi 0, %s229
      %s251 = sphi 0, %s253
      %s254 = sphi 0, %s251
      %s255 = sphi 0, %s254
      %s271 = sphi 0, %s255
      %s277 = sphi 0, %s279
      %s280 = sphi 0, %s277
      %s281 = sphi 0, %s280
      %s297 = sphi 0, %s281
      %s301 = sphi 0, %s301
      %s303 = sphi 0, %s301
      %s304 = sphi 0, %s303
      %s318 = sphi 0, %s304
      %s322 = sphi 0, %s322
      %s324 = sphi 0, %s322
      %s325 = sphi 0, %s324
      %s339 = sphi 0, %s325
      %s343 = sphi 0, %s343
      %s345 = sphi 0, %s343
      %s346 = sphi 0, %s345
      %s360 = sphi 0, %s346
      %s364 = sphi 0, %s364
      %s366 = sphi 0, %s364
      %s367 = sphi 0, %s366
      %s381 = sphi 0, %s367
      %s385 = sphi 0, %s385
      %s387 = sphi 0, %s385
      %s388 = sphi 0, %s387
      %s402 = sphi 0, %s388
      %s406 = sphi 0, %s406
      %s408 = sphi 0, %s406
      %s409 = sphi 0, %s408
      %s423 = sphi 0, %s409
    $region4: #{tpu_custom_call.1} parent=1 // loop_header_branch
      %35 = sbr.rel (%p33) target = $region8
    $region5: #{tpu_custom_call.1} parent=1 // loop_body
      %s37 = ssub.s32 %s32, 1
      %s38 = ssub.s32 %s32, 2
      %s39 = sadd.s32 %s32, 1
      %s41 = sadd.s32 %s40, 1
      %p44 = scmp.eq.s32.totalorder %s32, 3
      %p45 = scmp.ne.s32.totalorder %s40, %s42
      %p46 = scmp.eq.s32.totalorder %s32, 0
      %p47 = por %p45, %p46
      %p48 = scmp.ne.s32.totalorder %s40, %s42
      %p49 = scmp.eq.s32.totalorder %s37, 3
      %p50 = por %p48, %p49
      %p51 = scmp.ne.s32.totalorder %s42, %s43
      %p52 = scmp.eq.s32.totalorder %s37, 0
      %p53 = por %p51, %p52
      %p54 = scmp.ne.s32.totalorder %s42, %s43
      %p55 = scmp.eq.s32.totalorder %s38, 3
      %p56 = por %p54, %p55
      %p58 = scmp.ne.s32.totalorder %s43, %s57
      %p59 = scmp.eq.s32.totalorder %s38, 0
      %p60 = por %p58, %p59
      %s62 = sadd.s32 %s61, 1
      %p65 = scmp.eq.s32.totalorder %s32, 3
      %p66 = scmp.ne.s32.totalorder %s61, %s63
      %p67 = scmp.eq.s32.totalorder %s32, 0
      %p68 = por %p66, %p67
      %p69 = scmp.ne.s32.totalorder %s61, %s63
      %p70 = scmp.eq.s32.totalorder %s37, 3
      %p71 = por %p69, %p70
      %p72 = scmp.ne.s32.totalorder %s63, %s64
      %p73 = scmp.eq.s32.totalorder %s37, 0
      %p74 = por %p72, %p73
      %p75 = scmp.ne.s32.totalorder %s63, %s64
      %p76 = scmp.eq.s32.totalorder %s38, 3
      %p77 = por %p75, %p76
      %p79 = scmp.ne.s32.totalorder %s64, %s78
      %p80 = scmp.eq.s32.totalorder %s38, 0
      %p81 = por %p79, %p80
      %s83 = sadd.s32 %s82, 1
      %p86 = scmp.eq.s32.totalorder %s32, 3
      %p87 = scmp.ne.s32.totalorder %s82, %s84
      %p88 = scmp.eq.s32.totalorder %s32, 0
      %p89 = por %p87, %p88
      %p90 = scmp.ne.s32.totalorder %s82, %s84
      %p91 = scmp.eq.s32.totalorder %s37, 3
      %p92 = por %p90, %p91
      %p93 = scmp.ne.s32.totalorder %s84, %s85
      %p94 = scmp.eq.s32.totalorder %s37, 0
      %p95 = por %p93, %p94
      %p96 = scmp.ne.s32.totalorder %s84, %s85
      %p97 = scmp.eq.s32.totalorder %s38, 3
      %p98 = por %p96, %p97
      %p100 = scmp.ne.s32.totalorder %s85, %s99
      %p101 = scmp.eq.s32.totalorder %s38, 0
      %p102 = por %p100, %p101
      %s104 = sadd.s32 %s103, 1
      %p107 = scmp.eq.s32.totalorder %s32, 3
      %p108 = scmp.ne.s32.totalorder %s103, %s105
      %p109 = scmp.eq.s32.totalorder %s32, 0
      %p110 = por %p108, %p109
      %p111 = scmp.ne.s32.totalorder %s103, %s105
      %p112 = scmp.eq.s32.totalorder %s37, 3
      %p113 = por %p111, %p112
      %p114 = scmp.ne.s32.totalorder %s105, %s106
      %p115 = scmp.eq.s32.totalorder %s37, 0
      %p116 = por %p114, %p115
      %p117 = scmp.ne.s32.totalorder %s105, %s106
      %p118 = scmp.eq.s32.totalorder %s38, 3
      %p119 = por %p117, %p118
      %p121 = scmp.ne.s32.totalorder %s106, %s120
      %p122 = scmp.eq.s32.totalorder %s38, 0
      %p123 = por %p121, %p122
      %s125 = sadd.s32 %s124, 1
      %p128 = scmp.eq.s32.totalorder %s32, 3
      %p129 = scmp.ne.s32.totalorder %s124, %s126
      %p130 = scmp.eq.s32.totalorder %s32, 0
      %p131 = por %p129, %p130
      %p132 = scmp.ne.s32.totalorder %s124, %s126
      %p133 = scmp.eq.s32.totalorder %s37, 3
      %p134 = por %p132, %p133
      %p135 = scmp.ne.s32.totalorder %s126, %s127
      %p136 = scmp.eq.s32.totalorder %s37, 0
      %p137 = por %p135, %p136
      %p138 = scmp.ne.s32.totalorder %s126, %s127
      %p139 = scmp.eq.s32.totalorder %s38, 3
      %p140 = por %p138, %p139
      %p142 = scmp.ne.s32.totalorder %s127, %s141
      %p143 = scmp.eq.s32.totalorder %s38, 0
      %p144 = por %p142, %p143
      %s145 = ssub.s32 %s32, %s39
      %p146 = scmp.eq.s32.totalorder %s145, 0
      %s148 = sadd.s32 %s147, 1
      %s149 = scalar_select %p146, %s147, %s148
      %p152 = pneg %p146
      %p153 = scmp.eq.s32.totalorder %s32, 3
      %p154 = por %p152, %p153
      %p155 = scmp.ne.s32.totalorder %s147, %s150
      %p156 = scmp.eq.s32.totalorder %s32, 0
      %p157 = por %p155, %p156
      %p158 = scmp.ne.s32.totalorder %s147, %s150
      %p159 = scmp.eq.s32.totalorder %s37, 3
      %p160 = por %p158, %p159
      %p161 = scmp.ne.s32.totalorder %s150, %s151
      %p162 = scmp.eq.s32.totalorder %s37, 0
      %p163 = por %p161, %p162
      %p164 = scmp.ne.s32.totalorder %s150, %s151
      %p165 = scmp.eq.s32.totalorder %s38, 3
      %p166 = por %p164, %p165
      %p168 = scmp.ne.s32.totalorder %s151, %s167
      %p169 = scmp.eq.s32.totalorder %s38, 0
      %p170 = por %p168, %p169
      %s171 = ssub.s32 %s32, %s39
      %p172 = scmp.eq.s32.totalorder %s171, 0
      %s174 = sadd.s32 %s173, 1
      %s175 = scalar_select %p172, %s173, %s174
      %p178 = pneg %p172
      %p179 = scmp.eq.s32.totalorder %s32, 3
      %p180 = por %p178, %p179
      %p181 = scmp.ne.s32.totalorder %s173, %s176
      %p182 = scmp.eq.s32.totalorder %s32, 0
      %p183 = por %p181, %p182
      %p184 = scmp.ne.s32.totalorder %s173, %s176
      %p185 = scmp.eq.s32.totalorder %s37, 3
      %p186 = por %p184, %p185
      %p187 = scmp.ne.s32.totalorder %s176, %s177
      %p188 = scmp.eq.s32.totalorder %s37, 0
      %p189 = por %p187, %p188
      %p190 = scmp.ne.s32.totalorder %s176, %s177
      %p191 = scmp.eq.s32.totalorder %s38, 3
      %p192 = por %p190, %p191
      %p194 = scmp.ne.s32.totalorder %s177, %s193
      %p195 = scmp.eq.s32.totalorder %s38, 0
      %p196 = por %p194, %p195
      %s197 = ssub.s32 %s32, %s39
      %p198 = scmp.eq.s32.totalorder %s197, 0
      %s200 = sadd.s32 %s199, 1
      %s201 = scalar_select %p198, %s199, %s200
      %p204 = pneg %p198
      %p205 = scmp.eq.s32.totalorder %s32, 3
      %p206 = por %p204, %p205
      %p207 = scmp.ne.s32.totalorder %s199, %s202
      %p208 = scmp.eq.s32.totalorder %s32, 0
      %p209 = por %p207, %p208
      %p210 = scmp.ne.s32.totalorder %s199, %s202
      %p211 = scmp.eq.s32.totalorder %s37, 3
      %p212 = por %p210, %p211
      %p213 = scmp.ne.s32.totalorder %s202, %s203
      %p214 = scmp.eq.s32.totalorder %s37, 0
      %p215 = por %p213, %p214
      %p216 = scmp.ne.s32.totalorder %s202, %s203
      %p217 = scmp.eq.s32.totalorder %s38, 3
      %p218 = por %p216, %p217
      %p220 = scmp.ne.s32.totalorder %s203, %s219
      %p221 = scmp.eq.s32.totalorder %s38, 0
      %p222 = por %p220, %p221
      %s223 = ssub.s32 %s32, %s39
      %p224 = scmp.eq.s32.totalorder %s223, 0
      %s226 = sadd.s32 %s225, 1
      %s227 = scalar_select %p224, %s225, %s226
      %p230 = pneg %p224
      %p231 = scmp.eq.s32.totalorder %s32, 3
      %p232 = por %p230, %p231
      %p233 = scmp.ne.s32.totalorder %s225, %s228
      %p234 = scmp.eq.s32.totalorder %s32, 0
      %p235 = por %p233, %p234
      %p236 = scmp.ne.s32.totalorder %s225, %s228
      %p237 = scmp.eq.s32.totalorder %s37, 3
      %p238 = por %p236, %p237
      %p239 = scmp.ne.s32.totalorder %s228, %s229
      %p240 = scmp.eq.s32.totalorder %s37, 0
      %p241 = por %p239, %p240
      %p242 = scmp.ne.s32.totalorder %s228, %s229
      %p243 = scmp.eq.s32.totalorder %s38, 3
      %p244 = por %p242, %p243
      %p246 = scmp.ne.s32.totalorder %s229, %s245
      %p247 = scmp.eq.s32.totalorder %s38, 0
      %p248 = por %p246, %p247
      %s249 = ssub.s32 %s32, %s39
      %p250 = scmp.eq.s32.totalorder %s249, 0
      %s252 = sadd.s32 %s251, 1
      %s253 = scalar_select %p250, %s251, %s252
      %p256 = pneg %p250
      %p257 = scmp.eq.s32.totalorder %s32, 3
      %p258 = por %p256, %p257
      %p259 = scmp.ne.s32.totalorder %s251, %s254
      %p260 = scmp.eq.s32.totalorder %s32, 0
      %p261 = por %p259, %p260
      %p262 = scmp.ne.s32.totalorder %s251, %s254
      %p263 = scmp.eq.s32.totalorder %s37, 3
      %p264 = por %p262, %p263
      %p265 = scmp.ne.s32.totalorder %s254, %s255
      %p266 = scmp.eq.s32.totalorder %s37, 0
      %p267 = por %p265, %p266
      %p268 = scmp.ne.s32.totalorder %s254, %s255
      %p269 = scmp.eq.s32.totalorder %s38, 3
      %p270 = por %p268, %p269
      %p272 = scmp.ne.s32.totalorder %s255, %s271
      %p273 = scmp.eq.s32.totalorder %s38, 0
      %p274 = por %p272, %p273
      %s275 = ssub.s32 %s32, %s39
      %p276 = scmp.eq.s32.totalorder %s275, 0
      %s278 = sadd.s32 %s277, 1
      %s279 = scalar_select %p276, %s277, %s278
      %p282 = pneg %p276
      %p283 = scmp.eq.s32.totalorder %s32, 3
      %p284 = por %p282, %p283
      %p285 = scmp.ne.s32.totalorder %s277, %s280
      %p286 = scmp.eq.s32.totalorder %s32, 0
      %p287 = por %p285, %p286
      %p288 = scmp.ne.s32.totalorder %s277, %s280
      %p289 = scmp.eq.s32.totalorder %s37, 3
      %p290 = por %p288, %p289
      %p291 = scmp.ne.s32.totalorder %s280, %s281
      %p292 = scmp.eq.s32.totalorder %s37, 0
      %p293 = por %p291, %p292
      %p294 = scmp.ne.s32.totalorder %s280, %s281
      %p295 = scmp.eq.s32.totalorder %s38, 3
      %p296 = por %p294, %p295
      %p298 = scmp.ne.s32.totalorder %s281, %s297
      %p299 = scmp.eq.s32.totalorder %s38, 0
      %p300 = por %p298, %p299
      %s302 = sadd.s32 %s301, 1
      %p305 = scmp.eq.s32.totalorder %s32, 3
      %p306 = scmp.ne.s32.totalorder %s301, %s303
      %p307 = scmp.eq.s32.totalorder %s32, 0
      %p308 = por %p306, %p307
      %p309 = scmp.ne.s32.totalorder %s301, %s303
      %p310 = scmp.eq.s32.totalorder %s37, 3
      %p311 = por %p309, %p310
      %p312 = scmp.ne.s32.totalorder %s303, %s304
      %p313 = scmp.eq.s32.totalorder %s37, 0
      %p314 = por %p312, %p313
      %p315 = scmp.ne.s32.totalorder %s303, %s304
      %p316 = scmp.eq.s32.totalorder %s38, 3
      %p317 = por %p315, %p316
      %p319 = scmp.ne.s32.totalorder %s304, %s318
      %p320 = scmp.eq.s32.totalorder %s38, 0
      %p321 = por %p319, %p320
      %s323 = sadd.s32 %s322, 1
      %p326 = scmp.eq.s32.totalorder %s32, 3
      %p327 = scmp.ne.s32.totalorder %s322, %s324
      %p328 = scmp.eq.s32.totalorder %s32, 0
      %p329 = por %p327, %p328
      %p330 = scmp.ne.s32.totalorder %s322, %s324
      %p331 = scmp.eq.s32.totalorder %s37, 3
      %p332 = por %p330, %p331
      %p333 = scmp.ne.s32.totalorder %s324, %s325
      %p334 = scmp.eq.s32.totalorder %s37, 0
      %p335 = por %p333, %p334
      %p336 = scmp.ne.s32.totalorder %s324, %s325
      %p337 = scmp.eq.s32.totalorder %s38, 3
      %p338 = por %p336, %p337
      %p340 = scmp.ne.s32.totalorder %s325, %s339
      %p341 = scmp.eq.s32.totalorder %s38, 0
      %p342 = por %p340, %p341
      %s344 = sadd.s32 %s343, 1
      %p347 = scmp.eq.s32.totalorder %s32, 3
      %p348 = scmp.ne.s32.totalorder %s343, %s345
      %p349 = scmp.eq.s32.totalorder %s32, 0
      %p350 = por %p348, %p349
      %p351 = scmp.ne.s32.totalorder %s343, %s345
      %p352 = scmp.eq.s32.totalorder %s37, 3
      %p353 = por %p351, %p352
      %p354 = scmp.ne.s32.totalorder %s345, %s346
      %p355 = scmp.eq.s32.totalorder %s37, 0
      %p356 = por %p354, %p355
      %p357 = scmp.ne.s32.totalorder %s345, %s346
      %p358 = scmp.eq.s32.totalorder %s38, 3
      %p359 = por %p357, %p358
      %p361 = scmp.ne.s32.totalorder %s346, %s360
      %p362 = scmp.eq.s32.totalorder %s38, 0
      %p363 = por %p361, %p362
      %s365 = sadd.s32 %s364, 1
      %p368 = scmp.eq.s32.totalorder %s32, 3
      %p369 = scmp.ne.s32.totalorder %s364, %s366
      %p370 = scmp.eq.s32.totalorder %s32, 0
      %p371 = por %p369, %p370
      %p372 = scmp.ne.s32.totalorder %s364, %s366
      %p373 = scmp.eq.s32.totalorder %s37, 3
      %p374 = por %p372, %p373
      %p375 = scmp.ne.s32.totalorder %s366, %s367
      %p376 = scmp.eq.s32.totalorder %s37, 0
      %p377 = por %p375, %p376
      %p378 = scmp.ne.s32.totalorder %s366, %s367
      %p379 = scmp.eq.s32.totalorder %s38, 3
      %p380 = por %p378, %p379
      %p382 = scmp.ne.s32.totalorder %s367, %s381
      %p383 = scmp.eq.s32.totalorder %s38, 0
      %p384 = por %p382, %p383
      %s386 = sadd.s32 %s385, 1
      %p389 = scmp.eq.s32.totalorder %s32, 3
      %p390 = scmp.ne.s32.totalorder %s385, %s387
      %p391 = scmp.eq.s32.totalorder %s32, 0
      %p392 = por %p390, %p391
      %p393 = scmp.ne.s32.totalorder %s385, %s387
      %p394 = scmp.eq.s32.totalorder %s37, 3
      %p395 = por %p393, %p394
      %p396 = scmp.ne.s32.totalorder %s387, %s388
      %p397 = scmp.eq.s32.totalorder %s37, 0
      %p398 = por %p396, %p397
      %p399 = scmp.ne.s32.totalorder %s387, %s388
      %p400 = scmp.eq.s32.totalorder %s38, 3
      %p401 = por %p399, %p400
      %p403 = scmp.ne.s32.totalorder %s388, %s402
      %p404 = scmp.eq.s32.totalorder %s38, 0
      %p405 = por %p403, %p404
      %s407 = sadd.s32 %s406, 1
      %p410 = scmp.eq.s32.totalorder %s32, 3
      %p411 = scmp.ne.s32.totalorder %s406, %s408
      %p412 = scmp.eq.s32.totalorder %s32, 0
      %p413 = por %p411, %p412
      %p414 = scmp.ne.s32.totalorder %s406, %s408
      %p415 = scmp.eq.s32.totalorder %s37, 3
      %p416 = por %p414, %p415
      %p417 = scmp.ne.s32.totalorder %s408, %s409
      %p418 = scmp.eq.s32.totalorder %s37, 0
      %p419 = por %p417, %p418
      %p420 = scmp.ne.s32.totalorder %s408, %s409
      %p421 = scmp.eq.s32.totalorder %s38, 3
      %p422 = por %p420, %p421
      %p424 = scmp.ne.s32.totalorder %s409, %s423
      %p425 = scmp.eq.s32.totalorder %s38, 0
      %p426 = por %p424, %p425
      %p427 = scmp.le.s32.totalorder 1, %s32
      %p428 = scmp.lt.s32.totalorder %s32, 5
      %p429 = pnand %p427, %p428
      %p430 = pneg %p429
      // Predicated region
      $region9: #{tpu_custom_call.1} parent=5 // pred_check
        _
      $region10: #{tpu_custom_call.1} parent=5 // pred_check_branch
        %432 = sbr.rel (%p429) target = $region12
      $region11: #{tpu_custom_call.1} parent=5 // pred_region
        %s433 = ssub.s32 %s32, 1
        // Predicated region
        $region13: #{tpu_custom_call.1} parent=11 // pred_check
          %p434 = pneg %p53
        $region14: #{tpu_custom_call.1} parent=11 // pred_check_branch
          %436 = sbr.rel (%p434) target = $region16
        $region15: #{tpu_custom_call.1} parent=11 // pred_region
          %s438 = ssub.s32 16, 16
          %439 = vsyncadd [#allocation8], %s438
          %s441 = sshll.u32 %s0, 4
          %s442 = int_to_ptr.vmem [resolvable:$true] %s441
          %444 = dma.vmem_to_smem %s442, 16, [#allocation5], [#allocation8]
        $region16: #{tpu_custom_call.1} parent=11 // pred_fallthru
          _
        // Predicated region
        $region17: #{tpu_custom_call.1} parent=11 // pred_check
          %p445 = pneg %p74
        $region18: #{tpu_custom_call.1} parent=11 // pred_check_branch
          %447 = sbr.rel (%p445) target = $region20
        $region19: #{tpu_custom_call.1} parent=11 // pred_region
          _
        $region20: #{tpu_custom_call.1} parent=11 // pred_fallthru
          _
        // Predicated region
        $region21: #{tpu_custom_call.1} parent=11 // pred_check
          %p448 = pneg %p95
        $region22: #{tpu_custom_call.1} parent=11 // pred_check_branch
          %450 = sbr.rel (%p448) target = $region24
        $region23: #{tpu_custom_call.1} parent=11 // pred_region
          _
        $region24: #{tpu_custom_call.1} parent=11 // pred_fallthru
          _
        // Predicated region
        $region25: #{tpu_custom_call.1} parent=11 // pred_check
          %p451 = pneg %p116
        $region26: #{tpu_custom_call.1} parent=11 // pred_check_branch
          %453 = sbr.rel (%p451) target = $region28
        $region27: #{tpu_custom_call.1} parent=11 // pred_region
          _
        $region28: #{tpu_custom_call.1} parent=11 // pred_fallthru
          _
        // Predicated region
        $region29: #{tpu_custom_call.1} parent=11 // pred_check
          %p454 = pneg %p137
        $region30: #{tpu_custom_call.1} parent=11 // pred_check_branch
          %456 = sbr.rel (%p454) target = $region32
        $region31: #{tpu_custom_call.1} parent=11 // pred_region
          _
        $region32: #{tpu_custom_call.1} parent=11 // pred_fallthru
          _
        // Predicated region
        $region33: #{tpu_custom_call.1} parent=11 // pred_check
          %p457 = pneg %p314
        $region34: #{tpu_custom_call.1} parent=11 // pred_check_branch
          %459 = sbr.rel (%p457) target = $region36
        $region35: #{tpu_custom_call.1} parent=11 // pred_region
          _
        $region36: #{tpu_custom_call.1} parent=11 // pred_fallthru
          _
        // Predicated region
        $region37: #{tpu_custom_call.1} parent=11 // pred_check
          %p460 = pneg %p335
        $region38: #{tpu_custom_call.1} parent=11 // pred_check_branch
          %462 = sbr.rel (%p460) target = $region40
        $region39: #{tpu_custom_call.1} parent=11 // pred_region
          %s464 = ssub.s32 2048, 2048
          %465 = vsyncadd [#allocation14], %s464
          %s466 = sshll.u32 [#allocation13], 4
          %s467 = int_to_ptr.vmem [resolvable:$true] %s466
          %472 = dma.hbm_to_vmem [thread:$0]  %s12, 2048, %s467, [#allocation14], 128, 128, 8
        $region40: #{tpu_custom_call.1} parent=11 // pred_fallthru
          _
        // Predicated region
        $region41: #{tpu_custom_call.1} parent=11 // pred_check
          %p473 = pneg %p356
        $region42: #{tpu_custom_call.1} parent=11 // pred_check_branch
          %475 = sbr.rel (%p473) target = $region44
        $region43: #{tpu_custom_call.1} parent=11 // pred_region
          _
        $region44: #{tpu_custom_call.1} parent=11 // pred_fallthru
          _
        // Predicated region
        $region45: #{tpu_custom_call.1} parent=11 // pred_check
          %p476 = pneg %p377
        $region46: #{tpu_custom_call.1} parent=11 // pred_check_branch
          %478 = sbr.rel (%p476) target = $region48
        $region47: #{tpu_custom_call.1} parent=11 // pred_region
          %s480 = ssub.s32 2048, 2048
          %481 = vsyncadd [#allocation14], %s480
          %s482 = sshll.u32 [#allocation15], 4
          %s483 = int_to_ptr.vmem [resolvable:$true] %s482
          %488 = dma.hbm_to_vmem [thread:$0]  %s14, 2048, %s483, [#allocation14], 128, 128, 8
        $region48: #{tpu_custom_call.1} parent=11 // pred_fallthru
          _
        // Predicated region
        $region49: #{tpu_custom_call.1} parent=11 // pred_check
          %p489 = pneg %p398
        $region50: #{tpu_custom_call.1} parent=11 // pred_check_branch
          %491 = sbr.rel (%p489) target = $region52
        $region51: #{tpu_custom_call.1} parent=11 // pred_region
          _
        $region52: #{tpu_custom_call.1} parent=11 // pred_fallthru
          _
      $region12: #{tpu_custom_call.1} parent=5 // pred_fallthru
        _
      %p492 = scmp.lt.s32.totalorder %s32, 4
      // Predicated region
      $region53: #{tpu_custom_call.1} parent=5 // pred_check
        %p493 = pneg %p492
      $region54: #{tpu_custom_call.1} parent=5 // pred_check_branch
        %495 = sbr.rel (%p493) target = $region56
      $region55: #{tpu_custom_call.1} parent=5 // pred_region
        // Predicated region
        $region57: #{tpu_custom_call.1} parent=55 // pred_check
          %p496 = pneg %p157
        $region58: #{tpu_custom_call.1} parent=55 // pred_check_branch
          %498 = sbr.rel (%p496) target = $region60
        $region59: #{tpu_custom_call.1} parent=55 // pred_region
          %s499 = sand.u32 %s147, 1
          %s500 = scalar_lea.sflag [#allocation6], %s499
          %s501 = sand.u32 %s147, 1
          %s502 = smul.addr %s501, 384
          %s503 = scalar_lea.vmem [#allocation9], %s502
          %s505 = ssub.s32 6144, 6144
          %506 = vsyncadd %s500, %s505
          %s507 = smul.addr %s32, 48
          %s508 = smul.addr %s507, 128
          %s509 = scalar_lea.hbm %s5, %s508
          %s510 = sshll.u32 %s503, 4
          %s511 = int_to_ptr.vmem [resolvable:$true] %s510
          %516 = dma.hbm_to_vmem [thread:$0]  %s509, 6144, %s511, %s500, 384, 384, 24
        $region60: #{tpu_custom_call.1} parent=55 // pred_fallthru
          _
        // Predicated region
        $region61: #{tpu_custom_call.1} parent=55 // pred_check
          %p517 = pneg %p183
        $region62: #{tpu_custom_call.1} parent=55 // pred_check_branch
          %519 = sbr.rel (%p517) target = $region64
        $region63: #{tpu_custom_call.1} parent=55 // pred_region
          %p520 = scmp.lt.s32.totalorder %s32, 3
          %s521 = scalar_select %p520, %s32, 3
          %s522 = smul.addr %s521, 3
          %s523 = scalar_lea.vmem %s6, %s522
        $region64: #{tpu_custom_call.1} parent=55 // pred_fallthru
          _
        // Predicated region
        $region65: #{tpu_custom_call.1} parent=55 // pred_check
          %p524 = pneg %p209
        $region66: #{tpu_custom_call.1} parent=55 // pred_check_branch
          %526 = sbr.rel (%p524) target = $region68
        $region67: #{tpu_custom_call.1} parent=55 // pred_region
          %s527 = sand.u32 %s32, 1
          %s528 = scalar_lea.sflag [#allocation11], %s527
          %s529 = sand.u32 %s199, 1
          %s530 = smul.addr %s529, 384
          %s531 = scalar_lea.vmem [#allocation10], %s530
          %s533 = ssub.s32 6144, 6144
          %534 = vsyncadd %s528, %s533
          %s535 = smul.addr %s32, 48
          %s536 = smul.addr %s535, 128
          %s537 = scalar_lea.hbm %s7, %s536
          %s538 = sshll.u32 %s531, 4
          %s539 = int_to_ptr.vmem [resolvable:$true] %s538
          %544 = dma.hbm_to_vmem [thread:$0]  %s537, 6144, %s539, %s528, 128, 128, 8
        $region68: #{tpu_custom_call.1} parent=55 // pred_fallthru
          _
        // Predicated region
        $region69: #{tpu_custom_call.1} parent=55 // pred_check
          %p545 = pneg %p235
        $region70: #{tpu_custom_call.1} parent=55 // pred_check_branch
          %547 = sbr.rel (%p545) target = $region72
        $region71: #{tpu_custom_call.1} parent=55 // pred_region
          %p548 = scmp.lt.s32.totalorder %s32, 3
          %s549 = scalar_select %p548, %s32, 3
          %s550 = smul.addr %s549, 3
          %s551 = scalar_lea.vmem %s8, %s550
        $region72: #{tpu_custom_call.1} parent=55 // pred_fallthru
          _
        // Predicated region
        $region73: #{tpu_custom_call.1} parent=55 // pred_check
          %p552 = pneg %p261
        $region74: #{tpu_custom_call.1} parent=55 // pred_check_branch
          %554 = sbr.rel (%p552) target = $region76
        $region75: #{tpu_custom_call.1} parent=55 // pred_region
          %s555 = sand.u32 %s32, 1
          %s556 = scalar_lea.sflag [#allocation11], %s555
          %s557 = sand.u32 %s251, 1
          %s558 = smul.addr %s557, 384
          %s559 = scalar_lea.vmem [#allocation12], %s558
          %s561 = ssub.s32 6144, 6144
          %562 = vsyncadd %s556, %s561
          %s563 = smul.addr %s32, 48
          %s564 = smul.addr %s563, 128
          %s565 = scalar_lea.hbm %s9, %s564
          %s566 = sshll.u32 %s559, 4
          %s567 = int_to_ptr.vmem [resolvable:$true] %s566
          %572 = dma.hbm_to_vmem [thread:$0]  %s565, 6144, %s567, %s556, 128, 128, 8
        $region76: #{tpu_custom_call.1} parent=55 // pred_fallthru
          _
        // Predicated region
        $region77: #{tpu_custom_call.1} parent=55 // pred_check
          %p573 = pneg %p287
        $region78: #{tpu_custom_call.1} parent=55 // pred_check_branch
          %575 = sbr.rel (%p573) target = $region80
        $region79: #{tpu_custom_call.1} parent=55 // pred_region
          %p576 = scmp.lt.s32.totalorder %s32, 3
          %s577 = scalar_select %p576, %s32, 3
          %s578 = smul.addr %s577, 3
          %s579 = scalar_lea.vmem %s10, %s578
        $region80: #{tpu_custom_call.1} parent=55 // pred_fallthru
          _
      $region56: #{tpu_custom_call.1} parent=5 // pred_fallthru
        _
      %p580 = scmp.le.s32.totalorder 1, %s32
      %p581 = scmp.lt.s32.totalorder %s32, 5
      %p582 = pnand %p580, %p581
      %p583 = pneg %p582
      // Predicated region
      $region81: #{tpu_custom_call.1} parent=5 // pred_check
        _
      $region82: #{tpu_custom_call.1} parent=5 // pred_check_branch
        %585 = sbr.rel (%p582) target = $region84
      $region83: #{tpu_custom_call.1} parent=5 // pred_region
        %s586 = ssub.s32 %s32, 1
        // Predicated region
        $region85: #{tpu_custom_call.1} parent=83 // pred_check
          %p587 = pneg %p53
        $region86: #{tpu_custom_call.1} parent=83 // pred_check_branch
          %589 = sbr.rel (%p587) target = $region88
        $region87: #{tpu_custom_call.1} parent=83 // pred_region
          %590 = dma.done [#allocation8], 16
        $region88: #{tpu_custom_call.1} parent=83 // pred_fallthru
          _
        %s591 = sand.u32 %s150, 1
        %s592 = scalar_lea.sflag [#allocation6], %s591
        %s593 = sand.u32 %s150, 1
        %s594 = smul.addr %s593, 384
        %s595 = scalar_lea.vmem [#allocation9], %s594
        // Predicated region
        $region89: #{tpu_custom_call.1} parent=83 // pred_check
          %p596 = pneg %p163
        $region90: #{tpu_custom_call.1} parent=83 // pred_check_branch
          %598 = sbr.rel (%p596) target = $region92
        $region91: #{tpu_custom_call.1} parent=83 // pred_region
          %599 = dma.done %s592, 6144
        $region92: #{tpu_custom_call.1} parent=83 // pred_fallthru
          _
        %s600 = sand.u32 %s37, 1
        %s601 = scalar_lea.sflag [#allocation11], %s600
        %s602 = sand.u32 %s202, 1
        %s603 = smul.addr %s602, 384
        %s604 = scalar_lea.vmem [#allocation10], %s603
        // Predicated region
        $region93: #{tpu_custom_call.1} parent=83 // pred_check
          %p605 = pneg %p215
        $region94: #{tpu_custom_call.1} parent=83 // pred_check_branch
          %607 = sbr.rel (%p605) target = $region96
        $region95: #{tpu_custom_call.1} parent=83 // pred_region
          %608 = dma.done %s601, 6144
        $region96: #{tpu_custom_call.1} parent=83 // pred_fallthru
          _
        %s609 = sand.u32 %s37, 1
        %s610 = scalar_lea.sflag [#allocation11], %s609
        %s611 = sand.u32 %s254, 1
        %s612 = smul.addr %s611, 384
        %s613 = scalar_lea.vmem [#allocation12], %s612
        // Predicated region
        $region97: #{tpu_custom_call.1} parent=83 // pred_check
          %p614 = pneg %p267
        $region98: #{tpu_custom_call.1} parent=83 // pred_check_branch
          %616 = sbr.rel (%p614) target = $region100
        $region99: #{tpu_custom_call.1} parent=83 // pred_region
          %617 = dma.done %s610, 6144
        $region100: #{tpu_custom_call.1} parent=83 // pred_fallthru
          _
        // Predicated region
        $region101: #{tpu_custom_call.1} parent=83 // pred_check
          %p618 = pneg %p335
        $region102: #{tpu_custom_call.1} parent=83 // pred_check_branch
          %620 = sbr.rel (%p618) target = $region104
        $region103: #{tpu_custom_call.1} parent=83 // pred_region
          %621 = dma.done [#allocation14], 2048
        $region104: #{tpu_custom_call.1} parent=83 // pred_fallthru
          _
        // Predicated region
        $region105: #{tpu_custom_call.1} parent=83 // pred_check
          %p622 = pneg %p377
        $region106: #{tpu_custom_call.1} parent=83 // pred_check_branch
          %624 = sbr.rel (%p622) target = $region108
        $region107: #{tpu_custom_call.1} parent=83 // pred_region
          %625 = dma.done [#allocation14], 2048
        $region108: #{tpu_custom_call.1} parent=83 // pred_fallthru
          _
        %626 = sfence
        %p627 = pneg %p53
        %p628 = pneg %p50
        %p629 = pneg %p74
        %p630 = pneg %p71
        %p631 = pneg %p95
        %p632 = pneg %p92
        %p633 = pneg %p116
        %p634 = pneg %p113
        %p635 = pneg %p137
        %p636 = pneg %p134
        %s637 = sand.u32 %s150, 1
        %s638 = scalar_lea.sflag [#allocation6], %s637
        %s639 = sand.u32 %s150, 1
        %s640 = smul.addr %s639, 384
        %s641 = scalar_lea.vmem [#allocation9], %s640
        %p642 = pneg %p163
        %p643 = pneg %p160
        %p644 = scmp.lt.s32.totalorder %s37, 3
        %s645 = scalar_select %p644, %s37, 3
        %s646 = smul.addr %s645, 3
        %s647 = scalar_lea.vmem %s6, %s646
        %p648 = pneg %p189
        %p649 = pneg %p186
        %s650 = sand.u32 %s37, 1
        %s651 = scalar_lea.sflag [#allocation11], %s650
        %s652 = sand.u32 %s202, 1
        %s653 = smul.addr %s652, 384
        %s654 = scalar_lea.vmem [#allocation10], %s653
        %p655 = pneg %p215
        %p656 = pneg %p212
        %p657 = scmp.lt.s32.totalorder %s37, 3
        %s658 = scalar_select %p657, %s37, 3
        %s659 = smul.addr %s658, 3
        %s660 = scalar_lea.vmem %s8, %s659
        %p661 = pneg %p241
        %p662 = pneg %p238
        %s663 = sand.u32 %s37, 1
        %s664 = scalar_lea.sflag [#allocation11], %s663
        %s665 = sand.u32 %s254, 1
        %s666 = smul.addr %s665, 384
        %s667 = scalar_lea.vmem [#allocation12], %s666
        %p668 = pneg %p267
        %p669 = pneg %p264
        %p670 = scmp.lt.s32.totalorder %s37, 3
        %s671 = scalar_select %p670, %s37, 3
        %s672 = smul.addr %s671, 3
        %s673 = scalar_lea.vmem %s10, %s672
        %p674 = pneg %p293
        %p675 = pneg %p290
        %p676 = pneg %p314
        %p677 = pneg %p311
        %p678 = pneg %p335
        %p679 = pneg %p332
        %p680 = pneg %p356
        %p681 = pneg %p353
        %p682 = pneg %p377
        %p683 = pneg %p374
        %p684 = pneg %p398
        %p685 = pneg %p395
        %p686 = pneg %p419
        %p687 = pneg %p416
        %p688 = scmp.lt.s32.totalorder %s37, 3
        %s689 = scalar_select %p688, %s37, 3
        %s690 = smul.addr %s689, 3
        %s691 = scalar_lea.vmem %s6, %s690
        %p692 = scmp.lt.s32.totalorder %s37, 3
        %s693 = scalar_select %p692, %s37, 3
        %s694 = smul.addr %s693, 3
        %s695 = scalar_lea.vmem %s8, %s694
        %p696 = scmp.lt.s32.totalorder %s37, 3
        %s697 = scalar_select %p696, %s37, 3
        %s698 = smul.addr %s697, 3
        %s699 = scalar_lea.vmem %s10, %s698
        %p700 = scmp.eq.s32.totalorder %s37, 3
        %p701 = scmp.eq.s32.totalorder %s37, 0
        // Predicated region
        $region109: #{tpu_custom_call.1} parent=83 // pred_check
          %p702 = pneg %p701
        $region110: #{tpu_custom_call.1} parent=83 // pred_check_branch
          %704 = sbr.rel (%p702) target = $region112
        $region111: #{tpu_custom_call.1} parent=83 // pred_region
          %v705 = vld [vmem:[%s2] sm:$0xff]
          %v706 = vld [vmem:[%s2 + $0x8] sm:$0xff]
          %707 = vst [vmem:[#allocation2] sm:$0xff] %v705
          %708 = vst [vmem:[#allocation2 + $0x8] sm:$0xff] %v706
          %709 = vst [vmem:[#allocation3] sm:$0xff] 0.0
          %710 = vst [vmem:[#allocation3 + $0x8] sm:$0xff] 0.0
          %711 = vst [vmem:[#allocation3 + $0x10] sm:$0xff] 0.0
          %712 = vst [vmem:[#allocation3 + $0x18] sm:$0xff] 0.0
          %713 = vst [vmem:[#allocation3 + $0x20] sm:$0xff] 0.0
          %714 = vst [vmem:[#allocation3 + $0x28] sm:$0xff] 0.0
        $region112: #{tpu_custom_call.1} parent=83 // pred_fallthru
          _
        %v715 = vld [vmem:[%s3] sm:$0xff]
        %v716 = vld [vmem:[%s3 + $0x8] sm:$0xff]
        %v717 = vld [vmem:[#allocation2] sm:$0xff]
        %v718 = vld [vmem:[#allocation2 + $0x8] sm:$0xff]
        %v719 = vld [vmem:[#allocation3] sm:$0xff]
        %v720 = vld [vmem:[#allocation3 + $0x8] sm:$0xff]
        %v721 = vld [vmem:[#allocation3 + $0x10] sm:$0xff]
        %v722 = vld [vmem:[#allocation3 + $0x18] sm:$0xff]
        %v723 = vld [vmem:[#allocation3 + $0x20] sm:$0xff]
        %v724 = vld [vmem:[#allocation3 + $0x28] sm:$0xff]
        %s725 = sld [smem:[#allocation4]]
        %v726 = vld [vmem:[%s595] sm:$0xff]
        %v727 = vld [vmem:[%s595 + $0x8] sm:$0xff]
        %v728 = vld [vmem:[%s595 + $0x10] sm:$0xff]
        %v729 = vld [vmem:[%s595 + $0x18] sm:$0xff]
        %v730 = vld [vmem:[%s595 + $0x20] sm:$0xff]
        %v731 = vld [vmem:[%s595 + $0x28] sm:$0xff]
        %v732 = vld [vmem:[%s595 + $0x30] sm:$0xff]
        %v733 = vld [vmem:[%s595 + $0x38] sm:$0xff]
        %v734 = vld [vmem:[%s595 + $0x40] sm:$0xff]
        %v735 = vld [vmem:[%s595 + $0x48] sm:$0xff]
        %v736 = vld [vmem:[%s595 + $0x50] sm:$0xff]
        %v737 = vld [vmem:[%s595 + $0x58] sm:$0xff]
        %v738 = vld [vmem:[%s595 + $0x60] sm:$0xff]
        %v739 = vld [vmem:[%s595 + $0x68] sm:$0xff]
        %v740 = vld [vmem:[%s595 + $0x70] sm:$0xff]
        %v741 = vld [vmem:[%s595 + $0x78] sm:$0xff]
        %v742 = vld [vmem:[%s595 + $0x80] sm:$0xff]
        %v743 = vld [vmem:[%s595 + $0x88] sm:$0xff]
        %v744 = vld [vmem:[%s595 + $0x90] sm:$0xff]
        %v745 = vld [vmem:[%s595 + $0x98] sm:$0xff]
        %v746 = vld [vmem:[%s595 + $0xa0] sm:$0xff]
        %v747 = vld [vmem:[%s595 + $0xa8] sm:$0xff]
        %v748 = vld [vmem:[%s595 + $0xb0] sm:$0xff]
        %v749 = vld [vmem:[%s595 + $0xb8] sm:$0xff]
        %v750 = vld [vmem:[%s595 + $0xc0] sm:$0xff]
        %v751 = vld [vmem:[%s595 + $0xc8] sm:$0xff]
        %v752 = vld [vmem:[%s595 + $0xd0] sm:$0xff]
        %v753 = vld [vmem:[%s595 + $0xd8] sm:$0xff]
        %v754 = vld [vmem:[%s595 + $0xe0] sm:$0xff]
        %v755 = vld [vmem:[%s595 + $0xe8] sm:$0xff]
        %v756 = vld [vmem:[%s595 + $0xf0] sm:$0xff]
        %v757 = vld [vmem:[%s595 + $0xf8] sm:$0xff]
        %v758 = vld [vmem:[%s595 + $0x100] sm:$0xff]
        %v759 = vld [vmem:[%s595 + $0x108] sm:$0xff]
        %v760 = vld [vmem:[%s595 + $0x110] sm:$0xff]
        %v761 = vld [vmem:[%s595 + $0x118] sm:$0xff]
        %v762 = vld [vmem:[%s595 + $0x120] sm:$0xff]
        %v763 = vld [vmem:[%s595 + $0x128] sm:$0xff]
        %v764 = vld [vmem:[%s595 + $0x130] sm:$0xff]
        %v765 = vld [vmem:[%s595 + $0x138] sm:$0xff]
        %v766 = vld [vmem:[%s595 + $0x140] sm:$0xff]
        %v767 = vld [vmem:[%s595 + $0x148] sm:$0xff]
        %v768 = vld [vmem:[%s595 + $0x150] sm:$0xff]
        %v769 = vld [vmem:[%s595 + $0x158] sm:$0xff]
        %v770 = vld [vmem:[%s595 + $0x160] sm:$0xff]
        %v771 = vld [vmem:[%s595 + $0x168] sm:$0xff]
        %v772 = vld [vmem:[%s595 + $0x170] sm:$0xff]
        %v773 = vld [vmem:[%s595 + $0x178] sm:$0xff]
        %v774 = vld [vmem:[%s691] sm:$0x7]
        %v776 = vlaneseq
        %v777 = vshrl.u32 %v776, 7
        %v778 = vsub.s32 0, %v777
        %v779 = vrot.slane %v774, %v778
        %v780 = vlaneseq
        %v781 = vshrl.u32 %v780, 7
        %v782 = vsub.s32 1, %v781
        %v783 = vrot.slane %v774, %v782
        %v784 = vlaneseq
        %v785 = vshrl.u32 %v784, 7
        %v786 = vsub.s32 2, %v785
        %v787 = vrot.slane %v774, %v786
        %791 = vmatprep.subr.mxu0 %v727
        %792 = vmatpush1.msra.mxu0 %v726
        %793 = vmatprep.subr.mxu0 %v730
        %794 = vmatpush1.msra.mxu0 %v729
        %795 = vmatprep.subr.mxu0 %v733
        %796 = vmatpush1.msra.mxu0 %v732
        %797 = vmatprep.subr.mxu0 %v736
        %798 = vmatpush1.msra.mxu0 %v735
        %799 = vmatprep.subr.mxu0 %v739
        %800 = vmatpush1.msra.mxu0 %v738
        %801 = vmatprep.subr.mxu0 %v742
        %802 = vmatpush1.msra.mxu0 %v741
        %803 = vmatprep.subr.mxu0 %v745
        %804 = vmatpush1.msra.mxu0 %v744
        %805 = vmatprep.subr.mxu0 %v748
        %806 = vmatpush1.msra.mxu0 %v747
        %807 = vmatprep.subr.mxu0 %v751
        %808 = vmatpush1.msra.mxu0 %v750
        %809 = vmatprep.subr.mxu0 %v754
        %810 = vmatpush1.msra.mxu0 %v753
        %811 = vmatprep.subr.mxu0 %v757
        %812 = vmatpush1.msra.mxu0 %v756
        %813 = vmatprep.subr.mxu0 %v760
        %814 = vmatpush1.msra.mxu0 %v759
        %815 = vmatprep.subr.mxu0 %v763
        %816 = vmatpush1.msra.mxu0 %v762
        %817 = vmatprep.subr.mxu0 %v766
        %818 = vmatpush1.msra.mxu0 %v765
        %819 = vmatprep.subr.mxu0 %v769
        %820 = vmatpush1.msra.mxu0 %v768
        %821 = vmatprep.subr.mxu0 %v772
        %822 = vmatpush1.msra.mxu0 %v771
        %823 = vmatprep.subr.mxu0 0.0
        %824 = vmatpush1.msra.mxu0 0.0
        %825 = vmatprep.subr.mxu0 0.0
        %826 = vmatpush1.msra.mxu0 0.0
        %827 = vmatprep.subr.mxu0 0.0
        %828 = vmatpush1.msra.mxu0 0.0
        %829 = vmatprep.subr.mxu0 0.0
        %830 = vmatpush1.msra.mxu0 0.0
        %831 = vmatprep.subr.mxu0 0.0
        %832 = vmatpush1.msra.mxu0 0.0
        %833 = vmatprep.subr.mxu0 0.0
        %834 = vmatpush1.msra.mxu0 0.0
        %835 = vmatprep.subr.mxu0 0.0
        %836 = vmatpush1.msra.mxu0 0.0
        %837 = vmatprep.subr.mxu0 0.0
        %838 = vmatpush1.msra.mxu0 0.0
        %839 = vmatprep.subr.mxu0 0.0
        %840 = vmatpush1.msra.mxu0 0.0
        %841 = vmatprep.subr.mxu0 0.0
        %842 = vmatpush1.msra.mxu0 0.0
        %843 = vmatprep.subr.mxu0 0.0
        %844 = vmatpush1.msra.mxu0 0.0
        %845 = vmatprep.subr.mxu0 0.0
        %846 = vmatpush1.msra.mxu0 0.0
        %847 = vmatprep.subr.mxu0 0.0
        %848 = vmatpush1.msra.mxu0 0.0
        %849 = vmatprep.subr.mxu0 0.0
        %850 = vmatpush1.msra.mxu0 0.0
        %851 = vmatprep.subr.mxu0 0.0
        %852 = vmatpush1.msra.mxu0 0.0
        %853 = vmatprep.subr.mxu0 0.0
        %854 = vmatpush1.msra.mxu0 0.0
        %855 = vmatprep.mubr.f32.mxu0 0.0
        %856 = vmatmul.mubr.f32.gmra.mrb[0].mxu0 %v717
        %v857 = vpop.f32.mrb[0].mxu0
        %v858 = vadd.f32 %v779, %v857
        %v859 = vpop.f32.mrb[0].mxu0
        %v860 = vadd.f32 %v783, %v859
        %861 = vmatprep.mubr.f32.mxu0 0.0
        %862 = vmatmul.mubr.f32.gmra.mrb[0].mxu0 %v718
        %v863 = vpop.f32.mrb[0].mxu0
        %v864 = vadd.f32 %v779, %v863
        %v865 = vpop.f32.mrb[0].mxu0
        %v866 = vadd.f32 %v783, %v865
        %867 = vdwg.mxu0
        %868 = vmatprep.subr.mxu0 0.0
        %869 = vmatpush1.msra.mxu0 %v728
        %870 = vmatprep.subr.mxu0 0.0
        %871 = vmatpush1.msra.mxu0 %v731
        %872 = vmatprep.subr.mxu0 0.0
        %873 = vmatpush1.msra.mxu0 %v734
        %874 = vmatprep.subr.mxu0 0.0
        %875 = vmatpush1.msra.mxu0 %v737
        %876 = vmatprep.subr.mxu0 0.0
        %877 = vmatpush1.msra.mxu0 %v740
        %878 = vmatprep.subr.mxu0 0.0
        %879 = vmatpush1.msra.mxu0 %v743
        %880 = vmatprep.subr.mxu0 0.0
        %881 = vmatpush1.msra.mxu0 %v746
        %882 = vmatprep.subr.mxu0 0.0
        %883 = vmatpush1.msra.mxu0 %v749
        %884 = vmatprep.subr.mxu0 0.0
        %885 = vmatpush1.msra.mxu0 %v752
        %886 = vmatprep.subr.mxu0 0.0
        %887 = vmatpush1.msra.mxu0 %v755
        %888 = vmatprep.subr.mxu0 0.0
        %889 = vmatpush1.msra.mxu0 %v758
        %890 = vmatprep.subr.mxu0 0.0
        %891 = vmatpush1.msra.mxu0 %v761
        %892 = vmatprep.subr.mxu0 0.0
        %893 = vmatpush1.msra.mxu0 %v764
        %894 = vmatprep.subr.mxu0 0.0
        %895 = vmatpush1.msra.mxu0 %v767
        %896 = vmatprep.subr.mxu0 0.0
        %897 = vmatpush1.msra.mxu0 %v770
        %898 = vmatprep.subr.mxu0 0.0
        %899 = vmatpush1.msra.mxu0 %v773
        %900 = vmatprep.subr.mxu0 0.0
        %901 = vmatpush1.msra.mxu0 0.0
        %902 = vmatprep.subr.mxu0 0.0
        %903 = vmatpush1.msra.mxu0 0.0
        %904 = vmatprep.subr.mxu0 0.0
        %905 = vmatpush1.msra.mxu0 0.0
        %906 = vmatprep.subr.mxu0 0.0
        %907 = vmatpush1.msra.mxu0 0.0
        %908 = vmatprep.subr.mxu0 0.0
        %909 = vmatpush1.msra.mxu0 0.0
        %910 = vmatprep.subr.mxu0 0.0
        %911 = vmatpush1.msra.mxu0 0.0
        %912 = vmatprep.subr.mxu0 0.0
        %913 = vmatpush1.msra.mxu0 0.0
        %914 = vmatprep.subr.mxu0 0.0
        %915 = vmatpush1.msra.mxu0 0.0
        %916 = vmatprep.subr.mxu0 0.0
        %917 = vmatpush1.msra.mxu0 0.0
        %918 = vmatprep.subr.mxu0 0.0
        %919 = vmatpush1.msra.mxu0 0.0
        %920 = vmatprep.subr.mxu0 0.0
        %921 = vmatpush1.msra.mxu0 0.0
        %922 = vmatprep.subr.mxu0 0.0
        %923 = vmatpush1.msra.mxu0 0.0
        %924 = vmatprep.subr.mxu0 0.0
        %925 = vmatpush1.msra.mxu0 0.0
        %926 = vmatprep.subr.mxu0 0.0
        %927 = vmatpush1.msra.mxu0 0.0
        %928 = vmatprep.subr.mxu0 0.0
        %929 = vmatpush1.msra.mxu0 0.0
        %930 = vmatprep.subr.mxu0 0.0
        %931 = vmatpush1.msra.mxu0 0.0
        %932 = vmatprep.mubr.f32.mxu0 0.0
        %933 = vmatmul.mubr.f32.gmra.mrb[0].mxu0 %v717
        %v934 = vpop.f32.mrb[0].mxu0
        %v935 = vadd.f32 %v787, %v934
        %v936 = vpop.f32.mrb[0].mxu0
        %937 = vmatprep.mubr.f32.mxu0 0.0
        %938 = vmatmul.mubr.f32.gmra.mrb[0].mxu0 %v718
        %v939 = vpop.f32.mrb[0].mxu0
        %v940 = vadd.f32 %v787, %v939
        %v941 = vpop.f32.mrb[0].mxu0
        %942 = vdwg.mxu0
        %v943 = vmax.f32 %v858, 0.0
        %v944 = vmax.f32 %v860, 0.0
        %v945 = vmax.f32 %v935, 0.0
        %v946 = vmax.f32 %v864, 0.0
        %v947 = vmax.f32 %v866, 0.0
        %v948 = vmax.f32 %v940, 0.0
        %v949 = vand.u32 2147483647, %v858
        %v950 = vand.u32 2147483647, %v860
        %v951 = vand.u32 2147483647, %v935
        %v952 = vand.u32 2147483647, %v864
        %v953 = vand.u32 2147483647, %v866
        %v954 = vand.u32 2147483647, %v940
        %v955 = vsub.f32 0.0, %v949
        %v956 = vsub.f32 0.0, %v950
        %v957 = vsub.f32 0.0, %v951
        %v958 = vsub.f32 0.0, %v952
        %v959 = vsub.f32 0.0, %v953
        %v960 = vsub.f32 0.0, %v954
        %v961 = vmul.f32 %v955, 1.442695
        %v962 = vpow.pop %v961
        %v963 = vmul.f32 %v956, 1.442695
        %v964 = vpow.pop %v963
        %v965 = vmul.f32 %v957, 1.442695
        %v966 = vpow.pop %v965
        %v967 = vmul.f32 %v958, 1.442695
        %v968 = vpow.pop %v967
        %v969 = vmul.f32 %v959, 1.442695
        %v970 = vpow.pop %v969
        %v971 = vmul.f32 %v960, 1.442695
        %v972 = vpow.pop %v971
        %v973 = vadd.f32 %v962, 1.0
        %v974 = vadd.f32 %v964, 1.0
        %v975 = vadd.f32 %v966, 1.0
        %v976 = vadd.f32 %v968, 1.0
        %v977 = vadd.f32 %v970, 1.0
        %v978 = vadd.f32 %v972, 1.0
        %v979 = vlog2.pop %v973
        %v980 = vmul.f32 %v979, 0.6931472
        %v981 = vlog2.pop %v974
        %v982 = vmul.f32 %v981, 0.6931472
        %v983 = vlog2.pop %v975
        %v984 = vmul.f32 %v983, 0.6931472
        %v985 = vlog2.pop %v976
        %v986 = vmul.f32 %v985, 0.6931472
        %v987 = vlog2.pop %v977
        %v988 = vmul.f32 %v987, 0.6931472
        %v989 = vlog2.pop %v978
        %v990 = vmul.f32 %v989, 0.6931472
        %v991 = vadd.f32 %v943, %v980
        %v992 = vadd.f32 %v944, %v982
        %v993 = vadd.f32 %v945, %v984
        %v994 = vadd.f32 %v946, %v986
        %v995 = vadd.f32 %v947, %v988
        %v996 = vadd.f32 %v948, %v990
        %v997 = vsub.f32 %v991, 0.6931472
        %v998 = vsub.f32 %v992, 0.6931472
        %v999 = vsub.f32 %v993, 0.6931472
        %v1000 = vsub.f32 %v994, 0.6931472
        %v1001 = vsub.f32 %v995, 0.6931472
        %v1002 = vsub.f32 %v996, 0.6931472
        %vm1003 = vcmask 130048
        %v1005 = vsel %vm1003, %v715, 0
        %v1008 = vsel %vm1003, %v716, 0
        %1010 = vmatprep.subr.mxu0 %v998
        %1011 = vmatpush1.msra.mxu0 %v997
        %1012 = vmatprep.subr.mxu0 %v1001
        %1013 = vmatpush1.msra.mxu0 %v1000
        %1014 = vmatprep.subr.mxu0 0.0
        %1015 = vmatpush1.msra.mxu0 0.0
        %1016 = vmatprep.subr.mxu0 0.0
        %1017 = vmatpush1.msra.mxu0 0.0
        %1018 = vmatprep.subr.mxu0 0.0
        %1019 = vmatpush1.msra.mxu0 0.0
        %1020 = vmatprep.subr.mxu0 0.0
        %1021 = vmatpush1.msra.mxu0 0.0
        %1022 = vmatprep.subr.mxu0 0.0
        %1023 = vmatpush1.msra.mxu0 0.0
        %1024 = vmatprep.subr.mxu0 0.0
        %1025 = vmatpush1.msra.mxu0 0.0
        %1026 = vmatprep.subr.mxu0 0.0
        %1027 = vmatpush1.msra.mxu0 0.0
        %1028 = vmatprep.subr.mxu0 0.0
        %1029 = vmatpush1.msra.mxu0 0.0
        %1030 = vmatprep.subr.mxu0 0.0
        %1031 = vmatpush1.msra.mxu0 0.0
        %1032 = vmatprep.subr.mxu0 0.0
        %1033 = vmatpush1.msra.mxu0 0.0
        %1034 = vmatprep.subr.mxu0 0.0
        %1035 = vmatpush1.msra.mxu0 0.0
        %1036 = vmatprep.subr.mxu0 0.0
        %1037 = vmatpush1.msra.mxu0 0.0
        %1038 = vmatprep.subr.mxu0 0.0
        %1039 = vmatpush1.msra.mxu0 0.0
        %1040 = vmatprep.subr.mxu0 0.0
        %1041 = vmatpush1.msra.mxu0 0.0
        %1042 = vmatprep.subr.mxu0 0.0
        %1043 = vmatpush1.msra.mxu0 0.0
        %1044 = vmatprep.subr.mxu0 0.0
        %1045 = vmatpush1.msra.mxu0 0.0
        %1046 = vmatprep.subr.mxu0 0.0
        %1047 = vmatpush1.msra.mxu0 0.0
        %1048 = vmatprep.subr.mxu0 0.0
        %1049 = vmatpush1.msra.mxu0 0.0
        %1050 = vmatprep.subr.mxu0 0.0
        %1051 = vmatpush1.msra.mxu0 0.0
        %1052 = vmatprep.subr.mxu0 0.0
        %1053 = vmatpush1.msra.mxu0 0.0
        %1054 = vmatprep.subr.mxu0 0.0
        %1055 = vmatpush1.msra.mxu0 0.0
        %1056 = vmatprep.subr.mxu0 0.0
        %1057 = vmatpush1.msra.mxu0 0.0
        %1058 = vmatprep.subr.mxu0 0.0
        %1059 = vmatpush1.msra.mxu0 0.0
        %1060 = vmatprep.subr.mxu0 0.0
        %1061 = vmatpush1.msra.mxu0 0.0
        %1062 = vmatprep.subr.mxu0 0.0
        %1063 = vmatpush1.msra.mxu0 0.0
        %1064 = vmatprep.subr.mxu0 0.0
        %1065 = vmatpush1.msra.mxu0 0.0
        %1066 = vmatprep.subr.mxu0 0.0
        %1067 = vmatpush1.msra.mxu0 0.0
        %1068 = vmatprep.subr.mxu0 0.0
        %1069 = vmatpush1.msra.mxu0 0.0
        %1070 = vmatprep.subr.mxu0 0.0
        %1071 = vmatpush1.msra.mxu0 0.0
        %1072 = vmatprep.subr.mxu0 0.0
        %1073 = vmatpush1.msra.mxu0 0.0
        %1074 = vmatprep.mubr.f32.mxu0 0.0
        %1075 = vmatmul.mubr.f32.gmra.mrb[0].mxu0 %v1005
        %v1076 = vpop.f32.mrb[0].mxu0
        %v1077 = vadd.f32 0.0, %v1076
        %v1078 = vpop.f32.mrb[0].mxu0
        %v1079 = vadd.f32 0.0, %v1078
        %1080 = vmatprep.mubr.f32.mxu0 0.0
        %1081 = vmatmul.mubr.f32.gmra.mrb[0].mxu0 %v1008
        %v1082 = vpop.f32.mrb[0].mxu0
        %v1083 = vadd.f32 0.0, %v1082
        %v1084 = vpop.f32.mrb[0].mxu0
        %v1085 = vadd.f32 0.0, %v1084
        %1086 = vdwg.mxu0
        %1087 = vmatprep.subr.mxu0 0.0
        %1088 = vmatpush1.msra.mxu0 %v999
        %1089 = vmatprep.subr.mxu0 0.0
        %1090 = vmatpush1.msra.mxu0 %v1002
        %1091 = vmatprep.subr.mxu0 0.0
        %1092 = vmatpush1.msra.mxu0 0.0
        %1093 = vmatprep.subr.mxu0 0.0
        %1094 = vmatpush1.msra.mxu0 0.0
        %1095 = vmatprep.subr.mxu0 0.0
        %1096 = vmatpush1.msra.mxu0 0.0
        %1097 = vmatprep.subr.mxu0 0.0
        %1098 = vmatpush1.msra.mxu0 0.0
        %1099 = vmatprep.subr.mxu0 0.0
        %1100 = vmatpush1.msra.mxu0 0.0
        %1101 = vmatprep.subr.mxu0 0.0
        %1102 = vmatpush1.msra.mxu0 0.0
        %1103 = vmatprep.subr.mxu0 0.0
        %1104 = vmatpush1.msra.mxu0 0.0
        %1105 = vmatprep.subr.mxu0 0.0
        %1106 = vmatpush1.msra.mxu0 0.0
        %1107 = vmatprep.subr.mxu0 0.0
        %1108 = vmatpush1.msra.mxu0 0.0
        %1109 = vmatprep.subr.mxu0 0.0
        %1110 = vmatpush1.msra.mxu0 0.0
        %1111 = vmatprep.subr.mxu0 0.0
        %1112 = vmatpush1.msra.mxu0 0.0
        %1113 = vmatprep.subr.mxu0 0.0
        %1114 = vmatpush1.msra.mxu0 0.0
        %1115 = vmatprep.subr.mxu0 0.0
        %1116 = vmatpush1.msra.mxu0 0.0
        %1117 = vmatprep.subr.mxu0 0.0
        %1118 = vmatpush1.msra.mxu0 0.0
        %1119 = vmatprep.subr.mxu0 0.0
        %1120 = vmatpush1.msra.mxu0 0.0
        %1121 = vmatprep.subr.mxu0 0.0
        %1122 = vmatpush1.msra.mxu0 0.0
        %1123 = vmatprep.subr.mxu0 0.0
        %1124 = vmatpush1.msra.mxu0 0.0
        %1125 = vmatprep.subr.mxu0 0.0
        %1126 = vmatpush1.msra.mxu0 0.0
        %1127 = vmatprep.subr.mxu0 0.0
        %1128 = vmatpush1.msra.mxu0 0.0
        %1129 = vmatprep.subr.mxu0 0.0
        %1130 = vmatpush1.msra.mxu0 0.0
        %1131 = vmatprep.subr.mxu0 0.0
        %1132 = vmatpush1.msra.mxu0 0.0
        %1133 = vmatprep.subr.mxu0 0.0
        %1134 = vmatpush1.msra.mxu0 0.0
        %1135 = vmatprep.subr.mxu0 0.0
        %1136 = vmatpush1.msra.mxu0 0.0
        %1137 = vmatprep.subr.mxu0 0.0
        %1138 = vmatpush1.msra.mxu0 0.0
        %1139 = vmatprep.subr.mxu0 0.0
        %1140 = vmatpush1.msra.mxu0 0.0
        %1141 = vmatprep.subr.mxu0 0.0
        %1142 = vmatpush1.msra.mxu0 0.0
        %1143 = vmatprep.subr.mxu0 0.0
        %1144 = vmatpush1.msra.mxu0 0.0
        %1145 = vmatprep.subr.mxu0 0.0
        %1146 = vmatpush1.msra.mxu0 0.0
        %1147 = vmatprep.subr.mxu0 0.0
        %1148 = vmatpush1.msra.mxu0 0.0
        %1149 = vmatprep.subr.mxu0 0.0
        %1150 = vmatpush1.msra.mxu0 0.0
        %1151 = vmatprep.mubr.f32.mxu0 0.0
        %1152 = vmatmul.mubr.f32.gmra.mrb[0].mxu0 %v1005
        %v1153 = vpop.f32.mrb[0].mxu0
        %v1154 = vadd.f32 0.0, %v1153
        %v1155 = vpop.f32.mrb[0].mxu0
        %1156 = vmatprep.mubr.f32.mxu0 0.0
        %1157 = vmatmul.mubr.f32.gmra.mrb[0].mxu0 %v1008
        %v1158 = vpop.f32.mrb[0].mxu0
        %v1159 = vadd.f32 0.0, %v1158
        %v1160 = vpop.f32.mrb[0].mxu0
        %1161 = vdwg.mxu0
        %v1162 = vstv %s725
        %v1163 = vmul.f32 %v1162, %v717
        %v1164 = vmul.f32 %v1162, %v718
        %v1165 = vld [vmem:[%s4] sm:$0xff]
        %v1166 = vld [vmem:[%s4 + $0x8] sm:$0xff]
        %1168 = vset.pattern.permute.xlu0 0
        %1169 = vperm.xlu0 %1168, %v1165
        %v1170 = vpop.permute.xlu0 %1169
        %1173 = vset.pattern.permute.xlu0 0
        %1174 = vperm.xlu0 %1173, %v1166
        %v1175 = vpop.permute.xlu0 %1174
        %v1177 = vmul.f32 %v1170, %v1077
        %v1178 = vmul.f32 %v1175, %v1083
        %s1179 = sld [smem:[#allocation5]]
        %v1180 = vmax.f32 %v1177, 0.0
        %v1181 = vmax.f32 %v1178, 0.0
        %v1182 = vand.u32 2147483647, %v1177
        %v1183 = vand.u32 2147483647, %v1178
        %v1184 = vsub.f32 0.0, %v1182
        %v1185 = vsub.f32 0.0, %v1183
        %v1186 = vmul.f32 %v1184, 1.442695
        %v1187 = vpow.pop %v1186
        %v1188 = vmul.f32 %v1185, 1.442695
        %v1189 = vpow.pop %v1188
        %v1190 = vadd.f32 %v1187, 1.0
        %v1191 = vadd.f32 %v1189, 1.0
        %v1192 = vlog2.pop %v1190
        %v1193 = vmul.f32 %v1192, 0.6931472
        %v1194 = vlog2.pop %v1191
        %v1195 = vmul.f32 %v1194, 0.6931472
        %v1196 = vadd.f32 %v1180, %v1193
        %v1197 = vadd.f32 %v1181, %v1195
        %v1198 = vsub.f32 %v1196, 0.6931472
        %v1199 = vsub.f32 %v1197, 0.6931472
        %v1200 = vld [vmem:[%s604] sm:$0xff]
        %v1201 = vld [vmem:[%s604 + $0x8] sm:$0xff]
        %v1202 = vld [vmem:[%s604 + $0x10] sm:$0xff]
        %v1203 = vld [vmem:[%s604 + $0x18] sm:$0xff]
        %v1204 = vld [vmem:[%s604 + $0x20] sm:$0xff]
        %v1205 = vld [vmem:[%s604 + $0x28] sm:$0xff]
        %v1206 = vld [vmem:[%s604 + $0x30] sm:$0xff]
        %v1207 = vld [vmem:[%s604 + $0x38] sm:$0xff]
        %v1208 = vld [vmem:[%s604 + $0x40] sm:$0xff]
        %v1209 = vld [vmem:[%s604 + $0x48] sm:$0xff]
        %v1210 = vld [vmem:[%s604 + $0x50] sm:$0xff]
        %v1211 = vld [vmem:[%s604 + $0x58] sm:$0xff]
        %v1212 = vld [vmem:[%s604 + $0x60] sm:$0xff]
        %v1213 = vld [vmem:[%s604 + $0x68] sm:$0xff]
        %v1214 = vld [vmem:[%s604 + $0x70] sm:$0xff]
        %v1215 = vld [vmem:[%s604 + $0x78] sm:$0xff]
        %v1216 = vld [vmem:[%s695] sm:$0x1]
        %v1218 = vlaneseq
        %v1219 = vshrl.u32 %v1218, 7
        %v1220 = vsub.s32 0, %v1219
        %v1221 = vrot.slane %v1216, %v1220
        %1223 = vmatprep.subr.mxu0 0.0
        %1224 = vmatpush1.msra.mxu0 %v1200
        %1225 = vmatprep.subr.mxu0 0.0
        %1226 = vmatpush1.msra.mxu0 %v1201
        %1227 = vmatprep.subr.mxu0 0.0
        %1228 = vmatpush1.msra.mxu0 %v1202
        %1229 = vmatprep.subr.mxu0 0.0
        %1230 = vmatpush1.msra.mxu0 %v1203
        %1231 = vmatprep.subr.mxu0 0.0
        %1232 = vmatpush1.msra.mxu0 %v1204
        %1233 = vmatprep.subr.mxu0 0.0
        %1234 = vmatpush1.msra.mxu0 %v1205
        %1235 = vmatprep.subr.mxu0 0.0
        %1236 = vmatpush1.msra.mxu0 %v1206
        %1237 = vmatprep.subr.mxu0 0.0
        %1238 = vmatpush1.msra.mxu0 %v1207
        %1239 = vmatprep.subr.mxu0 0.0
        %1240 = vmatpush1.msra.mxu0 %v1208
        %1241 = vmatprep.subr.mxu0 0.0
        %1242 = vmatpush1.msra.mxu0 %v1209
        %1243 = vmatprep.subr.mxu0 0.0
        %1244 = vmatpush1.msra.mxu0 %v1210
        %1245 = vmatprep.subr.mxu0 0.0
        %1246 = vmatpush1.msra.mxu0 %v1211
        %1247 = vmatprep.subr.mxu0 0.0
        %1248 = vmatpush1.msra.mxu0 %v1212
        %1249 = vmatprep.subr.mxu0 0.0
        %1250 = vmatpush1.msra.mxu0 %v1213
        %1251 = vmatprep.subr.mxu0 0.0
        %1252 = vmatpush1.msra.mxu0 %v1214
        %1253 = vmatprep.subr.mxu0 0.0
        %1254 = vmatpush1.msra.mxu0 %v1215
        %1255 = vmatprep.subr.mxu0 0.0
        %1256 = vmatpush1.msra.mxu0 0.0
        %1257 = vmatprep.subr.mxu0 0.0
        %1258 = vmatpush1.msra.mxu0 0.0
        %1259 = vmatprep.subr.mxu0 0.0
        %1260 = vmatpush1.msra.mxu0 0.0
        %1261 = vmatprep.subr.mxu0 0.0
        %1262 = vmatpush1.msra.mxu0 0.0
        %1263 = vmatprep.subr.mxu0 0.0
        %1264 = vmatpush1.msra.mxu0 0.0
        %1265 = vmatprep.subr.mxu0 0.0
        %1266 = vmatpush1.msra.mxu0 0.0
        %1267 = vmatprep.subr.mxu0 0.0
        %1268 = vmatpush1.msra.mxu0 0.0
        %1269 = vmatprep.subr.mxu0 0.0
        %1270 = vmatpush1.msra.mxu0 0.0
        %1271 = vmatprep.subr.mxu0 0.0
        %1272 = vmatpush1.msra.mxu0 0.0
        %1273 = vmatprep.subr.mxu0 0.0
        %1274 = vmatpush1.msra.mxu0 0.0
        %1275 = vmatprep.subr.mxu0 0.0
        %1276 = vmatpush1.msra.mxu0 0.0
        %1277 = vmatprep.subr.mxu0 0.0
        %1278 = vmatpush1.msra.mxu0 0.0
        %1279 = vmatprep.subr.mxu0 0.0
        %1280 = vmatpush1.msra.mxu0 0.0
        %1281 = vmatprep.subr.mxu0 0.0
        %1282 = vmatpush1.msra.mxu0 0.0
        %1283 = vmatprep.subr.mxu0 0.0
        %1284 = vmatpush1.msra.mxu0 0.0
        %1285 = vmatprep.subr.mxu0 0.0
        %1286 = vmatpush1.msra.mxu0 0.0
        %1287 = vmatprep.mubr.f32.mxu0 0.0
        %1288 = vmatmul.mubr.f32.gmra.mrb[0].mxu0 %v1198
        %v1289 = vpop.f32.mrb[0].mxu0
        %v1290 = vadd.f32 %v1221, %v1289
        %v1291 = vpop.f32.mrb[0].mxu0
        %1292 = vmatprep.mubr.f32.mxu0 0.0
        %1293 = vmatmul.mubr.f32.gmra.mrb[0].mxu0 %v1199
        %v1294 = vpop.f32.mrb[0].mxu0
        %v1295 = vadd.f32 %v1221, %v1294
        %v1296 = vpop.f32.mrb[0].mxu0
        %1297 = vdwg.mxu0
        %v1298 = vstv %s1179
        %v1299 = vmul.f32 %v1298, %v1290
        %v1300 = vmul.f32 %v1298, %v1295
        %v1301 = vadd.f32 %v1163, %v1299
        %v1302 = vadd.f32 %v1164, %v1300
        %s1303 = scalar_lea.vmem %s4, 16
        %v1304 = vld [vmem:[%s1303] sm:$0xff]
        %v1305 = vld [vmem:[%s1303 + $0x8] sm:$0xff]
        %1307 = vset.pattern.permute.xlu0 0
        %1308 = vperm.xlu0 %1307, %v1304
        %v1309 = vpop.permute.xlu0 %1308
        %1312 = vset.pattern.permute.xlu0 0
        %1313 = vperm.xlu0 %1312, %v1305
        %v1314 = vpop.permute.xlu0 %1313
        %v1316 = vmul.f32 %v1309, %v1079
        %v1317 = vmul.f32 %v1314, %v1085
        %s1318 = sld [smem:[#allocation5 + $0x1]]
        %v1319 = vmax.f32 %v1316, 0.0
        %v1320 = vmax.f32 %v1317, 0.0
        %v1321 = vand.u32 2147483647, %v1316
        %v1322 = vand.u32 2147483647, %v1317
        %v1323 = vsub.f32 0.0, %v1321
        %v1324 = vsub.f32 0.0, %v1322
        %v1325 = vmul.f32 %v1323, 1.442695
        %v1326 = vpow.pop %v1325
        %v1327 = vmul.f32 %v1324, 1.442695
        %v1328 = vpow.pop %v1327
        %v1329 = vadd.f32 %v1326, 1.0
        %v1330 = vadd.f32 %v1328, 1.0
        %v1331 = vlog2.pop %v1329
        %v1332 = vmul.f32 %v1331, 0.6931472
        %v1333 = vlog2.pop %v1330
        %v1334 = vmul.f32 %v1333, 0.6931472
        %v1335 = vadd.f32 %v1319, %v1332
        %v1336 = vadd.f32 %v1320, %v1334
        %v1337 = vsub.f32 %v1335, 0.6931472
        %v1338 = vsub.f32 %v1336, 0.6931472
        %s1339 = scalar_lea.vmem %s604, 128 [#allocation10]
        %v1340 = vld [vmem:[%s1339] sm:$0xff]
        %v1341 = vld [vmem:[%s1339 + $0x8] sm:$0xff]
        %v1342 = vld [vmem:[%s1339 + $0x10] sm:$0xff]
        %v1343 = vld [vmem:[%s1339 + $0x18] sm:$0xff]
        %v1344 = vld [vmem:[%s1339 + $0x20] sm:$0xff]
        %v1345 = vld [vmem:[%s1339 + $0x28] sm:$0xff]
        %v1346 = vld [vmem:[%s1339 + $0x30] sm:$0xff]
        %v1347 = vld [vmem:[%s1339 + $0x38] sm:$0xff]
        %v1348 = vld [vmem:[%s1339 + $0x40] sm:$0xff]
        %v1349 = vld [vmem:[%s1339 + $0x48] sm:$0xff]
        %v1350 = vld [vmem:[%s1339 + $0x50] sm:$0xff]
        %v1351 = vld [vmem:[%s1339 + $0x58] sm:$0xff]
        %v1352 = vld [vmem:[%s1339 + $0x60] sm:$0xff]
        %v1353 = vld [vmem:[%s1339 + $0x68] sm:$0xff]
        %v1354 = vld [vmem:[%s1339 + $0x70] sm:$0xff]
        %v1355 = vld [vmem:[%s1339 + $0x78] sm:$0xff]
        %s1356 = scalar_lea.vmem %s695, 1
        %v1357 = vld [vmem:[%s1356] sm:$0x1]
        %v1359 = vlaneseq
        %v1360 = vshrl.u32 %v1359, 7
        %v1361 = vsub.s32 0, %v1360
        %v1362 = vrot.slane %v1357, %v1361
        %1364 = vmatprep.subr.mxu0 0.0
        %1365 = vmatpush1.msra.mxu0 %v1340
        %1366 = vmatprep.subr.mxu0 0.0
        %1367 = vmatpush1.msra.mxu0 %v1341
        %1368 = vmatprep.subr.mxu0 0.0
        %1369 = vmatpush1.msra.mxu0 %v1342
        %1370 = vmatprep.subr.mxu0 0.0
        %1371 = vmatpush1.msra.mxu0 %v1343
        %1372 = vmatprep.subr.mxu0 0.0
        %1373 = vmatpush1.msra.mxu0 %v1344
        %1374 = vmatprep.subr.mxu0 0.0
        %1375 = vmatpush1.msra.mxu0 %v1345
        %1376 = vmatprep.subr.mxu0 0.0
        %1377 = vmatpush1.msra.mxu0 %v1346
        %1378 = vmatprep.subr.mxu0 0.0
        %1379 = vmatpush1.msra.mxu0 %v1347
        %1380 = vmatprep.subr.mxu0 0.0
        %1381 = vmatpush1.msra.mxu0 %v1348
        %1382 = vmatprep.subr.mxu0 0.0
        %1383 = vmatpush1.msra.mxu0 %v1349
        %1384 = vmatprep.subr.mxu0 0.0
        %1385 = vmatpush1.msra.mxu0 %v1350
        %1386 = vmatprep.subr.mxu0 0.0
        %1387 = vmatpush1.msra.mxu0 %v1351
        %1388 = vmatprep.subr.mxu0 0.0
        %1389 = vmatpush1.msra.mxu0 %v1352
        %1390 = vmatprep.subr.mxu0 0.0
        %1391 = vmatpush1.msra.mxu0 %v1353
        %1392 = vmatprep.subr.mxu0 0.0
        %1393 = vmatpush1.msra.mxu0 %v1354
        %1394 = vmatprep.subr.mxu0 0.0
        %1395 = vmatpush1.msra.mxu0 %v1355
        %1396 = vmatprep.subr.mxu0 0.0
        %1397 = vmatpush1.msra.mxu0 0.0
        %1398 = vmatprep.subr.mxu0 0.0
        %1399 = vmatpush1.msra.mxu0 0.0
        %1400 = vmatprep.subr.mxu0 0.0
        %1401 = vmatpush1.msra.mxu0 0.0
        %1402 = vmatprep.subr.mxu0 0.0
        %1403 = vmatpush1.msra.mxu0 0.0
        %1404 = vmatprep.subr.mxu0 0.0
        %1405 = vmatpush1.msra.mxu0 0.0
        %1406 = vmatprep.subr.mxu0 0.0
        %1407 = vmatpush1.msra.mxu0 0.0
        %1408 = vmatprep.subr.mxu0 0.0
        %1409 = vmatpush1.msra.mxu0 0.0
        %1410 = vmatprep.subr.mxu0 0.0
        %1411 = vmatpush1.msra.mxu0 0.0
        %1412 = vmatprep.subr.mxu0 0.0
        %1413 = vmatpush1.msra.mxu0 0.0
        %1414 = vmatprep.subr.mxu0 0.0
        %1415 = vmatpush1.msra.mxu0 0.0
        %1416 = vmatprep.subr.mxu0 0.0
        %1417 = vmatpush1.msra.mxu0 0.0
        %1418 = vmatprep.subr.mxu0 0.0
        %1419 = vmatpush1.msra.mxu0 0.0
        %1420 = vmatprep.subr.mxu0 0.0
        %1421 = vmatpush1.msra.mxu0 0.0
        %1422 = vmatprep.subr.mxu0 0.0
        %1423 = vmatpush1.msra.mxu0 0.0
        %1424 = vmatprep.subr.mxu0 0.0
        %1425 = vmatpush1.msra.mxu0 0.0
        %1426 = vmatprep.subr.mxu0 0.0
        %1427 = vmatpush1.msra.mxu0 0.0
        %1428 = vmatprep.mubr.f32.mxu0 0.0
        %1429 = vmatmul.mubr.f32.gmra.mrb[0].mxu0 %v1337
        %v1430 = vpop.f32.mrb[0].mxu0
        %v1431 = vadd.f32 %v1362, %v1430
        %v1432 = vpop.f32.mrb[0].mxu0
        %1433 = vmatprep.mubr.f32.mxu0 0.0
        %1434 = vmatmul.mubr.f32.gmra.mrb[0].mxu0 %v1338
        %v1435 = vpop.f32.mrb[0].mxu0
        %v1436 = vadd.f32 %v1362, %v1435
        %v1437 = vpop.f32.mrb[0].mxu0
        %1438 = vdwg.mxu0
        %v1439 = vstv %s1318
        %v1440 = vmul.f32 %v1439, %v1431
        %v1441 = vmul.f32 %v1439, %v1436
        %v1442 = vadd.f32 %v1301, %v1440
        %v1443 = vadd.f32 %v1302, %v1441
        %s1444 = scalar_lea.vmem %s4, 32
        %v1445 = vld [vmem:[%s1444] sm:$0xff]
        %v1446 = vld [vmem:[%s1444 + $0x8] sm:$0xff]
        %1448 = vset.pattern.permute.xlu0 0
        %1449 = vperm.xlu0 %1448, %v1445
        %v1450 = vpop.permute.xlu0 %1449
        %1453 = vset.pattern.permute.xlu0 0
        %1454 = vperm.xlu0 %1453, %v1446
        %v1455 = vpop.permute.xlu0 %1454
        %v1457 = vmul.f32 %v1450, %v1154
        %v1458 = vmul.f32 %v1455, %v1159
        %s1459 = sld [smem:[#allocation5 + $0x2]]
        %v1460 = vmax.f32 %v1457, 0.0
        %v1461 = vmax.f32 %v1458, 0.0
        %v1462 = vand.u32 2147483647, %v1457
        %v1463 = vand.u32 2147483647, %v1458
        %v1464 = vsub.f32 0.0, %v1462
        %v1465 = vsub.f32 0.0, %v1463
        %v1466 = vmul.f32 %v1464, 1.442695
        %v1467 = vpow.pop %v1466
        %v1468 = vmul.f32 %v1465, 1.442695
        %v1469 = vpow.pop %v1468
        %v1470 = vadd.f32 %v1467, 1.0
        %v1471 = vadd.f32 %v1469, 1.0
        %v1472 = vlog2.pop %v1470
        %v1473 = vmul.f32 %v1472, 0.6931472
        %v1474 = vlog2.pop %v1471
        %v1475 = vmul.f32 %v1474, 0.6931472
        %v1476 = vadd.f32 %v1460, %v1473
        %v1477 = vadd.f32 %v1461, %v1475
        %v1478 = vsub.f32 %v1476, 0.6931472
        %v1479 = vsub.f32 %v1477, 0.6931472
        %s1480 = scalar_lea.vmem %s604, 256 [#allocation10]
        %v1481 = vld [vmem:[%s1480] sm:$0xff]
        %v1482 = vld [vmem:[%s1480 + $0x8] sm:$0xff]
        %v1483 = vld [vmem:[%s1480 + $0x10] sm:$0xff]
        %v1484 = vld [vmem:[%s1480 + $0x18] sm:$0xff]
        %v1485 = vld [vmem:[%s1480 + $0x20] sm:$0xff]
        %v1486 = vld [vmem:[%s1480 + $0x28] sm:$0xff]
        %v1487 = vld [vmem:[%s1480 + $0x30] sm:$0xff]
        %v1488 = vld [vmem:[%s1480 + $0x38] sm:$0xff]
        %v1489 = vld [vmem:[%s1480 + $0x40] sm:$0xff]
        %v1490 = vld [vmem:[%s1480 + $0x48] sm:$0xff]
        %v1491 = vld [vmem:[%s1480 + $0x50] sm:$0xff]
        %v1492 = vld [vmem:[%s1480 + $0x58] sm:$0xff]
        %v1493 = vld [vmem:[%s1480 + $0x60] sm:$0xff]
        %v1494 = vld [vmem:[%s1480 + $0x68] sm:$0xff]
        %v1495 = vld [vmem:[%s1480 + $0x70] sm:$0xff]
        %v1496 = vld [vmem:[%s1480 + $0x78] sm:$0xff]
        %s1497 = scalar_lea.vmem %s695, 2
        %v1498 = vld [vmem:[%s1497] sm:$0x1]
        %v1500 = vlaneseq
        %v1501 = vshrl.u32 %v1500, 7
        %v1502 = vsub.s32 0, %v1501
        %v1503 = vrot.slane %v1498, %v1502
        %1505 = vmatprep.subr.mxu0 0.0
        %1506 = vmatpush1.msra.mxu0 %v1481
        %1507 = vmatprep.subr.mxu0 0.0
        %1508 = vmatpush1.msra.mxu0 %v1482
        %1509 = vmatprep.subr.mxu0 0.0
        %1510 = vmatpush1.msra.mxu0 %v1483
        %1511 = vmatprep.subr.mxu0 0.0
        %1512 = vmatpush1.msra.mxu0 %v1484
        %1513 = vmatprep.subr.mxu0 0.0
        %1514 = vmatpush1.msra.mxu0 %v1485
        %1515 = vmatprep.subr.mxu0 0.0
        %1516 = vmatpush1.msra.mxu0 %v1486
        %1517 = vmatprep.subr.mxu0 0.0
        %1518 = vmatpush1.msra.mxu0 %v1487
        %1519 = vmatprep.subr.mxu0 0.0
        %1520 = vmatpush1.msra.mxu0 %v1488
        %1521 = vmatprep.subr.mxu0 0.0
        %1522 = vmatpush1.msra.mxu0 %v1489
        %1523 = vmatprep.subr.mxu0 0.0
        %1524 = vmatpush1.msra.mxu0 %v1490
        %1525 = vmatprep.subr.mxu0 0.0
        %1526 = vmatpush1.msra.mxu0 %v1491
        %1527 = vmatprep.subr.mxu0 0.0
        %1528 = vmatpush1.msra.mxu0 %v1492
        %1529 = vmatprep.subr.mxu0 0.0
        %1530 = vmatpush1.msra.mxu0 %v1493
        %1531 = vmatprep.subr.mxu0 0.0
        %1532 = vmatpush1.msra.mxu0 %v1494
        %1533 = vmatprep.subr.mxu0 0.0
        %1534 = vmatpush1.msra.mxu0 %v1495
        %1535 = vmatprep.subr.mxu0 0.0
        %1536 = vmatpush1.msra.mxu0 %v1496
        %1537 = vmatprep.subr.mxu0 0.0
        %1538 = vmatpush1.msra.mxu0 0.0
        %1539 = vmatprep.subr.mxu0 0.0
        %1540 = vmatpush1.msra.mxu0 0.0
        %1541 = vmatprep.subr.mxu0 0.0
        %1542 = vmatpush1.msra.mxu0 0.0
        %1543 = vmatprep.subr.mxu0 0.0
        %1544 = vmatpush1.msra.mxu0 0.0
        %1545 = vmatprep.subr.mxu0 0.0
        %1546 = vmatpush1.msra.mxu0 0.0
        %1547 = vmatprep.subr.mxu0 0.0
        %1548 = vmatpush1.msra.mxu0 0.0
        %1549 = vmatprep.subr.mxu0 0.0
        %1550 = vmatpush1.msra.mxu0 0.0
        %1551 = vmatprep.subr.mxu0 0.0
        %1552 = vmatpush1.msra.mxu0 0.0
        %1553 = vmatprep.subr.mxu0 0.0
        %1554 = vmatpush1.msra.mxu0 0.0
        %1555 = vmatprep.subr.mxu0 0.0
        %1556 = vmatpush1.msra.mxu0 0.0
        %1557 = vmatprep.subr.mxu0 0.0
        %1558 = vmatpush1.msra.mxu0 0.0
        %1559 = vmatprep.subr.mxu0 0.0
        %1560 = vmatpush1.msra.mxu0 0.0
        %1561 = vmatprep.subr.mxu0 0.0
        %1562 = vmatpush1.msra.mxu0 0.0
        %1563 = vmatprep.subr.mxu0 0.0
        %1564 = vmatpush1.msra.mxu0 0.0
        %1565 = vmatprep.subr.mxu0 0.0
        %1566 = vmatpush1.msra.mxu0 0.0
        %1567 = vmatprep.subr.mxu0 0.0
        %1568 = vmatpush1.msra.mxu0 0.0
        %1569 = vmatprep.mubr.f32.mxu0 0.0
        %1570 = vmatmul.mubr.f32.gmra.mrb[0].mxu0 %v1478
        %v1571 = vpop.f32.mrb[0].mxu0
        %v1572 = vadd.f32 %v1503, %v1571
        %v1573 = vpop.f32.mrb[0].mxu0
        %1574 = vmatprep.mubr.f32.mxu0 0.0
        %1575 = vmatmul.mubr.f32.gmra.mrb[0].mxu0 %v1479
        %v1576 = vpop.f32.mrb[0].mxu0
        %v1577 = vadd.f32 %v1503, %v1576
        %v1578 = vpop.f32.mrb[0].mxu0
        %1579 = vdwg.mxu0
        %v1580 = vstv %s1459
        %v1581 = vmul.f32 %v1580, %v1572
        %v1582 = vmul.f32 %v1580, %v1577
        %v1583 = vadd.f32 %v1442, %v1581
        %v1584 = vadd.f32 %v1443, %v1582
        %1585 = vst [vmem:[#allocation2] sm:$0xff] %v1583
        %1586 = vst [vmem:[#allocation2 + $0x8] sm:$0xff] %v1584
        %p1587 = scmp.ne.s32.totalorder %s37, 3
        // Predicated region
        $region113: #{tpu_custom_call.1} parent=83 // pred_check
          %p1588 = pneg %p1587
        $region114: #{tpu_custom_call.1} parent=83 // pred_check_branch
          %1590 = sbr.rel (%p1588) target = $region116
        $region115: #{tpu_custom_call.1} parent=83 // pred_region
          %1591 = vmatprep.subr.mxu0 %v720
          %1592 = vmatpush1.msra.mxu0 %v719
          %1593 = vmatprep.subr.mxu0 %v723
          %1594 = vmatpush1.msra.mxu0 %v722
          %1595 = vmatprep.subr.mxu0 0.0
          %1596 = vmatpush1.msra.mxu0 0.0
          %1597 = vmatprep.subr.mxu0 0.0
          %1598 = vmatpush1.msra.mxu0 0.0
          %1599 = vmatprep.subr.mxu0 0.0
          %1600 = vmatpush1.msra.mxu0 0.0
          %1601 = vmatprep.subr.mxu0 0.0
          %1602 = vmatpush1.msra.mxu0 0.0
          %1603 = vmatprep.subr.mxu0 0.0
          %1604 = vmatpush1.msra.mxu0 0.0
          %1605 = vmatprep.subr.mxu0 0.0
          %1606 = vmatpush1.msra.mxu0 0.0
          %1607 = vmatprep.subr.mxu0 0.0
          %1608 = vmatpush1.msra.mxu0 0.0
          %1609 = vmatprep.subr.mxu0 0.0
          %1610 = vmatpush1.msra.mxu0 0.0
          %1611 = vmatprep.subr.mxu0 0.0
          %1612 = vmatpush1.msra.mxu0 0.0
          %1613 = vmatprep.subr.mxu0 0.0
          %1614 = vmatpush1.msra.mxu0 0.0
          %1615 = vmatprep.subr.mxu0 0.0
          %1616 = vmatpush1.msra.mxu0 0.0
          %1617 = vmatprep.subr.mxu0 0.0
          %1618 = vmatpush1.msra.mxu0 0.0
          %1619 = vmatprep.subr.mxu0 0.0
          %1620 = vmatpush1.msra.mxu0 0.0
          %1621 = vmatprep.subr.mxu0 0.0
          %1622 = vmatpush1.msra.mxu0 0.0
          %1623 = vmatprep.subr.mxu0 0.0
          %1624 = vmatpush1.msra.mxu0 0.0
          %1625 = vmatprep.subr.mxu0 0.0
          %1626 = vmatpush1.msra.mxu0 0.0
          %1627 = vmatprep.subr.mxu0 0.0
          %1628 = vmatpush1.msra.mxu0 0.0
          %1629 = vmatprep.subr.mxu0 0.0
          %1630 = vmatpush1.msra.mxu0 0.0
          %1631 = vmatprep.subr.mxu0 0.0
          %1632 = vmatpush1.msra.mxu0 0.0
          %1633 = vmatprep.subr.mxu0 0.0
          %1634 = vmatpush1.msra.mxu0 0.0
          %1635 = vmatprep.subr.mxu0 0.0
          %1636 = vmatpush1.msra.mxu0 0.0
          %1637 = vmatprep.subr.mxu0 0.0
          %1638 = vmatpush1.msra.mxu0 0.0
          %1639 = vmatprep.subr.mxu0 0.0
          %1640 = vmatpush1.msra.mxu0 0.0
          %1641 = vmatprep.subr.mxu0 0.0
          %1642 = vmatpush1.msra.mxu0 0.0
          %1643 = vmatprep.subr.mxu0 0.0
          %1644 = vmatpush1.msra.mxu0 0.0
          %1645 = vmatprep.subr.mxu0 0.0
          %1646 = vmatpush1.msra.mxu0 0.0
          %1647 = vmatprep.subr.mxu0 0.0
          %1648 = vmatpush1.msra.mxu0 0.0
          %1649 = vmatprep.subr.mxu0 0.0
          %1650 = vmatpush1.msra.mxu0 0.0
          %1651 = vmatprep.subr.mxu0 0.0
          %1652 = vmatpush1.msra.mxu0 0.0
          %1653 = vmatprep.subr.mxu0 0.0
          %1654 = vmatpush1.msra.mxu0 0.0
          %1655 = vmatprep.mubr.f32.mxu0 0.0
          %1656 = vmatmul.mubr.f32.gmra.mrb[0].mxu0 %v1005
          %v1657 = vpop.f32.mrb[0].mxu0
          %v1658 = vadd.f32 0.0, %v1657
          %v1659 = vpop.f32.mrb[0].mxu0
          %v1660 = vadd.f32 0.0, %v1659
          %1661 = vmatprep.mubr.f32.mxu0 0.0
          %1662 = vmatmul.mubr.f32.gmra.mrb[0].mxu0 %v1008
          %v1663 = vpop.f32.mrb[0].mxu0
          %v1664 = vadd.f32 0.0, %v1663
          %v1665 = vpop.f32.mrb[0].mxu0
          %v1666 = vadd.f32 0.0, %v1665
          %1667 = vdwg.mxu0
          %1668 = vmatprep.subr.mxu0 0.0
          %1669 = vmatpush1.msra.mxu0 %v721
          %1670 = vmatprep.subr.mxu0 0.0
          %1671 = vmatpush1.msra.mxu0 %v724
          %1672 = vmatprep.subr.mxu0 0.0
          %1673 = vmatpush1.msra.mxu0 0.0
          %1674 = vmatprep.subr.mxu0 0.0
          %1675 = vmatpush1.msra.mxu0 0.0
          %1676 = vmatprep.subr.mxu0 0.0
          %1677 = vmatpush1.msra.mxu0 0.0
          %1678 = vmatprep.subr.mxu0 0.0
          %1679 = vmatpush1.msra.mxu0 0.0
          %1680 = vmatprep.subr.mxu0 0.0
          %1681 = vmatpush1.msra.mxu0 0.0
          %1682 = vmatprep.subr.mxu0 0.0
          %1683 = vmatpush1.msra.mxu0 0.0
          %1684 = vmatprep.subr.mxu0 0.0
          %1685 = vmatpush1.msra.mxu0 0.0
          %1686 = vmatprep.subr.mxu0 0.0
          %1687 = vmatpush1.msra.mxu0 0.0
          %1688 = vmatprep.subr.mxu0 0.0
          %1689 = vmatpush1.msra.mxu0 0.0
          %1690 = vmatprep.subr.mxu0 0.0
          %1691 = vmatpush1.msra.mxu0 0.0
          %1692 = vmatprep.subr.mxu0 0.0
          %1693 = vmatpush1.msra.mxu0 0.0
          %1694 = vmatprep.subr.mxu0 0.0
          %1695 = vmatpush1.msra.mxu0 0.0
          %1696 = vmatprep.subr.mxu0 0.0
          %1697 = vmatpush1.msra.mxu0 0.0
          %1698 = vmatprep.subr.mxu0 0.0
          %1699 = vmatpush1.msra.mxu0 0.0
          %1700 = vmatprep.subr.mxu0 0.0
          %1701 = vmatpush1.msra.mxu0 0.0
          %1702 = vmatprep.subr.mxu0 0.0
          %1703 = vmatpush1.msra.mxu0 0.0
          %1704 = vmatprep.subr.mxu0 0.0
          %1705 = vmatpush1.msra.mxu0 0.0
          %1706 = vmatprep.subr.mxu0 0.0
          %1707 = vmatpush1.msra.mxu0 0.0
          %1708 = vmatprep.subr.mxu0 0.0
          %1709 = vmatpush1.msra.mxu0 0.0
          %1710 = vmatprep.subr.mxu0 0.0
          %1711 = vmatpush1.msra.mxu0 0.0
          %1712 = vmatprep.subr.mxu0 0.0
          %1713 = vmatpush1.msra.mxu0 0.0
          %1714 = vmatprep.subr.mxu0 0.0
          %1715 = vmatpush1.msra.mxu0 0.0
          %1716 = vmatprep.subr.mxu0 0.0
          %1717 = vmatpush1.msra.mxu0 0.0
          %1718 = vmatprep.subr.mxu0 0.0
          %1719 = vmatpush1.msra.mxu0 0.0
          %1720 = vmatprep.subr.mxu0 0.0
          %1721 = vmatpush1.msra.mxu0 0.0
          %1722 = vmatprep.subr.mxu0 0.0
          %1723 = vmatpush1.msra.mxu0 0.0
          %1724 = vmatprep.subr.mxu0 0.0
          %1725 = vmatpush1.msra.mxu0 0.0
          %1726 = vmatprep.subr.mxu0 0.0
          %1727 = vmatpush1.msra.mxu0 0.0
          %1728 = vmatprep.subr.mxu0 0.0
          %1729 = vmatpush1.msra.mxu0 0.0
          %1730 = vmatprep.subr.mxu0 0.0
          %1731 = vmatpush1.msra.mxu0 0.0
          %1732 = vmatprep.mubr.f32.mxu0 0.0
          %1733 = vmatmul.mubr.f32.gmra.mrb[0].mxu0 %v1005
          %v1734 = vpop.f32.mrb[0].mxu0
          %v1735 = vadd.f32 0.0, %v1734
          %v1736 = vpop.f32.mrb[0].mxu0
          %1737 = vmatprep.mubr.f32.mxu0 0.0
          %1738 = vmatmul.mubr.f32.gmra.mrb[0].mxu0 %v1008
          %v1739 = vpop.f32.mrb[0].mxu0
          %v1740 = vadd.f32 0.0, %v1739
          %v1741 = vpop.f32.mrb[0].mxu0
          %1742 = vdwg.mxu0
          %v1743 = vld [vmem:[%s613] sm:$0xff]
          %v1744 = vld [vmem:[%s613 + $0x8] sm:$0xff]
          %v1745 = vld [vmem:[%s613 + $0x10] sm:$0xff]
          %v1746 = vld [vmem:[%s613 + $0x18] sm:$0xff]
          %v1747 = vld [vmem:[%s613 + $0x20] sm:$0xff]
          %v1748 = vld [vmem:[%s613 + $0x28] sm:$0xff]
          %v1749 = vld [vmem:[%s613 + $0x30] sm:$0xff]
          %v1750 = vld [vmem:[%s613 + $0x38] sm:$0xff]
          %v1751 = vld [vmem:[%s613 + $0x40] sm:$0xff]
          %v1752 = vld [vmem:[%s613 + $0x48] sm:$0xff]
          %v1753 = vld [vmem:[%s613 + $0x50] sm:$0xff]
          %v1754 = vld [vmem:[%s613 + $0x58] sm:$0xff]
          %v1755 = vld [vmem:[%s613 + $0x60] sm:$0xff]
          %v1756 = vld [vmem:[%s613 + $0x68] sm:$0xff]
          %v1757 = vld [vmem:[%s613 + $0x70] sm:$0xff]
          %v1758 = vld [vmem:[%s613 + $0x78] sm:$0xff]
          %v1759 = vld [vmem:[%s699] sm:$0x1]
          %v1761 = vlaneseq
          %v1762 = vshrl.u32 %v1761, 7
          %v1763 = vsub.s32 0, %v1762
          %v1764 = vrot.slane %v1759, %v1763
          %1766 = vmatprep.subr.mxu0 0.0
          %1767 = vmatpush1.msra.mxu0 %v1743
          %1768 = vmatprep.subr.mxu0 0.0
          %1769 = vmatpush1.msra.mxu0 %v1744
          %1770 = vmatprep.subr.mxu0 0.0
          %1771 = vmatpush1.msra.mxu0 %v1745
          %1772 = vmatprep.subr.mxu0 0.0
          %1773 = vmatpush1.msra.mxu0 %v1746
          %1774 = vmatprep.subr.mxu0 0.0
          %1775 = vmatpush1.msra.mxu0 %v1747
          %1776 = vmatprep.subr.mxu0 0.0
          %1777 = vmatpush1.msra.mxu0 %v1748
          %1778 = vmatprep.subr.mxu0 0.0
          %1779 = vmatpush1.msra.mxu0 %v1749
          %1780 = vmatprep.subr.mxu0 0.0
          %1781 = vmatpush1.msra.mxu0 %v1750
          %1782 = vmatprep.subr.mxu0 0.0
          %1783 = vmatpush1.msra.mxu0 %v1751
          %1784 = vmatprep.subr.mxu0 0.0
          %1785 = vmatpush1.msra.mxu0 %v1752
          %1786 = vmatprep.subr.mxu0 0.0
          %1787 = vmatpush1.msra.mxu0 %v1753
          %1788 = vmatprep.subr.mxu0 0.0
          %1789 = vmatpush1.msra.mxu0 %v1754
          %1790 = vmatprep.subr.mxu0 0.0
          %1791 = vmatpush1.msra.mxu0 %v1755
          %1792 = vmatprep.subr.mxu0 0.0
          %1793 = vmatpush1.msra.mxu0 %v1756
          %1794 = vmatprep.subr.mxu0 0.0
          %1795 = vmatpush1.msra.mxu0 %v1757
          %1796 = vmatprep.subr.mxu0 0.0
          %1797 = vmatpush1.msra.mxu0 %v1758
          %1798 = vmatprep.subr.mxu0 0.0
          %1799 = vmatpush1.msra.mxu0 0.0
          %1800 = vmatprep.subr.mxu0 0.0
          %1801 = vmatpush1.msra.mxu0 0.0
          %1802 = vmatprep.subr.mxu0 0.0
          %1803 = vmatpush1.msra.mxu0 0.0
          %1804 = vmatprep.subr.mxu0 0.0
          %1805 = vmatpush1.msra.mxu0 0.0
          %1806 = vmatprep.subr.mxu0 0.0
          %1807 = vmatpush1.msra.mxu0 0.0
          %1808 = vmatprep.subr.mxu0 0.0
          %1809 = vmatpush1.msra.mxu0 0.0
          %1810 = vmatprep.subr.mxu0 0.0
          %1811 = vmatpush1.msra.mxu0 0.0
          %1812 = vmatprep.subr.mxu0 0.0
          %1813 = vmatpush1.msra.mxu0 0.0
          %1814 = vmatprep.subr.mxu0 0.0
          %1815 = vmatpush1.msra.mxu0 0.0
          %1816 = vmatprep.subr.mxu0 0.0
          %1817 = vmatpush1.msra.mxu0 0.0
          %1818 = vmatprep.subr.mxu0 0.0
          %1819 = vmatpush1.msra.mxu0 0.0
          %1820 = vmatprep.subr.mxu0 0.0
          %1821 = vmatpush1.msra.mxu0 0.0
          %1822 = vmatprep.subr.mxu0 0.0
          %1823 = vmatpush1.msra.mxu0 0.0
          %1824 = vmatprep.subr.mxu0 0.0
          %1825 = vmatpush1.msra.mxu0 0.0
          %1826 = vmatprep.subr.mxu0 0.0
          %1827 = vmatpush1.msra.mxu0 0.0
          %1828 = vmatprep.subr.mxu0 0.0
          %1829 = vmatpush1.msra.mxu0 0.0
          %1830 = vmatprep.mubr.f32.mxu0 0.0
          %1831 = vmatmul.mubr.f32.gmra.mrb[0].mxu0 %v1177
          %v1832 = vpop.f32.mrb[0].mxu0
          %v1833 = vadd.f32 %v1764, %v1832
          %v1834 = vpop.f32.mrb[0].mxu0
          %1835 = vmatprep.mubr.f32.mxu0 0.0
          %1836 = vmatmul.mubr.f32.gmra.mrb[0].mxu0 %v1178
          %v1837 = vpop.f32.mrb[0].mxu0
          %v1838 = vadd.f32 %v1764, %v1837
          %v1839 = vpop.f32.mrb[0].mxu0
          %1840 = vdwg.mxu0
          %s1841 = scalar_lea.vmem %s613, 128 [#allocation12]
          %v1842 = vld [vmem:[%s1841] sm:$0xff]
          %v1843 = vld [vmem:[%s1841 + $0x8] sm:$0xff]
          %v1844 = vld [vmem:[%s1841 + $0x10] sm:$0xff]
          %v1845 = vld [vmem:[%s1841 + $0x18] sm:$0xff]
          %v1846 = vld [vmem:[%s1841 + $0x20] sm:$0xff]
          %v1847 = vld [vmem:[%s1841 + $0x28] sm:$0xff]
          %v1848 = vld [vmem:[%s1841 + $0x30] sm:$0xff]
          %v1849 = vld [vmem:[%s1841 + $0x38] sm:$0xff]
          %v1850 = vld [vmem:[%s1841 + $0x40] sm:$0xff]
          %v1851 = vld [vmem:[%s1841 + $0x48] sm:$0xff]
          %v1852 = vld [vmem:[%s1841 + $0x50] sm:$0xff]
          %v1853 = vld [vmem:[%s1841 + $0x58] sm:$0xff]
          %v1854 = vld [vmem:[%s1841 + $0x60] sm:$0xff]
          %v1855 = vld [vmem:[%s1841 + $0x68] sm:$0xff]
          %v1856 = vld [vmem:[%s1841 + $0x70] sm:$0xff]
          %v1857 = vld [vmem:[%s1841 + $0x78] sm:$0xff]
          %s1858 = scalar_lea.vmem %s699, 1
          %v1859 = vld [vmem:[%s1858] sm:$0x1]
          %v1861 = vlaneseq
          %v1862 = vshrl.u32 %v1861, 7
          %v1863 = vsub.s32 0, %v1862
          %v1864 = vrot.slane %v1859, %v1863
          %1866 = vmatprep.subr.mxu0 0.0
          %1867 = vmatpush1.msra.mxu0 %v1842
          %1868 = vmatprep.subr.mxu0 0.0
          %1869 = vmatpush1.msra.mxu0 %v1843
          %1870 = vmatprep.subr.mxu0 0.0
          %1871 = vmatpush1.msra.mxu0 %v1844
          %1872 = vmatprep.subr.mxu0 0.0
          %1873 = vmatpush1.msra.mxu0 %v1845
          %1874 = vmatprep.subr.mxu0 0.0
          %1875 = vmatpush1.msra.mxu0 %v1846
          %1876 = vmatprep.subr.mxu0 0.0
          %1877 = vmatpush1.msra.mxu0 %v1847
          %1878 = vmatprep.subr.mxu0 0.0
          %1879 = vmatpush1.msra.mxu0 %v1848
          %1880 = vmatprep.subr.mxu0 0.0
          %1881 = vmatpush1.msra.mxu0 %v1849
          %1882 = vmatprep.subr.mxu0 0.0
          %1883 = vmatpush1.msra.mxu0 %v1850
          %1884 = vmatprep.subr.mxu0 0.0
          %1885 = vmatpush1.msra.mxu0 %v1851
          %1886 = vmatprep.subr.mxu0 0.0
          %1887 = vmatpush1.msra.mxu0 %v1852
          %1888 = vmatprep.subr.mxu0 0.0
          %1889 = vmatpush1.msra.mxu0 %v1853
          %1890 = vmatprep.subr.mxu0 0.0
          %1891 = vmatpush1.msra.mxu0 %v1854
          %1892 = vmatprep.subr.mxu0 0.0
          %1893 = vmatpush1.msra.mxu0 %v1855
          %1894 = vmatprep.subr.mxu0 0.0
          %1895 = vmatpush1.msra.mxu0 %v1856
          %1896 = vmatprep.subr.mxu0 0.0
          %1897 = vmatpush1.msra.mxu0 %v1857
          %1898 = vmatprep.subr.mxu0 0.0
          %1899 = vmatpush1.msra.mxu0 0.0
          %1900 = vmatprep.subr.mxu0 0.0
          %1901 = vmatpush1.msra.mxu0 0.0
          %1902 = vmatprep.subr.mxu0 0.0
          %1903 = vmatpush1.msra.mxu0 0.0
          %1904 = vmatprep.subr.mxu0 0.0
          %1905 = vmatpush1.msra.mxu0 0.0
          %1906 = vmatprep.subr.mxu0 0.0
          %1907 = vmatpush1.msra.mxu0 0.0
          %1908 = vmatprep.subr.mxu0 0.0
          %1909 = vmatpush1.msra.mxu0 0.0
          %1910 = vmatprep.subr.mxu0 0.0
          %1911 = vmatpush1.msra.mxu0 0.0
          %1912 = vmatprep.subr.mxu0 0.0
          %1913 = vmatpush1.msra.mxu0 0.0
          %1914 = vmatprep.subr.mxu0 0.0
          %1915 = vmatpush1.msra.mxu0 0.0
          %1916 = vmatprep.subr.mxu0 0.0
          %1917 = vmatpush1.msra.mxu0 0.0
          %1918 = vmatprep.subr.mxu0 0.0
          %1919 = vmatpush1.msra.mxu0 0.0
          %1920 = vmatprep.subr.mxu0 0.0
          %1921 = vmatpush1.msra.mxu0 0.0
          %1922 = vmatprep.subr.mxu0 0.0
          %1923 = vmatpush1.msra.mxu0 0.0
          %1924 = vmatprep.subr.mxu0 0.0
          %1925 = vmatpush1.msra.mxu0 0.0
          %1926 = vmatprep.subr.mxu0 0.0
          %1927 = vmatpush1.msra.mxu0 0.0
          %1928 = vmatprep.subr.mxu0 0.0
          %1929 = vmatpush1.msra.mxu0 0.0
          %1930 = vmatprep.mubr.f32.mxu0 0.0
          %1931 = vmatmul.mubr.f32.gmra.mrb[0].mxu0 %v1316
          %v1932 = vpop.f32.mrb[0].mxu0
          %v1933 = vadd.f32 %v1864, %v1932
          %v1934 = vpop.f32.mrb[0].mxu0
          %1935 = vmatprep.mubr.f32.mxu0 0.0
          %1936 = vmatmul.mubr.f32.gmra.mrb[0].mxu0 %v1317
          %v1937 = vpop.f32.mrb[0].mxu0
          %v1938 = vadd.f32 %v1864, %v1937
          %v1939 = vpop.f32.mrb[0].mxu0
          %1940 = vdwg.mxu0
          %s1941 = scalar_lea.vmem %s613, 256 [#allocation12]
          %v1942 = vld [vmem:[%s1941] sm:$0xff]
          %v1943 = vld [vmem:[%s1941 + $0x8] sm:$0xff]
          %v1944 = vld [vmem:[%s1941 + $0x10] sm:$0xff]
          %v1945 = vld [vmem:[%s1941 + $0x18] sm:$0xff]
          %v1946 = vld [vmem:[%s1941 + $0x20] sm:$0xff]
          %v1947 = vld [vmem:[%s1941 + $0x28] sm:$0xff]
          %v1948 = vld [vmem:[%s1941 + $0x30] sm:$0xff]
          %v1949 = vld [vmem:[%s1941 + $0x38] sm:$0xff]
          %v1950 = vld [vmem:[%s1941 + $0x40] sm:$0xff]
          %v1951 = vld [vmem:[%s1941 + $0x48] sm:$0xff]
          %v1952 = vld [vmem:[%s1941 + $0x50] sm:$0xff]
          %v1953 = vld [vmem:[%s1941 + $0x58] sm:$0xff]
          %v1954 = vld [vmem:[%s1941 + $0x60] sm:$0xff]
          %v1955 = vld [vmem:[%s1941 + $0x68] sm:$0xff]
          %v1956 = vld [vmem:[%s1941 + $0x70] sm:$0xff]
          %v1957 = vld [vmem:[%s1941 + $0x78] sm:$0xff]
          %s1958 = scalar_lea.vmem %s699, 2
          %v1959 = vld [vmem:[%s1958] sm:$0x1]
          %v1961 = vlaneseq
          %v1962 = vshrl.u32 %v1961, 7
          %v1963 = vsub.s32 0, %v1962
          %v1964 = vrot.slane %v1959, %v1963
          %1966 = vmatprep.subr.mxu0 0.0
          %1967 = vmatpush1.msra.mxu0 %v1942
          %1968 = vmatprep.subr.mxu0 0.0
          %1969 = vmatpush1.msra.mxu0 %v1943
          %1970 = vmatprep.subr.mxu0 0.0
          %1971 = vmatpush1.msra.mxu0 %v1944
          %1972 = vmatprep.subr.mxu0 0.0
          %1973 = vmatpush1.msra.mxu0 %v1945
          %1974 = vmatprep.subr.mxu0 0.0
          %1975 = vmatpush1.msra.mxu0 %v1946
          %1976 = vmatprep.subr.mxu0 0.0
          %1977 = vmatpush1.msra.mxu0 %v1947
          %1978 = vmatprep.subr.mxu0 0.0
          %1979 = vmatpush1.msra.mxu0 %v1948
          %1980 = vmatprep.subr.mxu0 0.0
          %1981 = vmatpush1.msra.mxu0 %v1949
          %1982 = vmatprep.subr.mxu0 0.0
          %1983 = vmatpush1.msra.mxu0 %v1950
          %1984 = vmatprep.subr.mxu0 0.0
          %1985 = vmatpush1.msra.mxu0 %v1951
          %1986 = vmatprep.subr.mxu0 0.0
          %1987 = vmatpush1.msra.mxu0 %v1952
          %1988 = vmatprep.subr.mxu0 0.0
          %1989 = vmatpush1.msra.mxu0 %v1953
          %1990 = vmatprep.subr.mxu0 0.0
          %1991 = vmatpush1.msra.mxu0 %v1954
          %1992 = vmatprep.subr.mxu0 0.0
          %1993 = vmatpush1.msra.mxu0 %v1955
          %1994 = vmatprep.subr.mxu0 0.0
          %1995 = vmatpush1.msra.mxu0 %v1956
          %1996 = vmatprep.subr.mxu0 0.0
          %1997 = vmatpush1.msra.mxu0 %v1957
          %1998 = vmatprep.subr.mxu0 0.0
          %1999 = vmatpush1.msra.mxu0 0.0
          %2000 = vmatprep.subr.mxu0 0.0
          %2001 = vmatpush1.msra.mxu0 0.0
          %2002 = vmatprep.subr.mxu0 0.0
          %2003 = vmatpush1.msra.mxu0 0.0
          %2004 = vmatprep.subr.mxu0 0.0
          %2005 = vmatpush1.msra.mxu0 0.0
          %2006 = vmatprep.subr.mxu0 0.0
          %2007 = vmatpush1.msra.mxu0 0.0
          %2008 = vmatprep.subr.mxu0 0.0
          %2009 = vmatpush1.msra.mxu0 0.0
          %2010 = vmatprep.subr.mxu0 0.0
          %2011 = vmatpush1.msra.mxu0 0.0
          %2012 = vmatprep.subr.mxu0 0.0
          %2013 = vmatpush1.msra.mxu0 0.0
          %2014 = vmatprep.subr.mxu0 0.0
          %2015 = vmatpush1.msra.mxu0 0.0
          %2016 = vmatprep.subr.mxu0 0.0
          %2017 = vmatpush1.msra.mxu0 0.0
          %2018 = vmatprep.subr.mxu0 0.0
          %2019 = vmatpush1.msra.mxu0 0.0
          %2020 = vmatprep.subr.mxu0 0.0
          %2021 = vmatpush1.msra.mxu0 0.0
          %2022 = vmatprep.subr.mxu0 0.0
          %2023 = vmatpush1.msra.mxu0 0.0
          %2024 = vmatprep.subr.mxu0 0.0
          %2025 = vmatpush1.msra.mxu0 0.0
          %2026 = vmatprep.subr.mxu0 0.0
          %2027 = vmatpush1.msra.mxu0 0.0
          %2028 = vmatprep.subr.mxu0 0.0
          %2029 = vmatpush1.msra.mxu0 0.0
          %2030 = vmatprep.mubr.f32.mxu0 0.0
          %2031 = vmatmul.mubr.f32.gmra.mrb[0].mxu0 %v1457
          %v2032 = vpop.f32.mrb[0].mxu0
          %v2033 = vadd.f32 %v1964, %v2032
          %v2034 = vpop.f32.mrb[0].mxu0
          %2035 = vmatprep.mubr.f32.mxu0 0.0
          %2036 = vmatmul.mubr.f32.gmra.mrb[0].mxu0 %v1458
          %v2037 = vpop.f32.mrb[0].mxu0
          %v2038 = vadd.f32 %v1964, %v2037
          %v2039 = vpop.f32.mrb[0].mxu0
          %2040 = vdwg.mxu0
          %v2041 = vmul.f32 %v1162, %v719
          %v2042 = vmul.f32 %v1162, %v722
          %s2043 = sld [smem:[#allocation5]]
          %v2044 = vmul.f32 %v1170, %v1658
          %v2045 = vmul.f32 %v1175, %v1664
          %v2046 = vmul.f32 %v2044, %v1833
          %v2047 = vmul.f32 %v2045, %v1838
          %v2048 = vstv %s2043
          %v2049 = vmul.f32 %v2048, %v2046
          %v2050 = vmul.f32 %v2048, %v2047
          %v2051 = vadd.f32 %v2041, %v2049
          %v2052 = vadd.f32 %v2042, %v2050
          %s2053 = sld [smem:[#allocation5 + $0x1]]
          %v2054 = vmul.f32 %v1309, %v1658
          %v2055 = vmul.f32 %v1314, %v1664
          %v2056 = vmul.f32 %v2054, %v1933
          %v2057 = vmul.f32 %v2055, %v1938
          %v2058 = vstv %s2053
          %v2059 = vmul.f32 %v2058, %v2056
          %v2060 = vmul.f32 %v2058, %v2057
          %v2061 = vadd.f32 %v2051, %v2059
          %v2062 = vadd.f32 %v2052, %v2060
          %s2063 = sld [smem:[#allocation5 + $0x2]]
          %v2064 = vmul.f32 %v1450, %v1658
          %v2065 = vmul.f32 %v1455, %v1664
          %v2066 = vmul.f32 %v2064, %v2033
          %v2067 = vmul.f32 %v2065, %v2038
          %v2068 = vstv %s2063
          %v2069 = vmul.f32 %v2068, %v2066
          %v2070 = vmul.f32 %v2068, %v2067
          %v2071 = vadd.f32 %v2061, %v2069
          %v2072 = vadd.f32 %v2062, %v2070
          %2073 = vst [vmem:[#allocation3] sm:$0xff] %v2071
          %2074 = vst [vmem:[#allocation3 + $0x18] sm:$0xff] %v2072
          %v2075 = vmul.f32 %v1162, %v720
          %v2076 = vmul.f32 %v1162, %v723
          %s2077 = sld [smem:[#allocation5]]
          %v2078 = vmul.f32 %v1170, %v1660
          %v2079 = vmul.f32 %v1175, %v1666
          %v2080 = vmul.f32 %v2078, %v1833
          %v2081 = vmul.f32 %v2079, %v1838
          %v2082 = vstv %s2077
          %v2083 = vmul.f32 %v2082, %v2080
          %v2084 = vmul.f32 %v2082, %v2081
          %v2085 = vadd.f32 %v2075, %v2083
          %v2086 = vadd.f32 %v2076, %v2084
          %s2087 = sld [smem:[#allocation5 + $0x1]]
          %v2088 = vmul.f32 %v1309, %v1660
          %v2089 = vmul.f32 %v1314, %v1666
          %v2090 = vmul.f32 %v2088, %v1933
          %v2091 = vmul.f32 %v2089, %v1938
          %v2092 = vstv %s2087
          %v2093 = vmul.f32 %v2092, %v2090
          %v2094 = vmul.f32 %v2092, %v2091
          %v2095 = vadd.f32 %v2085, %v2093
          %v2096 = vadd.f32 %v2086, %v2094
          %s2097 = sld [smem:[#allocation5 + $0x2]]
          %v2098 = vmul.f32 %v1450, %v1660
          %v2099 = vmul.f32 %v1455, %v1666
          %v2100 = vmul.f32 %v2098, %v2033
          %v2101 = vmul.f32 %v2099, %v2038
          %v2102 = vstv %s2097
          %v2103 = vmul.f32 %v2102, %v2100
          %v2104 = vmul.f32 %v2102, %v2101
          %v2105 = vadd.f32 %v2095, %v2103
          %v2106 = vadd.f32 %v2096, %v2104
          %2107 = vst [vmem:[#allocation3 + $0x8] sm:$0xff] %v2105
          %2108 = vst [vmem:[#allocation3 + $0x20] sm:$0xff] %v2106
          %v2109 = vmul.f32 %v1162, %v721
          %v2110 = vmul.f32 %v1162, %v724
          %s2111 = sld [smem:[#allocation5]]
          %v2112 = vmul.f32 %v1170, %v1735
          %v2113 = vmul.f32 %v1175, %v1740
          %v2114 = vmul.f32 %v2112, %v1833
          %v2115 = vmul.f32 %v2113, %v1838
          %v2116 = vstv %s2111
          %v2117 = vmul.f32 %v2116, %v2114
          %v2118 = vmul.f32 %v2116, %v2115
          %v2119 = vadd.f32 %v2109, %v2117
          %v2120 = vadd.f32 %v2110, %v2118
          %s2121 = sld [smem:[#allocation5 + $0x1]]
          %v2122 = vmul.f32 %v1309, %v1735
          %v2123 = vmul.f32 %v1314, %v1740
          %v2124 = vmul.f32 %v2122, %v1933
          %v2125 = vmul.f32 %v2123, %v1938
          %v2126 = vstv %s2121
          %v2127 = vmul.f32 %v2126, %v2124
          %v2128 = vmul.f32 %v2126, %v2125
          %v2129 = vadd.f32 %v2119, %v2127
          %v2130 = vadd.f32 %v2120, %v2128
          %s2131 = sld [smem:[#allocation5 + $0x2]]
          %v2132 = vmul.f32 %v1450, %v1735
          %v2133 = vmul.f32 %v1455, %v1740
          %v2134 = vmul.f32 %v2132, %v2033
          %v2135 = vmul.f32 %v2133, %v2038
          %v2136 = vstv %s2131
          %v2137 = vmul.f32 %v2136, %v2134
          %v2138 = vmul.f32 %v2136, %v2135
          %v2139 = vadd.f32 %v2129, %v2137
          %v2140 = vadd.f32 %v2130, %v2138
          %2141 = vst [vmem:[#allocation3 + $0x10] sm:$0xff] %v2139
          %2142 = vst [vmem:[#allocation3 + $0x28] sm:$0xff] %v2140
        $region116: #{tpu_custom_call.1} parent=83 // pred_fallthru
          _
        // Predicated region
        $region117: #{tpu_custom_call.1} parent=83 // pred_check
          %p2143 = pneg %p700
        $region118: #{tpu_custom_call.1} parent=83 // pred_check_branch
          %2145 = sbr.rel (%p2143) target = $region120
        $region119: #{tpu_custom_call.1} parent=83 // pred_region
          %v2146 = vld [vmem:[%s11] sm:$0x3]
          %v2148 = vsel %vm1003, %v2146, 0
          %2150 = vmatprep.subr.mxu0 0.0
          %2151 = vmatpush1.msra.mxu0 %v1583
          %2152 = vmatprep.subr.mxu0 0.0
          %2153 = vmatpush1.msra.mxu0 %v1584
          %2154 = vmatprep.subr.mxu0 0.0
          %2155 = vmatpush1.msra.mxu0 0.0
          %2156 = vmatprep.subr.mxu0 0.0
          %2157 = vmatpush1.msra.mxu0 0.0
          %2158 = vmatprep.subr.mxu0 0.0
          %2159 = vmatpush1.msra.mxu0 0.0
          %2160 = vmatprep.subr.mxu0 0.0
          %2161 = vmatpush1.msra.mxu0 0.0
          %2162 = vmatprep.subr.mxu0 0.0
          %2163 = vmatpush1.msra.mxu0 0.0
          %2164 = vmatprep.subr.mxu0 0.0
          %2165 = vmatpush1.msra.mxu0 0.0
          %2166 = vmatprep.subr.mxu0 0.0
          %2167 = vmatpush1.msra.mxu0 0.0
          %2168 = vmatprep.subr.mxu0 0.0
          %2169 = vmatpush1.msra.mxu0 0.0
          %2170 = vmatprep.subr.mxu0 0.0
          %2171 = vmatpush1.msra.mxu0 0.0
          %2172 = vmatprep.subr.mxu0 0.0
          %2173 = vmatpush1.msra.mxu0 0.0
          %2174 = vmatprep.subr.mxu0 0.0
          %2175 = vmatpush1.msra.mxu0 0.0
          %2176 = vmatprep.subr.mxu0 0.0
          %2177 = vmatpush1.msra.mxu0 0.0
          %2178 = vmatprep.subr.mxu0 0.0
          %2179 = vmatpush1.msra.mxu0 0.0
          %2180 = vmatprep.subr.mxu0 0.0
          %2181 = vmatpush1.msra.mxu0 0.0
          %2182 = vmatprep.subr.mxu0 0.0
          %2183 = vmatpush1.msra.mxu0 0.0
          %2184 = vmatprep.subr.mxu0 0.0
          %2185 = vmatpush1.msra.mxu0 0.0
          %2186 = vmatprep.subr.mxu0 0.0
          %2187 = vmatpush1.msra.mxu0 0.0
          %2188 = vmatprep.subr.mxu0 0.0
          %2189 = vmatpush1.msra.mxu0 0.0
          %2190 = vmatprep.subr.mxu0 0.0
          %2191 = vmatpush1.msra.mxu0 0.0
          %2192 = vmatprep.subr.mxu0 0.0
          %2193 = vmatpush1.msra.mxu0 0.0
          %2194 = vmatprep.subr.mxu0 0.0
          %2195 = vmatpush1.msra.mxu0 0.0
          %2196 = vmatprep.subr.mxu0 0.0
          %2197 = vmatpush1.msra.mxu0 0.0
          %2198 = vmatprep.subr.mxu0 0.0
          %2199 = vmatpush1.msra.mxu0 0.0
          %2200 = vmatprep.subr.mxu0 0.0
          %2201 = vmatpush1.msra.mxu0 0.0
          %2202 = vmatprep.subr.mxu0 0.0
          %2203 = vmatpush1.msra.mxu0 0.0
          %2204 = vmatprep.subr.mxu0 0.0
          %2205 = vmatpush1.msra.mxu0 0.0
          %2206 = vmatprep.subr.mxu0 0.0
          %2207 = vmatpush1.msra.mxu0 0.0
          %2208 = vmatprep.subr.mxu0 0.0
          %2209 = vmatpush1.msra.mxu0 0.0
          %2210 = vmatprep.subr.mxu0 0.0
          %2211 = vmatpush1.msra.mxu0 0.0
          %2212 = vmatprep.subr.mxu0 0.0
          %2213 = vmatpush1.msra.mxu0 0.0
          %2214 = vmatprep.mubr.f32.mxu0 0.0
          %2215 = vmatmul.mubr.f32.gmra.mrb[0].mxu0 %v2148
          %v2216 = vpop.f32.mrb[0].mxu0
          %v2217 = vadd.f32 0.0, %v2216
          %v2218 = vpop.f32.mrb[0].mxu0
          %2219 = vdwg.mxu0
          %v2220 = vld [vmem:[#allocation13] sm:$0xff]
          %v2221 = vld [vmem:[#allocation13 + $0x8] sm:$0xff]
          %v2222 = vld [vmem:[#allocation13 + $0x10] sm:$0xff]
          %v2223 = vld [vmem:[#allocation13 + $0x18] sm:$0xff]
          %v2224 = vld [vmem:[#allocation13 + $0x20] sm:$0xff]
          %v2225 = vld [vmem:[#allocation13 + $0x28] sm:$0xff]
          %v2226 = vld [vmem:[#allocation13 + $0x30] sm:$0xff]
          %v2227 = vld [vmem:[#allocation13 + $0x38] sm:$0xff]
          %v2228 = vld [vmem:[#allocation13 + $0x40] sm:$0xff]
          %v2229 = vld [vmem:[#allocation13 + $0x48] sm:$0xff]
          %v2230 = vld [vmem:[#allocation13 + $0x50] sm:$0xff]
          %v2231 = vld [vmem:[#allocation13 + $0x58] sm:$0xff]
          %v2232 = vld [vmem:[#allocation13 + $0x60] sm:$0xff]
          %v2233 = vld [vmem:[#allocation13 + $0x68] sm:$0xff]
          %v2234 = vld [vmem:[#allocation13 + $0x70] sm:$0xff]
          %v2235 = vld [vmem:[#allocation13 + $0x78] sm:$0xff]
          %v2236 = vld [vmem:[%s13] sm:$0x1]
          %v2238 = vlaneseq
          %v2239 = vshrl.u32 %v2238, 7
          %v2240 = vsub.s32 0, %v2239
          %v2241 = vrot.slane %v2236, %v2240
          %2243 = vmatprep.subr.mxu0 0.0
          %2244 = vmatpush1.msra.mxu0 %v2220
          %2245 = vmatprep.subr.mxu0 0.0
          %2246 = vmatpush1.msra.mxu0 %v2221
          %2247 = vmatprep.subr.mxu0 0.0
          %2248 = vmatpush1.msra.mxu0 %v2222
          %2249 = vmatprep.subr.mxu0 0.0
          %2250 = vmatpush1.msra.mxu0 %v2223
          %2251 = vmatprep.subr.mxu0 0.0
          %2252 = vmatpush1.msra.mxu0 %v2224
          %2253 = vmatprep.subr.mxu0 0.0
          %2254 = vmatpush1.msra.mxu0 %v2225
          %2255 = vmatprep.subr.mxu0 0.0
          %2256 = vmatpush1.msra.mxu0 %v2226
          %2257 = vmatprep.subr.mxu0 0.0
          %2258 = vmatpush1.msra.mxu0 %v2227
          %2259 = vmatprep.subr.mxu0 0.0
          %2260 = vmatpush1.msra.mxu0 %v2228
          %2261 = vmatprep.subr.mxu0 0.0
          %2262 = vmatpush1.msra.mxu0 %v2229
          %2263 = vmatprep.subr.mxu0 0.0
          %2264 = vmatpush1.msra.mxu0 %v2230
          %2265 = vmatprep.subr.mxu0 0.0
          %2266 = vmatpush1.msra.mxu0 %v2231
          %2267 = vmatprep.subr.mxu0 0.0
          %2268 = vmatpush1.msra.mxu0 %v2232
          %2269 = vmatprep.subr.mxu0 0.0
          %2270 = vmatpush1.msra.mxu0 %v2233
          %2271 = vmatprep.subr.mxu0 0.0
          %2272 = vmatpush1.msra.mxu0 %v2234
          %2273 = vmatprep.subr.mxu0 0.0
          %2274 = vmatpush1.msra.mxu0 %v2235
          %2275 = vmatprep.subr.mxu0 0.0
          %2276 = vmatpush1.msra.mxu0 0.0
          %2277 = vmatprep.subr.mxu0 0.0
          %2278 = vmatpush1.msra.mxu0 0.0
          %2279 = vmatprep.subr.mxu0 0.0
          %2280 = vmatpush1.msra.mxu0 0.0
          %2281 = vmatprep.subr.mxu0 0.0
          %2282 = vmatpush1.msra.mxu0 0.0
          %2283 = vmatprep.subr.mxu0 0.0
          %2284 = vmatpush1.msra.mxu0 0.0
          %2285 = vmatprep.subr.mxu0 0.0
          %2286 = vmatpush1.msra.mxu0 0.0
          %2287 = vmatprep.subr.mxu0 0.0
          %2288 = vmatpush1.msra.mxu0 0.0
          %2289 = vmatprep.subr.mxu0 0.0
          %2290 = vmatpush1.msra.mxu0 0.0
          %2291 = vmatprep.subr.mxu0 0.0
          %2292 = vmatpush1.msra.mxu0 0.0
          %2293 = vmatprep.subr.mxu0 0.0
          %2294 = vmatpush1.msra.mxu0 0.0
          %2295 = vmatprep.subr.mxu0 0.0
          %2296 = vmatpush1.msra.mxu0 0.0
          %2297 = vmatprep.subr.mxu0 0.0
          %2298 = vmatpush1.msra.mxu0 0.0
          %2299 = vmatprep.subr.mxu0 0.0
          %2300 = vmatpush1.msra.mxu0 0.0
          %2301 = vmatprep.subr.mxu0 0.0
          %2302 = vmatpush1.msra.mxu0 0.0
          %2303 = vmatprep.subr.mxu0 0.0
          %2304 = vmatpush1.msra.mxu0 0.0
          %2305 = vmatprep.subr.mxu0 0.0
          %2306 = vmatpush1.msra.mxu0 0.0
          %2307 = vmatprep.mubr.f32.mxu0 0.0
          %2308 = vmatmul.mubr.f32.gmra.mrb[0].mxu0 %v2217
          %v2309 = vpop.f32.mrb[0].mxu0
          %v2310 = vadd.f32 %v2241, %v2309
          %v2311 = vpop.f32.mrb[0].mxu0
          %2312 = vdwg.mxu0
          %v2313 = vmax.f32 %v2310, 0.0
          %v2314 = vand.u32 2147483647, %v2310
          %v2315 = vsub.f32 0.0, %v2314
          %v2316 = vmul.f32 %v2315, 1.442695
          %v2317 = vpow.pop %v2316
          %v2318 = vadd.f32 %v2317, 1.0
          %v2319 = vlog2.pop %v2318
          %v2320 = vmul.f32 %v2319, 0.6931472
          %v2321 = vadd.f32 %v2313, %v2320
          %v2322 = vsub.f32 %v2321, 0.6931472
          %v2323 = vld [vmem:[#allocation15] sm:$0xff]
          %v2324 = vld [vmem:[#allocation15 + $0x8] sm:$0xff]
          %v2325 = vld [vmem:[#allocation15 + $0x10] sm:$0xff]
          %v2326 = vld [vmem:[#allocation15 + $0x18] sm:$0xff]
          %v2327 = vld [vmem:[#allocation15 + $0x20] sm:$0xff]
          %v2328 = vld [vmem:[#allocation15 + $0x28] sm:$0xff]
          %v2329 = vld [vmem:[#allocation15 + $0x30] sm:$0xff]
          %v2330 = vld [vmem:[#allocation15 + $0x38] sm:$0xff]
          %v2331 = vld [vmem:[#allocation15 + $0x40] sm:$0xff]
          %v2332 = vld [vmem:[#allocation15 + $0x48] sm:$0xff]
          %v2333 = vld [vmem:[#allocation15 + $0x50] sm:$0xff]
          %v2334 = vld [vmem:[#allocation15 + $0x58] sm:$0xff]
          %v2335 = vld [vmem:[#allocation15 + $0x60] sm:$0xff]
          %v2336 = vld [vmem:[#allocation15 + $0x68] sm:$0xff]
          %v2337 = vld [vmem:[#allocation15 + $0x70] sm:$0xff]
          %v2338 = vld [vmem:[#allocation15 + $0x78] sm:$0xff]
          %v2339 = vld [vmem:[%s15] sm:$0x1]
          %v2341 = vlaneseq
          %v2342 = vshrl.u32 %v2341, 7
          %v2343 = vsub.s32 0, %v2342
          %v2344 = vrot.slane %v2339, %v2343
          %2346 = vmatprep.subr.mxu0 0.0
          %2347 = vmatpush1.msra.mxu0 %v2323
          %2348 = vmatprep.subr.mxu0 0.0
          %2349 = vmatpush1.msra.mxu0 %v2324
          %2350 = vmatprep.subr.mxu0 0.0
          %2351 = vmatpush1.msra.mxu0 %v2325
          %2352 = vmatprep.subr.mxu0 0.0
          %2353 = vmatpush1.msra.mxu0 %v2326
          %2354 = vmatprep.subr.mxu0 0.0
          %2355 = vmatpush1.msra.mxu0 %v2327
          %2356 = vmatprep.subr.mxu0 0.0
          %2357 = vmatpush1.msra.mxu0 %v2328
          %2358 = vmatprep.subr.mxu0 0.0
          %2359 = vmatpush1.msra.mxu0 %v2329
          %2360 = vmatprep.subr.mxu0 0.0
          %2361 = vmatpush1.msra.mxu0 %v2330
          %2362 = vmatprep.subr.mxu0 0.0
          %2363 = vmatpush1.msra.mxu0 %v2331
          %2364 = vmatprep.subr.mxu0 0.0
          %2365 = vmatpush1.msra.mxu0 %v2332
          %2366 = vmatprep.subr.mxu0 0.0
          %2367 = vmatpush1.msra.mxu0 %v2333
          %2368 = vmatprep.subr.mxu0 0.0
          %2369 = vmatpush1.msra.mxu0 %v2334
          %2370 = vmatprep.subr.mxu0 0.0
          %2371 = vmatpush1.msra.mxu0 %v2335
          %2372 = vmatprep.subr.mxu0 0.0
          %2373 = vmatpush1.msra.mxu0 %v2336
          %2374 = vmatprep.subr.mxu0 0.0
          %2375 = vmatpush1.msra.mxu0 %v2337
          %2376 = vmatprep.subr.mxu0 0.0
          %2377 = vmatpush1.msra.mxu0 %v2338
          %2378 = vmatprep.subr.mxu0 0.0
          %2379 = vmatpush1.msra.mxu0 0.0
          %2380 = vmatprep.subr.mxu0 0.0
          %2381 = vmatpush1.msra.mxu0 0.0
          %2382 = vmatprep.subr.mxu0 0.0
          %2383 = vmatpush1.msra.mxu0 0.0
          %2384 = vmatprep.subr.mxu0 0.0
          %2385 = vmatpush1.msra.mxu0 0.0
          %2386 = vmatprep.subr.mxu0 0.0
          %2387 = vmatpush1.msra.mxu0 0.0
          %2388 = vmatprep.subr.mxu0 0.0
          %2389 = vmatpush1.msra.mxu0 0.0
          %2390 = vmatprep.subr.mxu0 0.0
          %2391 = vmatpush1.msra.mxu0 0.0
          %2392 = vmatprep.subr.mxu0 0.0
          %2393 = vmatpush1.msra.mxu0 0.0
          %2394 = vmatprep.subr.mxu0 0.0
          %2395 = vmatpush1.msra.mxu0 0.0
          %2396 = vmatprep.subr.mxu0 0.0
          %2397 = vmatpush1.msra.mxu0 0.0
          %2398 = vmatprep.subr.mxu0 0.0
          %2399 = vmatpush1.msra.mxu0 0.0
          %2400 = vmatprep.subr.mxu0 0.0
          %2401 = vmatpush1.msra.mxu0 0.0
          %2402 = vmatprep.subr.mxu0 0.0
          %2403 = vmatpush1.msra.mxu0 0.0
          %2404 = vmatprep.subr.mxu0 0.0
          %2405 = vmatpush1.msra.mxu0 0.0
          %2406 = vmatprep.subr.mxu0 0.0
          %2407 = vmatpush1.msra.mxu0 0.0
          %2408 = vmatprep.subr.mxu0 0.0
          %2409 = vmatpush1.msra.mxu0 0.0
          %2410 = vmatprep.mubr.f32.mxu0 0.0
          %2411 = vmatmul.mubr.f32.gmra.mrb[0].mxu0 %v2322
          %v2412 = vpop.f32.mrb[0].mxu0
          %v2413 = vadd.f32 %v2344, %v2412
          %v2414 = vpop.f32.mrb[0].mxu0
          %2415 = vdwg.mxu0
          %2416 = vst [vmem:[#allocation16] sm:$0x3] %v2413
        $region120: #{tpu_custom_call.1} parent=83 // pred_fallthru
          _
        // Predicated region
        $region121: #{tpu_custom_call.1} parent=83 // pred_check
          %p2417 = pneg %p416
        $region122: #{tpu_custom_call.1} parent=83 // pred_check_branch
          %2419 = sbr.rel (%p2417) target = $region124
        $region123: #{tpu_custom_call.1} parent=83 // pred_region
          %s2421 = ssub.s32 32, 32
          %2422 = vsyncadd [#allocation7], %s2421
          %s2424 = sshll.u32 [#allocation16], 4
          %s2425 = int_to_ptr.vmem [resolvable:$true] %s2424
          %2427 = dma.vmem_to_hbm [thread:$0]  %s2425, 32, %s16, [#allocation7]
        $region124: #{tpu_custom_call.1} parent=83 // pred_fallthru
          _
        // Predicated region
        $region125: #{tpu_custom_call.1} parent=83 // pred_check
          %p2428 = pneg %p416
        $region126: #{tpu_custom_call.1} parent=83 // pred_check_branch
          %2430 = sbr.rel (%p2428) target = $region128
        $region127: #{tpu_custom_call.1} parent=83 // pred_region
          %2431 = dma.done [#allocation7], 32
        $region128: #{tpu_custom_call.1} parent=83 // pred_fallthru
          _
      $region84: #{tpu_custom_call.1} parent=5 // pred_fallthru
        _
      %p2432 = scmp.le.s32.totalorder 2, %s32
      // Predicated region
      $region129: #{tpu_custom_call.1} parent=5 // pred_check
        %p2433 = pneg %p2432
      $region130: #{tpu_custom_call.1} parent=5 // pred_check_branch
        %2435 = sbr.rel (%p2433) target = $region132
      $region131: #{tpu_custom_call.1} parent=5 // pred_region
        %s2436 = ssub.s32 %s32, 2
      $region132: #{tpu_custom_call.1} parent=5 // pred_fallthru
        _
    $region6: #{tpu_custom_call.1} parent=1 // loop_footer
      %s36 = sadd.s32 1, %s32
    $region7: #{tpu_custom_call.1} parent=1 // loop_footer_branch
      %31 = sbr.rel target = $region3
    $region8: #{tpu_custom_call.1} parent=1 // loop_exit
      _
    %2437 = vsyncpa [#allocation6], 1
    %s2438 = scalar_lea.sflag [#allocation6], 1
    %2439 = vsyncpa %s2438, 1
    %2440 = vsyncpa [#allocation11], 1
    %s2441 = scalar_lea.sflag [#allocation11], 1
    %2442 = vsyncpa %s2441, 1
    %2443 = vsyncpa [#allocation14], 1
    %2444 = vsyncpa [#allocation7], 1
    %s2445 = scalar_lea.sflag [#allocation7], 1
    %2446 = vsyncpa %s2445, 1
    %2447 = vsyncpa [#allocation8], 1
    %s2448 = scalar_lea.sflag [#allocation8], 1
    %2449 = vsyncpa %s2448, 1

</llo_original>
